<compile_context>
chip_gen: v7x
topology: tpu7x:2x2x1
jax: 0.10.0
libtpu: 0.0.40
codegen_flags: <defaults>
</compile_context>

<pallas_src>
import numpy as np
import jax
import jax.numpy as jnp
from jax.experimental import pallas as pl
from jax.experimental.pallas import tpu as pltpu

EPS = 1e-5       # PyTorch BatchNorm1d default eps
OUT_PAD = 128    # lane-dense padding for the k*k (=9) output of fc3
CH = 256         # conv3 output-lane chunk (1024 = 4 * 256)


# ----------------------------- fused kernel --------------------------------------------

def make_fused_kernel(b_tile, n_tile, c_in, ch=CH):
    """conv1/2/3 (+folded BN, ReLU), running max-pool over points, FC head epilogue."""
    n_chunks = 1024 // ch

    def kernel(x_ref, w1_ref, b1_ref, w2_ref, b2_ref, w3_ref, b3_ref,
               fw1_ref, fb1_ref, fw2_ref, fb2_ref, fw3_ref, fb3_ref,
               o_ref, pooled_ref):
        n_idx = pl.program_id(1)

        # -- init the per-batch-tile max accumulator on the first point-tile --
        @pl.when(n_idx == 0)
        def _():
            pooled_ref[...] = jnp.full_like(pooled_ref, -jnp.inf)

        x = x_ref[...].reshape(b_tile * n_tile, c_in)               # (M, k) f32

        # conv1/bn1/relu as VPU broadcast-FMA (K = k = 3 is too small for the MXU)
        h = b1_ref[...] + x[:, 0:1] * w1_ref[0:1, :]
        for c in range(1, c_in):
            h = h + x[:, c:c + 1] * w1_ref[c:c + 1, :]
        h = jnp.maximum(h, 0.0)                                      # (M, 64) f32

        # conv2/bn2/relu on the MXU: bf16 operands, f32 accumulation
        h = jnp.maximum(
            jnp.dot(h.astype(jnp.bfloat16), w2_ref[...],
                    preferred_element_type=jnp.float32) + b2_ref[...], 0.0)   # (M, 128)
        hb = h.astype(jnp.bfloat16)

        # conv3/bn3/relu chunked over the 1024 output lanes; reduce over points
        # directly into the resident pooled accumulator (never materialize (M, 1024)).
        for c in range(n_chunks):
            sl = slice(c * ch, (c + 1) * ch)
            hc = jnp.maximum(
                jnp.dot(hb, w3_ref[:, sl], preferred_element_type=jnp.float32)
                + b3_ref[:, sl], 0.0)                                # (M, ch)
            m = jnp.max(hc.reshape(b_tile, n_tile, ch), axis=1)      # (Bt, ch)
            pooled_ref[:, sl] = jnp.maximum(pooled_ref[:, sl], m)

        # -- FC head fused as an epilogue on the last point-tile (f32, tiny FLOPs) --
        @pl.when(n_idx == pl.num_programs(1) - 1)
        def _():
            g = pooled_ref[...]                                                  # (Bt, 1024)
            f = jnp.maximum(
                jnp.dot(g, fw1_ref[...], preferred_element_type=jnp.float32)
                + fb1_ref[...], 0.0)                                             # (Bt, 512)
            f = jnp.maximum(
                jnp.dot(f, fw2_ref[...], preferred_element_type=jnp.float32)
                + fb2_ref[...], 0.0)                                             # (Bt, 256)
            out = jnp.dot(f, fw3_ref[...], preferred_element_type=jnp.float32) \
                + fb3_ref[...]                                                   # (Bt, 128)
            o_ref[...] = out.astype(o_ref.dtype)

    return kernel


# ----------------------------- wrapper --------------------------------------------------

def _round_up(v, m):
    return ((v + m - 1) // m) * m


def _vmem_limit_bytes():
    """3/4 of physical VMEM (96 MiB on v5e/v6e, 48 MiB on v7x), capped at 100 MiB."""
    try:
        cap = int(pltpu.get_tpu_info().vmem_capacity_bytes)
        if cap < 32 * 1024 * 1024:
            cap = 64 * 1024 * 1024
    except Exception:
        cap = 64 * 1024 * 1024          # conservative fallback (v7x physical)
    return int(min((cap // 4) * 3, 100 * 1024 * 1024))


def _choose_tiles(B, N):
    """Pick (b_tile, n_tile, n_padded).

    * b_tile * n_tile <= CAP_ROWS (rows per MXU pass; bounds per-step VMEM temporaries).
    * b_tile is a multiple of 8 (sublane-dense (Bt, 128) output block) or equals B.
    * prefer >= 2 steps on the parallel batch axis (v7x megacore) when alignment allows.
    * n_tile is a multiple of 8; points are edge-padded up to a multiple of it.
    """
    CAP_ROWS = 2048
    cap_b = min(128, CAP_ROWS // 8)
    cands = [d for d in range(8, B + 1, 8) if B % d == 0]   # 8-aligned divisors of B
    if not cands:
        cands = [B]                                          # tiny/odd batch: full-dim block
    cands = [d for d in cands if d <= cap_b] or [min(cands)]
    multi = [d for d in cands if B // d >= 2]                # >=2 parallel batch steps
    b_tile = max(multi) if multi else max(cands)

    n_tile = max(8, min(_round_up(N, 8), (CAP_ROWS // b_tile) // 8 * 8))
    n_pad = _round_up(N, n_tile)
    return b_tile, n_tile, n_pad


def tnet_pallas(x_bkn, kparams, k=3):
    """x_bkn: (B, k, N) float32, PyTorch NCW.  Returns (B, k, k)."""
    B, C, N = x_bkn.shape
    assert C == k
    x = jnp.transpose(x_bkn, (0, 2, 1))                 # (B, N, k) channels-last

    b_tile, n_tile, n_pad = _choose_tiles(B, N)
    if n_pad != N:
        # edge-pad: duplicated real points cannot change the max -> no in-kernel mask
        x = jnp.pad(x, ((0, 0), (0, n_pad - N), (0, 0)), mode='edge')

    weights = kparams   # (w1, b1, w2, b2, w3, b3, fw1, fb1, fw2, fb2, fw3p, fb3p)

    def const_spec(a):
        z = (0,) * a.ndim
        return pl.BlockSpec(a.shape, lambda b, n, _z=z: _z)

    out_pad = pl.pallas_call(
        make_fused_kernel(b_tile, n_tile, k),
        out_shape=jax.ShapeDtypeStruct((B, OUT_PAD), jnp.float32),
        grid=(B // b_tile, n_pad // n_tile),
        in_specs=[pl.BlockSpec((b_tile, n_tile, k), lambda b, n: (b, n, 0))]
                 + [const_spec(a) for a in weights],
        out_specs=pl.BlockSpec((b_tile, OUT_PAD), lambda b, n: (b, 0)),
        scratch_shapes=[pltpu.VMEM((b_tile, 1024), jnp.float32)],
        compiler_params=pltpu.CompilerParams(
            dimension_semantics=("parallel", "arbitrary"),
            vmem_limit_bytes=_vmem_limit_bytes()),
    )(x, *weights)

    return out_pad[:, :k * k].reshape(B, k, k)


# ---------------- deterministic parameter construction (synthetic weights) -------------

def init_raw_params(key, k=3):
    ks = iter(jax.random.split(key, 40))

    def dense(shape, fan_in):
        return (jax.random.normal(next(ks), shape, jnp.float32) / np.sqrt(fan_in)).astype(jnp.float32)

    def bn(c):
        gamma = 1.0 + 0.1 * jax.random.normal(next(ks), (c,), jnp.float32)
        beta = 0.1 * jax.random.normal(next(ks), (c,), jnp.float32)
        rmean = 0.1 * jax.random.normal(next(ks), (c,), jnp.float32)
        rvar = 1.0 + 0.1 * jnp.abs(jax.random.normal(next(ks), (c,), jnp.float32))
        return (gamma, beta, rmean, rvar)

    return {
        'conv1_w': dense((64, k), k),        'conv1_b': dense((64,), k),
        'conv2_w': dense((128, 64), 64),     'conv2_b': dense((128,), 64),
        'conv3_w': dense((1024, 128), 128),  'conv3_b': dense((1024,), 128),
        'fc1_w': dense((512, 1024), 1024),   'fc1_b': dense((512,), 1024),
        'fc2_w': dense((256, 512), 512),     'fc2_b': dense((256,), 512),
        'fc3_w': dense((k * k, 256), 256),   'fc3_b': dense((k * k,), 256),
        'bn1': bn(64), 'bn2': bn(128), 'bn3': bn(1024), 'bn4': bn(512), 'bn5': bn(256),
    }


def _fold_affine(w_oi, b_o, bn_params):
    """Fold eval-mode BN into (in, out) weight + (1, out) bias."""
    gamma, beta, rmean, rvar = bn_params
    scale = gamma / jnp.sqrt(rvar + EPS)
    w_io = w_oi.T * scale[None, :]
    b = (b_o - rmean) * scale + beta
    return w_io.astype(jnp.float32), b.reshape(1, -1).astype(jnp.float32)


def build_kernel_params(raw, k=3):
    w1, b1 = _fold_affine(raw['conv1_w'], raw['conv1_b'], raw['bn1'])
    w2, b2 = _fold_affine(raw['conv2_w'], raw['conv2_b'], raw['bn2'])
    w3, b3 = _fold_affine(raw['conv3_w'], raw['conv3_b'], raw['bn3'])
    fw1, fb1 = _fold_affine(raw['fc1_w'], raw['fc1_b'], raw['bn4'])
    fw2, fb2 = _fold_affine(raw['fc2_w'], raw['fc2_b'], raw['bn5'])
    iden = jnp.eye(k, dtype=jnp.float32).reshape(-1)
    # pad fc3 to 128 output lanes (identity folded into the bias); wrapper slices [:, :k*k]
    fw3p = jnp.zeros((256, OUT_PAD), jnp.float32).at[:, :k * k].set(raw['fc3_w'].T.astype(jnp.float32))
    fb3p = jnp.zeros((1, OUT_PAD), jnp.float32).at[0, :k * k].set((raw['fc3_b'] + iden).astype(jnp.float32))
    # bf16 weights for the MXU-dominant conv2/conv3 matmuls (f32 accumulation in-kernel);
    # conv1 (VPU) and the FC head stay f32.
    return (w1, b1,
            w2.astype(jnp.bfloat16), b2,
            w3.astype(jnp.bfloat16), b3,
            fw1, fb1, fw2, fb2, fw3p, fb3p)


# ---------------- pure-JAX reference mirroring the PyTorch graph ------------------------

def tnet_reference(x, raw, k=3):
    HI = jax.lax.Precision.HIGHEST

    def bn_ncw(y, p):
        g, b, m, v = p
        return (y - m[None, :, None]) / jnp.sqrt(v[None, :, None] + EPS) * g[None, :, None] + b[None, :, None]

    def bn_nc(y, p):
        g, b, m, v = p
        return (y - m) / jnp.sqrt(v + EPS) * g + b

    h = jnp.einsum('oc,bcn->bon', raw['conv1_w'], x, precision=HI) + raw['conv1_b'][None, :, None]
    h = jax.nn.relu(bn_ncw(h, raw['bn1']))
    h = jnp.einsum('oc,bcn->bon', raw['conv2_w'], h, precision=HI) + raw['conv2_b'][None, :, None]
    h = jax.nn.relu(bn_ncw(h, raw['bn2']))
    h = jnp.einsum('oc,bcn->bon', raw['conv3_w'], h, precision=HI) + raw['conv3_b'][None, :, None]
    h = jax.nn.relu(bn_ncw(h, raw['bn3']))
    h = jnp.max(h, axis=2)  # (B, 1024)
    h = jax.nn.relu(bn_nc(jnp.dot(h, raw['fc1_w'].T, precision=HI) + raw['fc1_b'], raw['bn4']))
    h = jax.nn.relu(bn_nc(jnp.dot(h, raw['fc2_w'].T, precision=HI) + raw['fc2_b'], raw['bn5']))
    h = jnp.dot(h, raw['fc3_w'].T, precision=HI) + raw['fc3_b']
    h = h + jnp.eye(k, dtype=jnp.float32).reshape(-1)
    return h.reshape(-1, k, k)


if __name__ == "__main__":
    key = jax.random.PRNGKey(0)
    kx, kp = jax.random.split(key)

    k = 3
    B, N = 2, 16                                        # small: batch=2, 16 points
    x = jax.random.normal(kx, (B, k, N), jnp.float32)   # PyTorch NCW input: (B, k, num_points)

    raw = init_raw_params(kp, k)
    kparams = build_kernel_params(raw, k)

    out = tnet_pallas(x, kparams, k=k)
    out = jax.block_until_ready(out)
    assert out.shape == (B, k, k) and out.dtype == jnp.float32

    ref = tnet_reference(x, raw, k)
    # conv2/conv3 use bf16 MXU operands (f32 accumulation); tolerance reflects bf16 rounding.
    np.testing.assert_allclose(np.asarray(out), np.asarray(ref), rtol=2e-2, atol=2e-2)

    print("KERNEL_OK")
</pallas_src>

<mosaic_0001>
module attributes {stable_mosaic.version = 11 : i64} {
  func.func @kernel(%arg0: i32, %arg1: i32, %arg2: memref<2x16x3xf32, #tpu.memory_space<vmem>>, %arg3: memref<3x64xf32, #tpu.memory_space<vmem>>, %arg4: memref<1x64xf32, #tpu.memory_space<vmem>>, %arg5: memref<64x128xbf16, #tpu.memory_space<vmem>>, %arg6: memref<1x128xf32, #tpu.memory_space<vmem>>, %arg7: memref<128x1024xbf16, #tpu.memory_space<vmem>>, %arg8: memref<1x1024xf32, #tpu.memory_space<vmem>>, %arg9: memref<1024x512xf32, #tpu.memory_space<vmem>>, %arg10: memref<1x512xf32, #tpu.memory_space<vmem>>, %arg11: memref<512x256xf32, #tpu.memory_space<vmem>>, %arg12: memref<1x256xf32, #tpu.memory_space<vmem>>, %arg13: memref<256x128xf32, #tpu.memory_space<vmem>>, %arg14: memref<1x128xf32, #tpu.memory_space<vmem>>, %arg15: memref<2x128xf32, #tpu.memory_space<vmem>>, %arg16: memref<2x1024xf32, #tpu.memory_space<vmem>>) attributes {dimension_semantics = [#tpu.dimension_semantics<parallel>, #tpu.dimension_semantics<arbitrary>], iteration_bounds = array<i64: 1, 1>, scalar_prefetch = 0 : i64, scratch_operands = 1 : i64, tpu.core_type = #tpu.core_type<tc>, window_params = [{transform_indices = @transform_0, window_bounds = array<i64: 2, 16, 3>}, {pipeline_mode = #tpu.pipeline_mode<synchronous>, transform_indices = @transform_1, window_bounds = array<i64: 3, 64>}, {pipeline_mode = #tpu.pipeline_mode<synchronous>, transform_indices = @transform_2, window_bounds = array<i64: 1, 64>}, {pipeline_mode = #tpu.pipeline_mode<synchronous>, transform_indices = @transform_3, window_bounds = array<i64: 64, 128>}, {pipeline_mode = #tpu.pipeline_mode<synchronous>, transform_indices = @transform_4, window_bounds = array<i64: 1, 128>}, {pipeline_mode = #tpu.pipeline_mode<synchronous>, transform_indices = @transform_5, window_bounds = array<i64: 128, 1024>}, {pipeline_mode = #tpu.pipeline_mode<synchronous>, transform_indices = @transform_6, window_bounds = array<i64: 1, 1024>}, {pipeline_mode = #tpu.pipeline_mode<synchronous>, transform_indices = @transform_7, window_bounds = array<i64: 1024, 512>}, {pipeline_mode = #tpu.pipeline_mode<synchronous>, transform_indices = @transform_8, window_bounds = array<i64: 1, 512>}, {pipeline_mode = #tpu.pipeline_mode<synchronous>, transform_indices = @transform_9, window_bounds = array<i64: 512, 256>}, {pipeline_mode = #tpu.pipeline_mode<synchronous>, transform_indices = @transform_10, window_bounds = array<i64: 1, 256>}, {pipeline_mode = #tpu.pipeline_mode<synchronous>, transform_indices = @transform_11, window_bounds = array<i64: 256, 128>}, {pipeline_mode = #tpu.pipeline_mode<synchronous>, transform_indices = @transform_12, window_bounds = array<i64: 1, 128>}, {transform_indices = @transform_13, window_bounds = array<i64: 2, 128>}]} {
    %c0_i32 = arith.constant 0 : i32
    %0 = arith.cmpi eq, %arg1, %c0_i32 : i32
    %1 = arith.extui %0 : i1 to i32
    %c0_i32_0 = arith.constant 0 : i32
    %2 = arith.cmpi ne, %1, %c0_i32_0 : i32
    scf.if %2 {
      %cst_58 = arith.constant 0xFF800000 : f32
      %87 = vector.broadcast %cst_58 : f32 to vector<2x1024xf32>
      %c0_59 = arith.constant 0 : index
      %c0_60 = arith.constant 0 : index
      %88 = vector.load %arg16[%c0_59, %c0_60] : memref<2x1024xf32, #tpu.memory_space<vmem>>, vector<2x1024xf32>
      tpu.vector_store %arg16[%c0_59, %c0_60], %87 {strides = array<i32>} : memref<2x1024xf32, #tpu.memory_space<vmem>>, vector<2x1024xf32>,
    } else {
    }
    %c0 = arith.constant 0 : index
    %c0_1 = arith.constant 0 : index
    %c0_2 = arith.constant 0 : index
    %3 = vector.load %arg2[%c0, %c0_1, %c0_2] : memref<2x16x3xf32, #tpu.memory_space<vmem>>, vector<2x16x3xf32>
    %4 = vector.shape_cast %3 : vector<2x16x3xf32> to vector<32x3xf32>
    %c0_3 = arith.constant 0 : index
    %c0_4 = arith.constant 0 : index
    %5 = vector.load %arg4[%c0_3, %c0_4] : memref<1x64xf32, #tpu.memory_space<vmem>>, vector<1x64xf32>
    %6 = vector.extract_strided_slice %4 {offsets = [0, 0], sizes = [32, 1], strides = [1, 1]} : vector<32x3xf32> to vector<32x1xf32>
    %c0_5 = arith.constant 0 : index
    %c0_6 = arith.constant 0 : index
    %7 = vector.load %arg3[%c0_5, %c0_6] : memref<3x64xf32, #tpu.memory_space<vmem>>, vector<1x64xf32>
    %8 = vector.broadcast %6 : vector<32x1xf32> to vector<32x64xf32>
    %9 = vector.broadcast %7 : vector<1x64xf32> to vector<32x64xf32>
    %10 = arith.mulf %8, %9 : vector<32x64xf32>
    %11 = vector.broadcast %5 : vector<1x64xf32> to vector<32x64xf32>
    %12 = arith.addf %11, %10 : vector<32x64xf32>
    %13 = vector.extract_strided_slice %4 {offsets = [0, 1], sizes = [32, 1], strides = [1, 1]} : vector<32x3xf32> to vector<32x1xf32>
    %c1 = arith.constant 1 : index
    %c0_7 = arith.constant 0 : index
    %14 = vector.load %arg3[%c1, %c0_7] : memref<3x64xf32, #tpu.memory_space<vmem>>, vector<1x64xf32>
    %15 = vector.broadcast %13 : vector<32x1xf32> to vector<32x64xf32>
    %16 = vector.broadcast %14 : vector<1x64xf32> to vector<32x64xf32>
    %17 = arith.mulf %15, %16 : vector<32x64xf32>
    %18 = arith.addf %12, %17 : vector<32x64xf32>
    %19 = vector.extract_strided_slice %4 {offsets = [0, 2], sizes = [32, 1], strides = [1, 1]} : vector<32x3xf32> to vector<32x1xf32>
    %c2 = arith.constant 2 : index
    %c0_8 = arith.constant 0 : index
    %20 = vector.load %arg3[%c2, %c0_8] : memref<3x64xf32, #tpu.memory_space<vmem>>, vector<1x64xf32>
    %21 = vector.broadcast %19 : vector<32x1xf32> to vector<32x64xf32>
    %22 = vector.broadcast %20 : vector<1x64xf32> to vector<32x64xf32>
    %23 = arith.mulf %21, %22 : vector<32x64xf32>
    %24 = arith.addf %18, %23 : vector<32x64xf32>
    %cst = arith.constant 0.000000e+00 : f32
    %25 = vector.broadcast %cst : f32 to vector<32x64xf32>
    %26 = arith.maximumf %24, %25 : vector<32x64xf32>
    %27 = arith.truncf %26 : vector<32x64xf32> to vector<32x64xbf16>
    %c0_9 = arith.constant 0 : index
    %c0_10 = arith.constant 0 : index
    %28 = vector.load %arg5[%c0_9, %c0_10] : memref<64x128xbf16, #tpu.memory_space<vmem>>, vector<64x128xbf16>
    %cst_11 = arith.constant dense<0.000000e+00> : vector<32x128xf32>
    %29 = tpu.matmul %27, %28, %cst_11 {dimension_numbers = #tpu.dot_dimension_numbers<[1], [0], [0], [1], [0, 0, 1, 1], [], []>} : vector<32x64xbf16>, vector<64x128xbf16>, vector<32x128xf32> -> vector<32x128xf32>
    %c0_12 = arith.constant 0 : index
    %c0_13 = arith.constant 0 : index
    %30 = vector.load %arg6[%c0_12, %c0_13] : memref<1x128xf32, #tpu.memory_space<vmem>>, vector<1x128xf32>
    %31 = vector.broadcast %30 : vector<1x128xf32> to vector<32x128xf32>
    %32 = arith.addf %29, %31 : vector<32x128xf32>
    %cst_14 = arith.constant 0.000000e+00 : f32
    %33 = vector.broadcast %cst_14 : f32 to vector<32x128xf32>
    %34 = arith.maximumf %32, %33 : vector<32x128xf32>
    %35 = arith.truncf %34 : vector<32x128xf32> to vector<32x128xbf16>
    %c0_15 = arith.constant 0 : index
    %c0_16 = arith.constant 0 : index
    %36 = vector.load %arg7[%c0_15, %c0_16] : memref<128x1024xbf16, #tpu.memory_space<vmem>>, vector<128x256xbf16>
    %cst_17 = arith.constant dense<0.000000e+00> : vector<32x256xf32>
    %37 = tpu.matmul %35, %36, %cst_17 {dimension_numbers = #tpu.dot_dimension_numbers<[1], [0], [0], [1], [0, 0, 1, 1], [], []>} : vector<32x128xbf16>, vector<128x256xbf16>, vector<32x256xf32> -> vector<32x256xf32>
    %c0_18 = arith.constant 0 : index
    %c0_19 = arith.constant 0 : index
    %38 = vector.load %arg8[%c0_18, %c0_19] : memref<1x1024xf32, #tpu.memory_space<vmem>>, vector<1x256xf32>
    %39 = vector.broadcast %38 : vector<1x256xf32> to vector<32x256xf32>
    %40 = arith.addf %37, %39 : vector<32x256xf32>
    %cst_20 = arith.constant 0.000000e+00 : f32
    %41 = vector.broadcast %cst_20 : f32 to vector<32x256xf32>
    %42 = arith.maximumf %40, %41 : vector<32x256xf32>
    %43 = vector.shape_cast %42 : vector<32x256xf32> to vector<2x16x256xf32>
    %cst_21 = arith.constant dense<0xFF800000> : vector<2x256xf32>
    %44 = vector.multi_reduction <maximumf>, %43, %cst_21 [1] : vector<2x16x256xf32> to vector<2x256xf32>
    %c0_22 = arith.constant 0 : index
    %c0_23 = arith.constant 0 : index
    %45 = vector.load %arg16[%c0_22, %c0_23] : memref<2x1024xf32, #tpu.memory_space<vmem>>, vector<2x256xf32>
    %46 = arith.maximumf %45, %44 : vector<2x256xf32>
    %c0_24 = arith.constant 0 : index
    %c0_25 = arith.constant 0 : index
    %47 = vector.load %arg16[%c0_24, %c0_25] : memref<2x1024xf32, #tpu.memory_space<vmem>>, vector<2x256xf32>
    tpu.vector_store %arg16[%c0_24, %c0_25], %46 {strides = array<i32>} : memref<2x1024xf32, #tpu.memory_space<vmem>>, vector<2x256xf32>,
    %c0_26 = arith.constant 0 : index
    %c256 = arith.constant 256 : index
    %48 = vector.load %arg7[%c0_26, %c256] : memref<128x1024xbf16, #tpu.memory_space<vmem>>, vector<128x256xbf16>
    %cst_27 = arith.constant dense<0.000000e+00> : vector<32x256xf32>
    %49 = tpu.matmul %35, %48, %cst_27 {dimension_numbers = #tpu.dot_dimension_numbers<[1], [0], [0], [1], [0, 0, 1, 1], [], []>} : vector<32x128xbf16>, vector<128x256xbf16>, vector<32x256xf32> -> vector<32x256xf32>
    %c0_28 = arith.constant 0 : index
    %c256_29 = arith.constant 256 : index
    %50 = vector.load %arg8[%c0_28, %c256_29] : memref<1x1024xf32, #tpu.memory_space<vmem>>, vector<1x256xf32>
    %51 = vector.broadcast %50 : vector<1x256xf32> to vector<32x256xf32>
    %52 = arith.addf %49, %51 : vector<32x256xf32>
    %cst_30 = arith.constant 0.000000e+00 : f32
    %53 = vector.broadcast %cst_30 : f32 to vector<32x256xf32>
    %54 = arith.maximumf %52, %53 : vector<32x256xf32>
    %55 = vector.shape_cast %54 : vector<32x256xf32> to vector<2x16x256xf32>
    %cst_31 = arith.constant dense<0xFF800000> : vector<2x256xf32>
    %56 = vector.multi_reduction <maximumf>, %55, %cst_31 [1] : vector<2x16x256xf32> to vector<2x256xf32>
    %c0_32 = arith.constant 0 : index
    %c256_33 = arith.constant 256 : index
    %57 = vector.load %arg16[%c0_32, %c256_33] : memref<2x1024xf32, #tpu.memory_space<vmem>>, vector<2x256xf32>
    %58 = arith.maximumf %57, %56 : vector<2x256xf32>
    %c0_34 = arith.constant 0 : index
    %c256_35 = arith.constant 256 : index
    %59 = vector.load %arg16[%c0_34, %c256_35] : memref<2x1024xf32, #tpu.memory_space<vmem>>, vector<2x256xf32>
    tpu.vector_store %arg16[%c0_34, %c256_35], %58 {strides = array<i32>} : memref<2x1024xf32, #tpu.memory_space<vmem>>, vector<2x256xf32>,
    %c0_36 = arith.constant 0 : index
    %c512 = arith.constant 512 : index
    %60 = vector.load %arg7[%c0_36, %c512] : memref<128x1024xbf16, #tpu.memory_space<vmem>>, vector<128x256xbf16>
    %cst_37 = arith.constant dense<0.000000e+00> : vector<32x256xf32>
    %61 = tpu.matmul %35, %60, %cst_37 {dimension_numbers = #tpu.dot_dimension_numbers<[1], [0], [0], [1], [0, 0, 1, 1], [], []>} : vector<32x128xbf16>, vector<128x256xbf16>, vector<32x256xf32> -> vector<32x256xf32>
    %c0_38 = arith.constant 0 : index
    %c512_39 = arith.constant 512 : index
    %62 = vector.load %arg8[%c0_38, %c512_39] : memref<1x1024xf32, #tpu.memory_space<vmem>>, vector<1x256xf32>
    %63 = vector.broadcast %62 : vector<1x256xf32> to vector<32x256xf32>
    %64 = arith.addf %61, %63 : vector<32x256xf32>
    %cst_40 = arith.constant 0.000000e+00 : f32
    %65 = vector.broadcast %cst_40 : f32 to vector<32x256xf32>
    %66 = arith.maximumf %64, %65 : vector<32x256xf32>
    %67 = vector.shape_cast %66 : vector<32x256xf32> to vector<2x16x256xf32>
    %cst_41 = arith.constant dense<0xFF800000> : vector<2x256xf32>
    %68 = vector.multi_reduction <maximumf>, %67, %cst_41 [1] : vector<2x16x256xf32> to vector<2x256xf32>
    %c0_42 = arith.constant 0 : index
    %c512_43 = arith.constant 512 : index
    %69 = vector.load %arg16[%c0_42, %c512_43] : memref<2x1024xf32, #tpu.memory_space<vmem>>, vector<2x256xf32>
    %70 = arith.maximumf %69, %68 : vector<2x256xf32>
    %c0_44 = arith.constant 0 : index
    %c512_45 = arith.constant 512 : index
    %71 = vector.load %arg16[%c0_44, %c512_45] : memref<2x1024xf32, #tpu.memory_space<vmem>>, vector<2x256xf32>
    tpu.vector_store %arg16[%c0_44, %c512_45], %70 {strides = array<i32>} : memref<2x1024xf32, #tpu.memory_space<vmem>>, vector<2x256xf32>,
    %c0_46 = arith.constant 0 : index
    %c768 = arith.constant 768 : index
    %72 = vector.load %arg7[%c0_46, %c768] : memref<128x1024xbf16, #tpu.memory_space<vmem>>, vector<128x256xbf16>
    %cst_47 = arith.constant dense<0.000000e+00> : vector<32x256xf32>
    %73 = tpu.matmul %35, %72, %cst_47 {dimension_numbers = #tpu.dot_dimension_numbers<[1], [0], [0], [1], [0, 0, 1, 1], [], []>} : vector<32x128xbf16>, vector<128x256xbf16>, vector<32x256xf32> -> vector<32x256xf32>
    %c0_48 = arith.constant 0 : index
    %c768_49 = arith.constant 768 : index
    %74 = vector.load %arg8[%c0_48, %c768_49] : memref<1x1024xf32, #tpu.memory_space<vmem>>, vector<1x256xf32>
    %75 = vector.broadcast %74 : vector<1x256xf32> to vector<32x256xf32>
    %76 = arith.addf %73, %75 : vector<32x256xf32>
    %cst_50 = arith.constant 0.000000e+00 : f32
    %77 = vector.broadcast %cst_50 : f32 to vector<32x256xf32>
    %78 = arith.maximumf %76, %77 : vector<32x256xf32>
    %79 = vector.shape_cast %78 : vector<32x256xf32> to vector<2x16x256xf32>
    %cst_51 = arith.constant dense<0xFF800000> : vector<2x256xf32>
    %80 = vector.multi_reduction <maximumf>, %79, %cst_51 [1] : vector<2x16x256xf32> to vector<2x256xf32>
    %c0_52 = arith.constant 0 : index
    %c768_53 = arith.constant 768 : index
    %81 = vector.load %arg16[%c0_52, %c768_53] : memref<2x1024xf32, #tpu.memory_space<vmem>>, vector<2x256xf32>
    %82 = arith.maximumf %81, %80 : vector<2x256xf32>
    %c0_54 = arith.constant 0 : index
    %c768_55 = arith.constant 768 : index
    %83 = vector.load %arg16[%c0_54, %c768_55] : memref<2x1024xf32, #tpu.memory_space<vmem>>, vector<2x256xf32>
    tpu.vector_store %arg16[%c0_54, %c768_55], %82 {strides = array<i32>} : memref<2x1024xf32, #tpu.memory_space<vmem>>, vector<2x256xf32>,
    %c0_i32_56 = arith.constant 0 : i32
    %84 = arith.cmpi eq, %arg1, %c0_i32_56 : i32
    %85 = arith.extui %84 : i1 to i32
    %c0_i32_57 = arith.constant 0 : i32
    %86 = arith.cmpi ne, %85, %c0_i32_57 : i32
    scf.if %86 {
      %c0_58 = arith.constant 0 : index
      %c0_59 = arith.constant 0 : index
      %87 = vector.load %arg16[%c0_58, %c0_59] : memref<2x1024xf32, #tpu.memory_space<vmem>>, vector<2x1024xf32>
      %c0_60 = arith.constant 0 : index
      %c0_61 = arith.constant 0 : index
      %88 = vector.load %arg9[%c0_60, %c0_61] : memref<1024x512xf32, #tpu.memory_space<vmem>>, vector<1024x512xf32>
      %cst_62 = arith.constant dense<0.000000e+00> : vector<2x512xf32>
      %89 = tpu.matmul %87, %88, %cst_62 {dimension_numbers = #tpu.dot_dimension_numbers<[1], [0], [0], [1], [0, 0, 1, 1], [], []>} : vector<2x1024xf32>, vector<1024x512xf32>, vector<2x512xf32> -> vector<2x512xf32>
      %c0_63 = arith.constant 0 : index
      %c0_64 = arith.constant 0 : index
      %90 = vector.load %arg10[%c0_63, %c0_64] : memref<1x512xf32, #tpu.memory_space<vmem>>, vector<1x512xf32>
      %91 = vector.broadcast %90 : vector<1x512xf32> to vector<2x512xf32>
      %92 = arith.addf %89, %91 : vector<2x512xf32>
      %cst_65 = arith.constant 0.000000e+00 : f32
      %93 = vector.broadcast %cst_65 : f32 to vector<2x512xf32>
      %94 = arith.maximumf %92, %93 : vector<2x512xf32>
      %c0_66 = arith.constant 0 : index
      %c0_67 = arith.constant 0 : index
      %95 = vector.load %arg11[%c0_66, %c0_67] : memref<512x256xf32, #tpu.memory_space<vmem>>, vector<512x256xf32>
      %cst_68 = arith.constant dense<0.000000e+00> : vector<2x256xf32>
      %96 = tpu.matmul %94, %95, %cst_68 {dimension_numbers = #tpu.dot_dimension_numbers<[1], [0], [0], [1], [0, 0, 1, 1], [], []>} : vector<2x512xf32>, vector<512x256xf32>, vector<2x256xf32> -> vector<2x256xf32>
      %c0_69 = arith.constant 0 : index
      %c0_70 = arith.constant 0 : index
      %97 = vector.load %arg12[%c0_69, %c0_70] : memref<1x256xf32, #tpu.memory_space<vmem>>, vector<1x256xf32>
      %98 = vector.broadcast %97 : vector<1x256xf32> to vector<2x256xf32>
      %99 = arith.addf %96, %98 : vector<2x256xf32>
      %cst_71 = arith.constant 0.000000e+00 : f32
      %100 = vector.broadcast %cst_71 : f32 to vector<2x256xf32>
      %101 = arith.maximumf %99, %100 : vector<2x256xf32>
      %c0_72 = arith.constant 0 : index
      %c0_73 = arith.constant 0 : index
      %102 = vector.load %arg13[%c0_72, %c0_73] : memref<256x128xf32, #tpu.memory_space<vmem>>, vector<256x128xf32>
      %cst_74 = arith.constant dense<0.000000e+00> : vector<2x128xf32>
      %103 = tpu.matmul %101, %102, %cst_74 {dimension_numbers = #tpu.dot_dimension_numbers<[1], [0], [0], [1], [0, 0, 1, 1], [], []>} : vector<2x256xf32>, vector<256x128xf32>, vector<2x128xf32> -> vector<2x128xf32>
      %c0_75 = arith.constant 0 : index
      %c0_76 = arith.constant 0 : index
      %104 = vector.load %arg14[%c0_75, %c0_76] : memref<1x128xf32, #tpu.memory_space<vmem>>, vector<1x128xf32>
      %105 = vector.broadcast %104 : vector<1x128xf32> to vector<2x128xf32>
      %106 = arith.addf %103, %105 : vector<2x128xf32>
      %c0_77 = arith.constant 0 : index
      %c0_78 = arith.constant 0 : index
      %107 = vector.load %arg15[%c0_77, %c0_78] : memref<2x128xf32, #tpu.memory_space<vmem>>, vector<2x128xf32>
      tpu.vector_store %arg15[%c0_77, %c0_78], %106 {strides = array<i32>} : memref<2x128xf32, #tpu.memory_space<vmem>>, vector<2x128xf32>,
    } else {
    }
    return
  }
  func.func @transform_0(%arg0: i32, %arg1: i32) -> (i32, i32, i32) {
    %c0_i32 = arith.constant 0 : i32
    %c0_i32_0 = arith.constant 0 : i32
    return %arg0, %arg1, %c0_i32 : i32, i32, i32
  }
  func.func @transform_1(%arg0: i32, %arg1: i32) -> (i32, i32) {
    %c0_i32 = arith.constant 0 : i32
    %c0_i32_0 = arith.constant 0 : i32
    %c0_i32_1 = arith.constant 0 : i32
    return %c0_i32, %c0_i32_0 : i32, i32
  }
  func.func @transform_2(%arg0: i32, %arg1: i32) -> (i32, i32) {
    %c0_i32 = arith.constant 0 : i32
    %c0_i32_0 = arith.constant 0 : i32
    %c0_i32_1 = arith.constant 0 : i32
    return %c0_i32, %c0_i32_0 : i32, i32
  }
  func.func @transform_3(%arg0: i32, %arg1: i32) -> (i32, i32) {
    %c0_i32 = arith.constant 0 : i32
    %c0_i32_0 = arith.constant 0 : i32
    %c0_i32_1 = arith.constant 0 : i32
    return %c0_i32, %c0_i32_0 : i32, i32
  }
  func.func @transform_4(%arg0: i32, %arg1: i32) -> (i32, i32) {
    %c0_i32 = arith.constant 0 : i32
    %c0_i32_0 = arith.constant 0 : i32
    %c0_i32_1 = arith.constant 0 : i32
    return %c0_i32, %c0_i32_0 : i32, i32
  }
  func.func @transform_5(%arg0: i32, %arg1: i32) -> (i32, i32) {
    %c0_i32 = arith.constant 0 : i32
    %c0_i32_0 = arith.constant 0 : i32
    %c0_i32_1 = arith.constant 0 : i32
    return %c0_i32, %c0_i32_0 : i32, i32
  }
  func.func @transform_6(%arg0: i32, %arg1: i32) -> (i32, i32) {
    %c0_i32 = arith.constant 0 : i32
    %c0_i32_0 = arith.constant 0 : i32
    %c0_i32_1 = arith.constant 0 : i32
    return %c0_i32, %c0_i32_0 : i32, i32
  }
  func.func @transform_7(%arg0: i32, %arg1: i32) -> (i32, i32) {
    %c0_i32 = arith.constant 0 : i32
    %c0_i32_0 = arith.constant 0 : i32
    %c0_i32_1 = arith.constant 0 : i32
    return %c0_i32, %c0_i32_0 : i32, i32
  }
  func.func @transform_8(%arg0: i32, %arg1: i32) -> (i32, i32) {
    %c0_i32 = arith.constant 0 : i32
    %c0_i32_0 = arith.constant 0 : i32
    %c0_i32_1 = arith.constant 0 : i32
    return %c0_i32, %c0_i32_0 : i32, i32
  }
  func.func @transform_9(%arg0: i32, %arg1: i32) -> (i32, i32) {
    %c0_i32 = arith.constant 0 : i32
    %c0_i32_0 = arith.constant 0 : i32
    %c0_i32_1 = arith.constant 0 : i32
    return %c0_i32, %c0_i32_0 : i32, i32
  }
  func.func @transform_10(%arg0: i32, %arg1: i32) -> (i32, i32) {
    %c0_i32 = arith.constant 0 : i32
    %c0_i32_0 = arith.constant 0 : i32
    %c0_i32_1 = arith.constant 0 : i32
    return %c0_i32, %c0_i32_0 : i32, i32
  }
  func.func @transform_11(%arg0: i32, %arg1: i32) -> (i32, i32) {
    %c0_i32 = arith.constant 0 : i32
    %c0_i32_0 = arith.constant 0 : i32
    %c0_i32_1 = arith.constant 0 : i32
    return %c0_i32, %c0_i32_0 : i32, i32
  }
  func.func @transform_12(%arg0: i32, %arg1: i32) -> (i32, i32) {
    %c0_i32 = arith.constant 0 : i32
    %c0_i32_0 = arith.constant 0 : i32
    %c0_i32_1 = arith.constant 0 : i32
    return %c0_i32, %c0_i32_0 : i32, i32
  }
  func.func @transform_13(%arg0: i32, %arg1: i32) -> (i32, i32) {
    %c0_i32 = arith.constant 0 : i32
    %c0_i32_0 = arith.constant 0 : i32
    return %arg0, %c0_i32 : i32, i32
  }
}

</mosaic_0001>

<llo_original>
// kernel: tpu_custom_call.1
$region0: #{tpu_custom_call.1}
  #allocation0 [shape = 'u32[]', space=smem, size = 0x4, offset = 0x4, fixed_abs, tag = 'smem constant byte address 0x4 - core index']
  #allocation1 [shape = 'u32[144,128]{1,0:T(1,128)}', space=vmem, size = 0x12000, scoped, tag = 'internal scratch']
  #allocation2 [shape = 'f32[2,1024]{1,0:T(2,128)}', space=vmem, size = 0x2000, scoped, tag = 'scratch operand']
  %s0 = inlined_call_operand.vmem [shape: f32[2,16,3], index: 0, kind: input, shape index: {}]
  %s1 = inlined_call_operand.hbm [shape: f32[3,64], index: 1, kind: input, shape index: {}]
  %s2 = inlined_call_operand.hbm [shape: f32[1,64], index: 2, kind: input, shape index: {}]
  %s3 = inlined_call_operand.hbm [shape: bf16[64,128], index: 3, kind: input, shape index: {}]
  %s4 = inlined_call_operand.hbm [shape: f32[1,128], index: 4, kind: input, shape index: {}]
  %s5 = inlined_call_operand.hbm [shape: bf16[128,1024], index: 5, kind: input, shape index: {}]
  %s6 = inlined_call_operand.hbm [shape: f32[1,1024], index: 6, kind: input, shape index: {}]
  %s7 = inlined_call_operand.hbm [shape: f32[1024,512], index: 7, kind: input, shape index: {}]
  %s8 = inlined_call_operand.hbm [shape: f32[1,512], index: 8, kind: input, shape index: {}]
  %s9 = inlined_call_operand.hbm [shape: f32[512,256], index: 9, kind: input, shape index: {}]
  %s10 = inlined_call_operand.hbm [shape: f32[1,256], index: 10, kind: input, shape index: {}]
  %s11 = inlined_call_operand.hbm [shape: f32[256,128], index: 11, kind: input, shape index: {}]
  %s12 = inlined_call_operand.hbm [shape: f32[1,128], index: 12, kind: input, shape index: {}]
  %s13 = inlined_call_operand.hbm [shape: f32[2,128], index: 13, kind: output, shape index: {}]
  %s14 = sld [smem:[#allocation0]]
  $region118: #{tpu_custom_call.1} parent=0
    _
  %s16 = ssub.s32 1, %s14
  %s17 = scalar_select 0, %s16, %s14
  $region1: #{tpu_custom_call.1} parent=0
    #allocation3 [shape = 'u8[2048]{0}', space=vmem, size = 0x800, scoped, tag = 'input window, operand 1, single buffered']
    #allocation4 [shape = 's32[1]{0}', space=sflag, size = 0x4, scoped, tag = 'scoped memory for tpu_custom_call.1']
    #allocation5 [shape = 's32[1]{0}', space=sflag, size = 0x4, scoped, tag = 'scoped memory for tpu_custom_call.1']
    #allocation6 [shape = 'u8[512]{0}', space=vmem, size = 0x400, scoped, tag = 'input window, operand 2, single buffered']
    #allocation7 [shape = 's32[1]{0}', space=sflag, size = 0x4, scoped, tag = 'scoped memory for tpu_custom_call.1']
    #allocation8 [shape = 'u8[16384]{0}', space=vmem, size = 0x4000, scoped, tag = 'input window, operand 3, single buffered']
    #allocation9 [shape = 'u8[512]{0}', space=vmem, size = 0x400, scoped, tag = 'input window, operand 4, single buffered']
    #allocation10 [shape = 's32[1]{0}', space=sflag, size = 0x4, scoped, tag = 'scoped memory for tpu_custom_call.1']
    #allocation11 [shape = 'u8[262144]{0}', space=vmem, size = 0x40000, scoped, tag = 'input window, operand 5, single buffered']
    #allocation12 [shape = 'u8[4096]{0}', space=vmem, size = 0x1000, scoped, tag = 'input window, operand 6, single buffered']
    #allocation13 [shape = 's32[1]{0}', space=sflag, size = 0x4, scoped, tag = 'scoped memory for tpu_custom_call.1']
    #allocation14 [shape = 'u8[2097152]{0}', space=vmem, size = 0x200000, scoped, tag = 'input window, operand 7, single buffered']
    #allocation15 [shape = 'u8[2048]{0}', space=vmem, size = 0x800, scoped, tag = 'input window, operand 8, single buffered']
    #allocation16 [shape = 's32[1]{0}', space=sflag, size = 0x4, scoped, tag = 'scoped memory for tpu_custom_call.1']
    #allocation17 [shape = 'u8[524288]{0}', space=vmem, size = 0x80000, scoped, tag = 'input window, operand 9, single buffered']
    #allocation18 [shape = 'u8[1024]{0}', space=vmem, size = 0x400, scoped, tag = 'input window, operand 10, single buffered']
    #allocation19 [shape = 's32[1]{0}', space=sflag, size = 0x4, scoped, tag = 'scoped memory for tpu_custom_call.1']
    #allocation20 [shape = 'u8[131072]{0}', space=vmem, size = 0x20000, scoped, tag = 'input window, operand 11, single buffered']
    #allocation21 [shape = 'u8[512]{0}', space=vmem, size = 0x400, scoped, tag = 'input window, operand 12, single buffered']
    #allocation22 [shape = 's32[1]{0}', space=sflag, size = 0x4, scoped, tag = 'scoped memory for tpu_custom_call.1']
    #allocation23 [shape = 'u8[1024]{0}', space=vmem, size = 0x400, scoped, tag = 'output window, operand 0, single buffered']
    %18 = vsyncpa [#allocation4], 0
    %19 = vsyncpa [#allocation7], 0
    %20 = vsyncpa [#allocation10], 0
    %21 = vsyncpa [#allocation13], 0
    %22 = vsyncpa [#allocation16], 0
    %23 = vsyncpa [#allocation19], 0
    %24 = vsyncpa [#allocation22], 0
    %25 = vsyncpa [#allocation5], 0
    // Predicated region
    $region2: #{tpu_custom_call.1} parent=1 // pred_check
      _
    $region3: #{tpu_custom_call.1} parent=1 // pred_check_branch
      %27 = sbr.rel (0) target = $region5
    $region4: #{tpu_custom_call.1} parent=1 // pred_region
      _
    $region5: #{tpu_custom_call.1} parent=1 // pred_fallthru
      _
    // Predicated region
    $region6: #{tpu_custom_call.1} parent=1 // pred_check
      _
    $region7: #{tpu_custom_call.1} parent=1 // pred_check_branch
      %29 = sbr.rel (0) target = $region9
    $region8: #{tpu_custom_call.1} parent=1 // pred_region
      %s31 = ssub.s32 64, 64
      %32 = vsyncadd [#allocation4], %s31
      %s34 = sshll.u32 [#allocation3], 4
      %s35 = int_to_ptr.vmem [resolvable:$true] %s34
      %37 = dma.hbm_to_vmem [thread:$0]  %s1, 64, %s35, [#allocation4]
    $region9: #{tpu_custom_call.1} parent=1 // pred_fallthru
      _
    // Predicated region
    $region10: #{tpu_custom_call.1} parent=1 // pred_check
      _
    $region11: #{tpu_custom_call.1} parent=1 // pred_check_branch
      %39 = sbr.rel (0) target = $region13
    $region12: #{tpu_custom_call.1} parent=1 // pred_region
      %s41 = ssub.s32 16, 16
      %42 = vsyncadd [#allocation7], %s41
      %s44 = sshll.u32 [#allocation6], 4
      %s45 = int_to_ptr.vmem [resolvable:$true] %s44
      %47 = dma.hbm_to_vmem [thread:$0]  %s2, 16, %s45, [#allocation7]
    $region13: #{tpu_custom_call.1} parent=1 // pred_fallthru
      _
    // Predicated region
    $region14: #{tpu_custom_call.1} parent=1 // pred_check
      _
    $region15: #{tpu_custom_call.1} parent=1 // pred_check_branch
      %49 = sbr.rel (0) target = $region17
    $region16: #{tpu_custom_call.1} parent=1 // pred_region
      %s51 = ssub.s32 512, 512
      %52 = vsyncadd [#allocation7], %s51
      %s53 = sshll.u32 [#allocation8], 4
      %s54 = int_to_ptr.vmem [resolvable:$true] %s53
      %59 = dma.hbm_to_vmem [thread:$0]  %s3, 512, %s54, [#allocation7], 64, 64, 4
    $region17: #{tpu_custom_call.1} parent=1 // pred_fallthru
      _
    // Predicated region
    $region18: #{tpu_custom_call.1} parent=1 // pred_check
      _
    $region19: #{tpu_custom_call.1} parent=1 // pred_check_branch
      %61 = sbr.rel (0) target = $region21
    $region20: #{tpu_custom_call.1} parent=1 // pred_region
      %s63 = ssub.s32 16, 16
      %64 = vsyncadd [#allocation10], %s63
      %s66 = sshll.u32 [#allocation9], 4
      %s67 = int_to_ptr.vmem [resolvable:$true] %s66
      %69 = dma.hbm_to_vmem [thread:$0]  %s4, 16, %s67, [#allocation10]
    $region21: #{tpu_custom_call.1} parent=1 // pred_fallthru
      _
    // Predicated region
    $region22: #{tpu_custom_call.1} parent=1 // pred_check
      _
    $region23: #{tpu_custom_call.1} parent=1 // pred_check_branch
      %71 = sbr.rel (0) target = $region25
    $region24: #{tpu_custom_call.1} parent=1 // pred_region
      %s73 = ssub.s32 8192, 8192
      %74 = vsyncadd [#allocation10], %s73
      %s75 = sshll.u32 [#allocation11], 4
      %s76 = int_to_ptr.vmem [resolvable:$true] %s75
      %81 = dma.hbm_to_vmem [thread:$0]  %s5, 8192, %s76, [#allocation10], 512, 512, 32
    $region25: #{tpu_custom_call.1} parent=1 // pred_fallthru
      _
    // Predicated region
    $region26: #{tpu_custom_call.1} parent=1 // pred_check
      _
    $region27: #{tpu_custom_call.1} parent=1 // pred_check_branch
      %83 = sbr.rel (0) target = $region29
    $region28: #{tpu_custom_call.1} parent=1 // pred_region
      %s85 = ssub.s32 128, 128
      %86 = vsyncadd [#allocation13], %s85
      %s88 = sshll.u32 [#allocation12], 4
      %s89 = int_to_ptr.vmem [resolvable:$true] %s88
      %91 = dma.hbm_to_vmem [thread:$0]  %s6, 128, %s89, [#allocation13]
    $region29: #{tpu_custom_call.1} parent=1 // pred_fallthru
      _
    // Predicated region
    $region30: #{tpu_custom_call.1} parent=1 // pred_check
      _
    $region31: #{tpu_custom_call.1} parent=1 // pred_check_branch
      %93 = sbr.rel (0) target = $region33
    $region32: #{tpu_custom_call.1} parent=1 // pred_region
      %s95 = ssub.s32 65536, 65536
      %96 = vsyncadd [#allocation13], %s95
      %s97 = sshll.u32 [#allocation14], 4
      %s98 = int_to_ptr.vmem [resolvable:$true] %s97
      %103 = dma.hbm_to_vmem [thread:$0]  %s7, 65536, %s98, [#allocation13], 512, 512, 32
    $region33: #{tpu_custom_call.1} parent=1 // pred_fallthru
      _
    // Predicated region
    $region34: #{tpu_custom_call.1} parent=1 // pred_check
      _
    $region35: #{tpu_custom_call.1} parent=1 // pred_check_branch
      %105 = sbr.rel (0) target = $region37
    $region36: #{tpu_custom_call.1} parent=1 // pred_region
      %s107 = ssub.s32 64, 64
      %108 = vsyncadd [#allocation16], %s107
      %s110 = sshll.u32 [#allocation15], 4
      %s111 = int_to_ptr.vmem [resolvable:$true] %s110
      %113 = dma.hbm_to_vmem [thread:$0]  %s8, 64, %s111, [#allocation16]
    $region37: #{tpu_custom_call.1} parent=1 // pred_fallthru
      _
    // Predicated region
    $region38: #{tpu_custom_call.1} parent=1 // pred_check
      _
    $region39: #{tpu_custom_call.1} parent=1 // pred_check_branch
      %115 = sbr.rel (0) target = $region41
    $region40: #{tpu_custom_call.1} parent=1 // pred_region
      %s117 = ssub.s32 16384, 16384
      %118 = vsyncadd [#allocation16], %s117
      %s119 = sshll.u32 [#allocation17], 4
      %s120 = int_to_ptr.vmem [resolvable:$true] %s119
      %125 = dma.hbm_to_vmem [thread:$0]  %s9, 16384, %s120, [#allocation16], 256, 256, 16
    $region41: #{tpu_custom_call.1} parent=1 // pred_fallthru
      _
    // Predicated region
    $region42: #{tpu_custom_call.1} parent=1 // pred_check
      _
    $region43: #{tpu_custom_call.1} parent=1 // pred_check_branch
      %127 = sbr.rel (0) target = $region45
    $region44: #{tpu_custom_call.1} parent=1 // pred_region
      %s129 = ssub.s32 32, 32
      %130 = vsyncadd [#allocation19], %s129
      %s132 = sshll.u32 [#allocation18], 4
      %s133 = int_to_ptr.vmem [resolvable:$true] %s132
      %135 = dma.hbm_to_vmem [thread:$0]  %s10, 32, %s133, [#allocation19]
    $region45: #{tpu_custom_call.1} parent=1 // pred_fallthru
      _
    // Predicated region
    $region46: #{tpu_custom_call.1} parent=1 // pred_check
      _
    $region47: #{tpu_custom_call.1} parent=1 // pred_check_branch
      %137 = sbr.rel (0) target = $region49
    $region48: #{tpu_custom_call.1} parent=1 // pred_region
      %s139 = ssub.s32 4096, 4096
      %140 = vsyncadd [#allocation19], %s139
      %s141 = sshll.u32 [#allocation20], 4
      %s142 = int_to_ptr.vmem [resolvable:$true] %s141
      %147 = dma.hbm_to_vmem [thread:$0]  %s11, 4096, %s142, [#allocation19], 128, 128, 8
    $region49: #{tpu_custom_call.1} parent=1 // pred_fallthru
      _
    // Predicated region
    $region50: #{tpu_custom_call.1} parent=1 // pred_check
      _
    $region51: #{tpu_custom_call.1} parent=1 // pred_check_branch
      %149 = sbr.rel (0) target = $region53
    $region52: #{tpu_custom_call.1} parent=1 // pred_region
      %s151 = ssub.s32 16, 16
      %152 = vsyncadd [#allocation22], %s151
      %s154 = sshll.u32 [#allocation21], 4
      %s155 = int_to_ptr.vmem [resolvable:$true] %s154
      %157 = dma.hbm_to_vmem [thread:$0]  %s12, 16, %s155, [#allocation22]
    $region53: #{tpu_custom_call.1} parent=1 // pred_fallthru
      _
    // Predicated region
    $region54: #{tpu_custom_call.1} parent=1 // pred_check
      _
    $region55: #{tpu_custom_call.1} parent=1 // pred_check_branch
      %159 = sbr.rel (0) target = $region57
    $region56: #{tpu_custom_call.1} parent=1 // pred_region
      %160 = dma.done [#allocation4], 64
    $region57: #{tpu_custom_call.1} parent=1 // pred_fallthru
      _
    // Predicated region
    $region58: #{tpu_custom_call.1} parent=1 // pred_check
      _
    $region59: #{tpu_custom_call.1} parent=1 // pred_check_branch
      %162 = sbr.rel (0) target = $region61
    $region60: #{tpu_custom_call.1} parent=1 // pred_region
      %163 = dma.done [#allocation7], 16
    $region61: #{tpu_custom_call.1} parent=1 // pred_fallthru
      _
    // Predicated region
    $region62: #{tpu_custom_call.1} parent=1 // pred_check
      _
    $region63: #{tpu_custom_call.1} parent=1 // pred_check_branch
      %165 = sbr.rel (0) target = $region65
    $region64: #{tpu_custom_call.1} parent=1 // pred_region
      %166 = dma.done [#allocation7], 512
    $region65: #{tpu_custom_call.1} parent=1 // pred_fallthru
      _
    // Predicated region
    $region66: #{tpu_custom_call.1} parent=1 // pred_check
      _
    $region67: #{tpu_custom_call.1} parent=1 // pred_check_branch
      %168 = sbr.rel (0) target = $region69
    $region68: #{tpu_custom_call.1} parent=1 // pred_region
      %169 = dma.done [#allocation10], 16
    $region69: #{tpu_custom_call.1} parent=1 // pred_fallthru
      _
    // Predicated region
    $region70: #{tpu_custom_call.1} parent=1 // pred_check
      _
    $region71: #{tpu_custom_call.1} parent=1 // pred_check_branch
      %171 = sbr.rel (0) target = $region73
    $region72: #{tpu_custom_call.1} parent=1 // pred_region
      %172 = dma.done [#allocation10], 8192
    $region73: #{tpu_custom_call.1} parent=1 // pred_fallthru
      _
    // Predicated region
    $region74: #{tpu_custom_call.1} parent=1 // pred_check
      _
    $region75: #{tpu_custom_call.1} parent=1 // pred_check_branch
      %174 = sbr.rel (0) target = $region77
    $region76: #{tpu_custom_call.1} parent=1 // pred_region
      %175 = dma.done [#allocation13], 128
    $region77: #{tpu_custom_call.1} parent=1 // pred_fallthru
      _
    // Predicated region
    $region78: #{tpu_custom_call.1} parent=1 // pred_check
      _
    $region79: #{tpu_custom_call.1} parent=1 // pred_check_branch
      %177 = sbr.rel (0) target = $region81
    $region80: #{tpu_custom_call.1} parent=1 // pred_region
      %178 = dma.done [#allocation13], 65536
    $region81: #{tpu_custom_call.1} parent=1 // pred_fallthru
      _
    // Predicated region
    $region82: #{tpu_custom_call.1} parent=1 // pred_check
      _
    $region83: #{tpu_custom_call.1} parent=1 // pred_check_branch
      %180 = sbr.rel (0) target = $region85
    $region84: #{tpu_custom_call.1} parent=1 // pred_region
      %181 = dma.done [#allocation16], 64
    $region85: #{tpu_custom_call.1} parent=1 // pred_fallthru
      _
    // Predicated region
    $region86: #{tpu_custom_call.1} parent=1 // pred_check
      _
    $region87: #{tpu_custom_call.1} parent=1 // pred_check_branch
      %183 = sbr.rel (0) target = $region89
    $region88: #{tpu_custom_call.1} parent=1 // pred_region
      %184 = dma.done [#allocation16], 16384
    $region89: #{tpu_custom_call.1} parent=1 // pred_fallthru
      _
    // Predicated region
    $region90: #{tpu_custom_call.1} parent=1 // pred_check
      _
    $region91: #{tpu_custom_call.1} parent=1 // pred_check_branch
      %186 = sbr.rel (0) target = $region93
    $region92: #{tpu_custom_call.1} parent=1 // pred_region
      %187 = dma.done [#allocation19], 32
    $region93: #{tpu_custom_call.1} parent=1 // pred_fallthru
      _
    // Predicated region
    $region94: #{tpu_custom_call.1} parent=1 // pred_check
      _
    $region95: #{tpu_custom_call.1} parent=1 // pred_check_branch
      %189 = sbr.rel (0) target = $region97
    $region96: #{tpu_custom_call.1} parent=1 // pred_region
      %190 = dma.done [#allocation19], 4096
    $region97: #{tpu_custom_call.1} parent=1 // pred_fallthru
      _
    // Predicated region
    $region98: #{tpu_custom_call.1} parent=1 // pred_check
      _
    $region99: #{tpu_custom_call.1} parent=1 // pred_check_branch
      %192 = sbr.rel (0) target = $region101
    $region100: #{tpu_custom_call.1} parent=1 // pred_region
      %193 = dma.done [#allocation22], 16
    $region101: #{tpu_custom_call.1} parent=1 // pred_fallthru
      _
    %p195 = scmp.eq.s32.totalorder 0, 0
    // Predicated region
    $region102: #{tpu_custom_call.1} parent=1 // pred_check
      %p196 = pneg %p195
    $region103: #{tpu_custom_call.1} parent=1 // pred_check_branch
      %198 = sbr.rel (%p196) target = $region105
    $region104: #{tpu_custom_call.1} parent=1 // pred_region
      %199 = vst [vmem:[#allocation2] sm:$0xff] -inf
      %200 = vst [vmem:[#allocation2 + $0x8] sm:$0xff] -inf
    $region105: #{tpu_custom_call.1} parent=1 // pred_fallthru
      _
    %v201 = vld [vmem:[%s0] sm:$0xff]
    %v202 = vld [vmem:[%s0 + $0x8] sm:$0xff]
    %v203 = vld [vmem:[%s0 + $0x10] sm:$0xff]
    %v204 = vld [vmem:[%s0 + $0x18] sm:$0xff]
    %v205 = vld [vmem:[#allocation6] sm:$0x1]
    %v206 = vld [vmem:[#allocation3] sm:$0x1]
    %208 = vset.pattern.permute.xlu0 0
    %209 = vperm.xlu0 %208, %v201
    %v210 = vpop.permute.xlu0 %209
    %213 = vset.pattern.permute.xlu0 0
    %214 = vperm.xlu0 %213, %v202
    %v215 = vpop.permute.xlu0 %214
    %218 = vset.pattern.permute.xlu0 0
    %219 = vperm.xlu0 %218, %v203
    %v220 = vpop.permute.xlu0 %219
    %223 = vset.pattern.permute.xlu0 0
    %224 = vperm.xlu0 %223, %v204
    %v225 = vpop.permute.xlu0 %224
    %v227 = vlaneseq
    %v228 = vshrl.u32 %v227, 7
    %v229 = vsub.s32 0, %v228
    %v230 = vrot.slane %v206, %v229
    %v231 = vmul.f32 %v210, %v230
    %v232 = vmul.f32 %v215, %v230
    %v233 = vmul.f32 %v220, %v230
    %v234 = vmul.f32 %v225, %v230
    %v236 = vlaneseq
    %v237 = vshrl.u32 %v236, 7
    %v238 = vsub.s32 0, %v237
    %v239 = vrot.slane %v205, %v238
    %v241 = vadd.f32 %v239, %v231
    %v242 = vadd.f32 %v239, %v232
    %v243 = vadd.f32 %v239, %v233
    %v244 = vadd.f32 %v239, %v234
    %v245 = vld [vmem:[#allocation3 + $0x1] sm:$0x1]
    %246 = vset.pattern.permute.xlu0 1
    %247 = vperm.xlu0 %246, %v201
    %v248 = vpop.permute.xlu0 %247
    %250 = vset.pattern.permute.xlu0 1
    %251 = vperm.xlu0 %250, %v202
    %v252 = vpop.permute.xlu0 %251
    %254 = vset.pattern.permute.xlu0 1
    %255 = vperm.xlu0 %254, %v203
    %v256 = vpop.permute.xlu0 %255
    %258 = vset.pattern.permute.xlu0 1
    %259 = vperm.xlu0 %258, %v204
    %v260 = vpop.permute.xlu0 %259
    %v262 = vlaneseq
    %v263 = vshrl.u32 %v262, 7
    %v264 = vsub.s32 0, %v263
    %v265 = vrot.slane %v245, %v264
    %v266 = vmul.f32 %v248, %v265
    %v267 = vmul.f32 %v252, %v265
    %v268 = vmul.f32 %v256, %v265
    %v269 = vmul.f32 %v260, %v265
    %v270 = vadd.f32 %v241, %v266
    %v271 = vadd.f32 %v242, %v267
    %v272 = vadd.f32 %v243, %v268
    %v273 = vadd.f32 %v244, %v269
    %v274 = vld [vmem:[#allocation3 + $0x2] sm:$0x1]
    %275 = vset.pattern.permute.xlu0 2
    %276 = vperm.xlu0 %275, %v201
    %v277 = vpop.permute.xlu0 %276
    %279 = vset.pattern.permute.xlu0 2
    %280 = vperm.xlu0 %279, %v202
    %v281 = vpop.permute.xlu0 %280
    %283 = vset.pattern.permute.xlu0 2
    %284 = vperm.xlu0 %283, %v203
    %v285 = vpop.permute.xlu0 %284
    %287 = vset.pattern.permute.xlu0 2
    %288 = vperm.xlu0 %287, %v204
    %v289 = vpop.permute.xlu0 %288
    %v291 = vlaneseq
    %v292 = vshrl.u32 %v291, 7
    %v293 = vsub.s32 0, %v292
    %v294 = vrot.slane %v274, %v293
    %v295 = vmul.f32 %v277, %v294
    %v296 = vmul.f32 %v281, %v294
    %v297 = vmul.f32 %v285, %v294
    %v298 = vmul.f32 %v289, %v294
    %v299 = vadd.f32 %v270, %v295
    %v300 = vadd.f32 %v271, %v296
    %v301 = vadd.f32 %v272, %v297
    %v302 = vadd.f32 %v273, %v298
    %v303 = vmax.f32 %v299, 0.0
    %v304 = vmax.f32 %v300, 0.0
    %v305 = vmax.f32 %v301, 0.0
    %v306 = vmax.f32 %v302, 0.0
    %v307 = vpack.c.bf16 %v304, %v303
    %v308 = vpack.c.bf16 %v306, %v305
    %v309 = vld [vmem:[#allocation8] sm:$0xf]
    %v310 = vld [vmem:[#allocation8 + $0x4] sm:$0xf]
    %v311 = vld [vmem:[#allocation8 + $0x8] sm:$0xf]
    %v312 = vld [vmem:[#allocation8 + $0xc] sm:$0xf]
    %v313 = vld [vmem:[#allocation8 + $0x10] sm:$0xf]
    %v314 = vld [vmem:[#allocation8 + $0x14] sm:$0xf]
    %v315 = vld [vmem:[#allocation8 + $0x18] sm:$0xf]
    %v316 = vld [vmem:[#allocation8 + $0x1c] sm:$0xf]
    %v317 = vld [vmem:[#allocation9] sm:$0x1]
    %v319 = vlaneseq
    %v320 = vshrl.u32 %v319, 7
    %v321 = vsub.s32 0, %v320
    %v322 = vrot.slane %v317, %v321
    %v332 = vunpack.c.l.b16 %v309
    %v333 = vunpack.c.l.b16 %v310
    %v334 = vunpack.c.l.b16 %v311
    %v335 = vunpack.c.l.b16 %v312
    %v336 = vunpack.c.l.b16 %v313
    %v337 = vunpack.c.l.b16 %v314
    %v338 = vunpack.c.l.b16 %v315
    %v339 = vunpack.c.l.b16 %v316
    %v340 = vpack.c.b16 %v333, %v332
    %v341 = vpack.c.b16 %v335, %v334
    %v342 = vpack.c.b16 %v337, %v336
    %v343 = vpack.c.b16 %v339, %v338
    %vm348 = vcmask 523264
    %v350 = vsel %vm348, %v307, 0
    %v353 = vsel %vm348, %v308, 0
    %355 = vmatprep.subr.bf16.mxu0 0
    %356 = vmatpush1.bf16.msra.mxu0 %v340
    %357 = vmatprep.subr.bf16.mxu0 0
    %358 = vmatpush1.bf16.msra.mxu0 %v341
    %359 = vmatprep.subr.bf16.mxu0 0
    %360 = vmatpush1.bf16.msra.mxu0 %v342
    %361 = vmatprep.subr.bf16.mxu0 0
    %362 = vmatpush1.bf16.msra.mxu0 %v343
    %363 = vmatprep.subr.bf16.mxu0 0
    %364 = vmatpush1.bf16.msra.mxu0 0
    %365 = vmatprep.subr.bf16.mxu0 0
    %366 = vmatpush1.bf16.msra.mxu0 0
    %367 = vmatprep.subr.bf16.mxu0 0
    %368 = vmatpush1.bf16.msra.mxu0 0
    %369 = vmatprep.subr.bf16.mxu0 0
    %370 = vmatpush1.bf16.msra.mxu0 0
    %371 = vmatprep.subr.bf16.mxu0 0
    %372 = vmatpush1.bf16.msra.mxu0 0
    %373 = vmatprep.subr.bf16.mxu0 0
    %374 = vmatpush1.bf16.msra.mxu0 0
    %375 = vmatprep.subr.bf16.mxu0 0
    %376 = vmatpush1.bf16.msra.mxu0 0
    %377 = vmatprep.subr.bf16.mxu0 0
    %378 = vmatpush1.bf16.msra.mxu0 0
    %379 = vmatprep.subr.bf16.mxu0 0
    %380 = vmatpush1.bf16.msra.mxu0 0
    %381 = vmatprep.subr.bf16.mxu0 0
    %382 = vmatpush1.bf16.msra.mxu0 0
    %383 = vmatprep.subr.bf16.mxu0 0
    %384 = vmatpush1.bf16.msra.mxu0 0
    %385 = vmatprep.subr.bf16.mxu0 0
    %386 = vmatpush1.bf16.msra.mxu0 0
    %387 = vmatprep.mubr.bf16.mxu0 0
    %388 = vmatmul.mubr.bf16.gmra.mrb[0].mxu0 %v350
    %v389 = vpop.f32.mrb[0].mxu0
    %v390 = vadd.f32 %v322, %v389
    %v391 = vpop.f32.mrb[0].mxu0
    %v392 = vpop.f32.mrb[0].mxu0
    %v393 = vadd.f32 %v322, %v392
    %v394 = vpop.f32.mrb[0].mxu0
    %395 = vmatprep.mubr.bf16.mxu0 0
    %396 = vmatmul.mubr.bf16.gmra.mrb[0].mxu0 %v353
    %v397 = vpop.f32.mrb[0].mxu0
    %v398 = vadd.f32 %v322, %v397
    %v399 = vpop.f32.mrb[0].mxu0
    %v400 = vpop.f32.mrb[0].mxu0
    %v401 = vadd.f32 %v322, %v400
    %v402 = vpop.f32.mrb[0].mxu0
    %403 = vdwg.mxu0
    %v404 = vmax.f32 %v390, 0.0
    %v405 = vmax.f32 %v393, 0.0
    %v406 = vmax.f32 %v398, 0.0
    %v407 = vmax.f32 %v401, 0.0
    %v408 = vpack.c.bf16 %v405, %v404
    %v409 = vpack.c.bf16 %v407, %v406
    %v410 = vld [vmem:[#allocation11] sm:$0xff]
    %v411 = vld [vmem:[#allocation11 + $0x20] sm:$0xff]
    %v412 = vld [vmem:[#allocation11 + $0x40] sm:$0xff]
    %v413 = vld [vmem:[#allocation11 + $0x60] sm:$0xff]
    %v414 = vld [vmem:[#allocation11 + $0x80] sm:$0xff]
    %v415 = vld [vmem:[#allocation11 + $0xa0] sm:$0xff]
    %v416 = vld [vmem:[#allocation11 + $0xc0] sm:$0xff]
    %v417 = vld [vmem:[#allocation11 + $0xe0] sm:$0xff]
    %v418 = vld [vmem:[#allocation11 + $0x100] sm:$0xff]
    %v419 = vld [vmem:[#allocation11 + $0x120] sm:$0xff]
    %v420 = vld [vmem:[#allocation11 + $0x140] sm:$0xff]
    %v421 = vld [vmem:[#allocation11 + $0x160] sm:$0xff]
    %v422 = vld [vmem:[#allocation11 + $0x180] sm:$0xff]
    %v423 = vld [vmem:[#allocation11 + $0x1a0] sm:$0xff]
    %v424 = vld [vmem:[#allocation11 + $0x1c0] sm:$0xff]
    %v425 = vld [vmem:[#allocation11 + $0x1e0] sm:$0xff]
    %v426 = vld [vmem:[#allocation12] sm:$0x3]
    %v428 = vlaneseq
    %v429 = vshrl.u32 %v428, 7
    %v430 = vsub.s32 0, %v429
    %v431 = vrot.slane %v426, %v430
    %v432 = vlaneseq
    %v433 = vshrl.u32 %v432, 7
    %v434 = vsub.s32 1, %v433
    %v435 = vrot.slane %v426, %v434
    %v454 = vunpack.c.l.b16 %v410
    %v455 = vunpack.c.h.b16 %v410
    %v456 = vunpack.c.l.b16 %v411
    %v457 = vunpack.c.h.b16 %v411
    %v458 = vunpack.c.l.b16 %v412
    %v459 = vunpack.c.h.b16 %v412
    %v460 = vunpack.c.l.b16 %v413
    %v461 = vunpack.c.h.b16 %v413
    %v462 = vunpack.c.l.b16 %v414
    %v463 = vunpack.c.h.b16 %v414
    %v464 = vunpack.c.l.b16 %v415
    %v465 = vunpack.c.h.b16 %v415
    %v466 = vunpack.c.l.b16 %v416
    %v467 = vunpack.c.h.b16 %v416
    %v468 = vunpack.c.l.b16 %v417
    %v469 = vunpack.c.h.b16 %v417
    %v470 = vunpack.c.l.b16 %v418
    %v471 = vunpack.c.h.b16 %v418
    %v472 = vunpack.c.l.b16 %v419
    %v473 = vunpack.c.h.b16 %v419
    %v474 = vunpack.c.l.b16 %v420
    %v475 = vunpack.c.h.b16 %v420
    %v476 = vunpack.c.l.b16 %v421
    %v477 = vunpack.c.h.b16 %v421
    %v478 = vunpack.c.l.b16 %v422
    %v479 = vunpack.c.h.b16 %v422
    %v480 = vunpack.c.l.b16 %v423
    %v481 = vunpack.c.h.b16 %v423
    %v482 = vunpack.c.l.b16 %v424
    %v483 = vunpack.c.h.b16 %v424
    %v484 = vunpack.c.l.b16 %v425
    %v485 = vunpack.c.h.b16 %v425
    %v486 = vpack.c.b16 %v456, %v454
    %v487 = vpack.c.b16 %v457, %v455
    %v488 = vpack.c.b16 %v460, %v458
    %v489 = vpack.c.b16 %v461, %v459
    %v490 = vpack.c.b16 %v464, %v462
    %v491 = vpack.c.b16 %v465, %v463
    %v492 = vpack.c.b16 %v468, %v466
    %v493 = vpack.c.b16 %v469, %v467
    %v494 = vpack.c.b16 %v472, %v470
    %v495 = vpack.c.b16 %v473, %v471
    %v496 = vpack.c.b16 %v476, %v474
    %v497 = vpack.c.b16 %v477, %v475
    %v498 = vpack.c.b16 %v480, %v478
    %v499 = vpack.c.b16 %v481, %v479
    %v500 = vpack.c.b16 %v484, %v482
    %v501 = vpack.c.b16 %v485, %v483
    %518 = vmatprep.subr.bf16.mxu0 %v487
    %519 = vmatpush1.bf16.msra.mxu0 %v486
    %520 = vmatprep.subr.bf16.mxu0 %v489
    %521 = vmatpush1.bf16.msra.mxu0 %v488
    %522 = vmatprep.subr.bf16.mxu0 %v491
    %523 = vmatpush1.bf16.msra.mxu0 %v490
    %524 = vmatprep.subr.bf16.mxu0 %v493
    %525 = vmatpush1.bf16.msra.mxu0 %v492
    %526 = vmatprep.subr.bf16.mxu0 %v495
    %527 = vmatpush1.bf16.msra.mxu0 %v494
    %528 = vmatprep.subr.bf16.mxu0 %v497
    %529 = vmatpush1.bf16.msra.mxu0 %v496
    %530 = vmatprep.subr.bf16.mxu0 %v499
    %531 = vmatpush1.bf16.msra.mxu0 %v498
    %532 = vmatprep.subr.bf16.mxu0 %v501
    %533 = vmatpush1.bf16.msra.mxu0 %v500
    %534 = vmatprep.subr.bf16.mxu0 0
    %535 = vmatpush1.bf16.msra.mxu0 0
    %536 = vmatprep.subr.bf16.mxu0 0
    %537 = vmatpush1.bf16.msra.mxu0 0
    %538 = vmatprep.subr.bf16.mxu0 0
    %539 = vmatpush1.bf16.msra.mxu0 0
    %540 = vmatprep.subr.bf16.mxu0 0
    %541 = vmatpush1.bf16.msra.mxu0 0
    %542 = vmatprep.subr.bf16.mxu0 0
    %543 = vmatpush1.bf16.msra.mxu0 0
    %544 = vmatprep.subr.bf16.mxu0 0
    %545 = vmatpush1.bf16.msra.mxu0 0
    %546 = vmatprep.subr.bf16.mxu0 0
    %547 = vmatpush1.bf16.msra.mxu0 0
    %548 = vmatprep.subr.bf16.mxu0 0
    %549 = vmatpush1.bf16.msra.mxu0 0
    %550 = vmatprep.mubr.bf16.mxu0 0
    %551 = vmatmul.mubr.bf16.gmra.mrb[0].mxu0 %v408
    %v552 = vpop.f32.mrb[0].mxu0
    %v553 = vadd.f32 %v431, %v552
    %v554 = vpop.f32.mrb[0].mxu0
    %v555 = vadd.f32 %v435, %v554
    %v556 = vpop.f32.mrb[0].mxu0
    %v557 = vadd.f32 %v431, %v556
    %v558 = vpop.f32.mrb[0].mxu0
    %v559 = vadd.f32 %v435, %v558
    %560 = vmatprep.mubr.bf16.mxu0 0
    %561 = vmatmul.mubr.bf16.gmra.mrb[0].mxu0 %v409
    %v562 = vpop.f32.mrb[0].mxu0
    %v563 = vadd.f32 %v431, %v562
    %v564 = vpop.f32.mrb[0].mxu0
    %v565 = vadd.f32 %v435, %v564
    %v566 = vpop.f32.mrb[0].mxu0
    %v567 = vadd.f32 %v431, %v566
    %v568 = vpop.f32.mrb[0].mxu0
    %v569 = vadd.f32 %v435, %v568
    %570 = vdwg.mxu0
    %v571 = vmax.f32 %v553, 0.0
    %v572 = vmax.f32 %v555, 0.0
    %v573 = vmax.f32 %v557, 0.0
    %v574 = vmax.f32 %v559, 0.0
    %v575 = vmax.f32 %v563, 0.0
    %v576 = vmax.f32 %v565, 0.0
    %v577 = vmax.f32 %v567, 0.0
    %v578 = vmax.f32 %v569, 0.0
    %v579 = vmax.f32 %v571, %v573
    %v580 = vrot.slane %v579, 4
    %v581 = vmax.f32 %v579, %v580
    %v582 = vrot.slane %v581, 2
    %v583 = vmax.f32 %v581, %v582
    %v584 = vrot.slane %v583, 1
    %v585 = vmax.f32 %v583, %v584
    %v586 = vmax.f32 %v572, %v574
    %v587 = vrot.slane %v586, 4
    %v588 = vmax.f32 %v586, %v587
    %v589 = vrot.slane %v588, 2
    %v590 = vmax.f32 %v588, %v589
    %v591 = vrot.slane %v590, 1
    %v592 = vmax.f32 %v590, %v591
    %v593 = vmax.f32 %v575, %v577
    %v594 = vrot.slane %v593, 4
    %v595 = vmax.f32 %v593, %v594
    %v596 = vrot.slane %v595, 2
    %v597 = vmax.f32 %v595, %v596
    %v598 = vrot.slane %v597, 1
    %v599 = vmax.f32 %v597, %v598
    %v600 = vmax.f32 %v576, %v578
    %v601 = vrot.slane %v600, 4
    %v602 = vmax.f32 %v600, %v601
    %v603 = vrot.slane %v602, 2
    %v604 = vmax.f32 %v602, %v603
    %v605 = vrot.slane %v604, 1
    %v606 = vmax.f32 %v604, %v605
    %v607 = vld [vmem:[#allocation2] sm:$0xf]
    %v612 = vcombine.low %v585, %v592
    %v614 = vunpack.c.l.s4 1983009808
    %v615 = vunpack.c.0.s8 %v614
    %v616 = vlaneseq
    %v617 = vshrl.u32 %v616, 7
    %v618 = vsub.s32 %v615, %v617
    %v619 = vrot.slane %v612, %v618
    %v620 = vcombine.low %v599, %v606
    %v622 = vunpack.c.l.s4 1983009808
    %v623 = vunpack.c.0.s8 %v622
    %v624 = vlaneseq
    %v625 = vshrl.u32 %v624, 7
    %v626 = vsub.s32 %v623, %v625
    %v627 = vrot.slane %v620, %v626
    %vm628 = vcmask 1044484
    %v629 = vsel %vm628, %v619, %v619
    %vm630 = vcmask 1046534
    %v631 = vsel %vm630, %v619, %v629
    %v632 = vrot.slane %v627, 7
    %vm633 = vcmask 1041409
    %v634 = vsel %vm633, %v632, %v631
    %vm635 = vcmask 1043459
    %v636 = vsel %vm635, %v632, %v634
    %vm637 = vcmask 1045509
    %v638 = vsel %vm637, %v632, %v636
    %vm639 = vcmask 1047559
    %v640 = vsel %vm639, %v632, %v638
    %v642 = vmax.f32 %v607, %v640
    %643 = vst [vmem:[#allocation2] sm:$0xf] %v642
    %v644 = vld [vmem:[#allocation11 + $0x8] sm:$0xff]
    %v645 = vld [vmem:[#allocation11 + $0x28] sm:$0xff]
    %v646 = vld [vmem:[#allocation11 + $0x48] sm:$0xff]
    %v647 = vld [vmem:[#allocation11 + $0x68] sm:$0xff]
    %v648 = vld [vmem:[#allocation11 + $0x88] sm:$0xff]
    %v649 = vld [vmem:[#allocation11 + $0xa8] sm:$0xff]
    %v650 = vld [vmem:[#allocation11 + $0xc8] sm:$0xff]
    %v651 = vld [vmem:[#allocation11 + $0xe8] sm:$0xff]
    %v652 = vld [vmem:[#allocation11 + $0x108] sm:$0xff]
    %v653 = vld [vmem:[#allocation11 + $0x128] sm:$0xff]
    %v654 = vld [vmem:[#allocation11 + $0x148] sm:$0xff]
    %v655 = vld [vmem:[#allocation11 + $0x168] sm:$0xff]
    %v656 = vld [vmem:[#allocation11 + $0x188] sm:$0xff]
    %v657 = vld [vmem:[#allocation11 + $0x1a8] sm:$0xff]
    %v658 = vld [vmem:[#allocation11 + $0x1c8] sm:$0xff]
    %v659 = vld [vmem:[#allocation11 + $0x1e8] sm:$0xff]
    %v660 = vld [vmem:[#allocation12 + $0x2] sm:$0x3]
    %v662 = vlaneseq
    %v663 = vshrl.u32 %v662, 7
    %v664 = vsub.s32 0, %v663
    %v665 = vrot.slane %v660, %v664
    %v666 = vlaneseq
    %v667 = vshrl.u32 %v666, 7
    %v668 = vsub.s32 1, %v667
    %v669 = vrot.slane %v660, %v668
    %v688 = vunpack.c.l.b16 %v644
    %v689 = vunpack.c.h.b16 %v644
    %v690 = vunpack.c.l.b16 %v645
    %v691 = vunpack.c.h.b16 %v645
    %v692 = vunpack.c.l.b16 %v646
    %v693 = vunpack.c.h.b16 %v646
    %v694 = vunpack.c.l.b16 %v647
    %v695 = vunpack.c.h.b16 %v647
    %v696 = vunpack.c.l.b16 %v648
    %v697 = vunpack.c.h.b16 %v648
    %v698 = vunpack.c.l.b16 %v649
    %v699 = vunpack.c.h.b16 %v649
    %v700 = vunpack.c.l.b16 %v650
    %v701 = vunpack.c.h.b16 %v650
    %v702 = vunpack.c.l.b16 %v651
    %v703 = vunpack.c.h.b16 %v651
    %v704 = vunpack.c.l.b16 %v652
    %v705 = vunpack.c.h.b16 %v652
    %v706 = vunpack.c.l.b16 %v653
    %v707 = vunpack.c.h.b16 %v653
    %v708 = vunpack.c.l.b16 %v654
    %v709 = vunpack.c.h.b16 %v654
    %v710 = vunpack.c.l.b16 %v655
    %v711 = vunpack.c.h.b16 %v655
    %v712 = vunpack.c.l.b16 %v656
    %v713 = vunpack.c.h.b16 %v656
    %v714 = vunpack.c.l.b16 %v657
    %v715 = vunpack.c.h.b16 %v657
    %v716 = vunpack.c.l.b16 %v658
    %v717 = vunpack.c.h.b16 %v658
    %v718 = vunpack.c.l.b16 %v659
    %v719 = vunpack.c.h.b16 %v659
    %v720 = vpack.c.b16 %v690, %v688
    %v721 = vpack.c.b16 %v691, %v689
    %v722 = vpack.c.b16 %v694, %v692
    %v723 = vpack.c.b16 %v695, %v693
    %v724 = vpack.c.b16 %v698, %v696
    %v725 = vpack.c.b16 %v699, %v697
    %v726 = vpack.c.b16 %v702, %v700
    %v727 = vpack.c.b16 %v703, %v701
    %v728 = vpack.c.b16 %v706, %v704
    %v729 = vpack.c.b16 %v707, %v705
    %v730 = vpack.c.b16 %v710, %v708
    %v731 = vpack.c.b16 %v711, %v709
    %v732 = vpack.c.b16 %v714, %v712
    %v733 = vpack.c.b16 %v715, %v713
    %v734 = vpack.c.b16 %v718, %v716
    %v735 = vpack.c.b16 %v719, %v717
    %752 = vmatprep.subr.bf16.mxu0 %v721
    %753 = vmatpush1.bf16.msra.mxu0 %v720
    %754 = vmatprep.subr.bf16.mxu0 %v723
    %755 = vmatpush1.bf16.msra.mxu0 %v722
    %756 = vmatprep.subr.bf16.mxu0 %v725
    %757 = vmatpush1.bf16.msra.mxu0 %v724
    %758 = vmatprep.subr.bf16.mxu0 %v727
    %759 = vmatpush1.bf16.msra.mxu0 %v726
    %760 = vmatprep.subr.bf16.mxu0 %v729
    %761 = vmatpush1.bf16.msra.mxu0 %v728
    %762 = vmatprep.subr.bf16.mxu0 %v731
    %763 = vmatpush1.bf16.msra.mxu0 %v730
    %764 = vmatprep.subr.bf16.mxu0 %v733
    %765 = vmatpush1.bf16.msra.mxu0 %v732
    %766 = vmatprep.subr.bf16.mxu0 %v735
    %767 = vmatpush1.bf16.msra.mxu0 %v734
    %768 = vmatprep.subr.bf16.mxu0 0
    %769 = vmatpush1.bf16.msra.mxu0 0
    %770 = vmatprep.subr.bf16.mxu0 0
    %771 = vmatpush1.bf16.msra.mxu0 0
    %772 = vmatprep.subr.bf16.mxu0 0
    %773 = vmatpush1.bf16.msra.mxu0 0
    %774 = vmatprep.subr.bf16.mxu0 0
    %775 = vmatpush1.bf16.msra.mxu0 0
    %776 = vmatprep.subr.bf16.mxu0 0
    %777 = vmatpush1.bf16.msra.mxu0 0
    %778 = vmatprep.subr.bf16.mxu0 0
    %779 = vmatpush1.bf16.msra.mxu0 0
    %780 = vmatprep.subr.bf16.mxu0 0
    %781 = vmatpush1.bf16.msra.mxu0 0
    %782 = vmatprep.subr.bf16.mxu0 0
    %783 = vmatpush1.bf16.msra.mxu0 0
    %784 = vmatprep.mubr.bf16.mxu0 0
    %785 = vmatmul.mubr.bf16.gmra.mrb[0].mxu0 %v408
    %v786 = vpop.f32.mrb[0].mxu0
    %v787 = vadd.f32 %v665, %v786
    %v788 = vpop.f32.mrb[0].mxu0
    %v789 = vadd.f32 %v669, %v788
    %v790 = vpop.f32.mrb[0].mxu0
    %v791 = vadd.f32 %v665, %v790
    %v792 = vpop.f32.mrb[0].mxu0
    %v793 = vadd.f32 %v669, %v792
    %794 = vmatprep.mubr.bf16.mxu0 0
    %795 = vmatmul.mubr.bf16.gmra.mrb[0].mxu0 %v409
    %v796 = vpop.f32.mrb[0].mxu0
    %v797 = vadd.f32 %v665, %v796
    %v798 = vpop.f32.mrb[0].mxu0
    %v799 = vadd.f32 %v669, %v798
    %v800 = vpop.f32.mrb[0].mxu0
    %v801 = vadd.f32 %v665, %v800
    %v802 = vpop.f32.mrb[0].mxu0
    %v803 = vadd.f32 %v669, %v802
    %804 = vdwg.mxu0
    %v805 = vmax.f32 %v787, 0.0
    %v806 = vmax.f32 %v789, 0.0
    %v807 = vmax.f32 %v791, 0.0
    %v808 = vmax.f32 %v793, 0.0
    %v809 = vmax.f32 %v797, 0.0
    %v810 = vmax.f32 %v799, 0.0
    %v811 = vmax.f32 %v801, 0.0
    %v812 = vmax.f32 %v803, 0.0
    %v813 = vmax.f32 %v805, %v807
    %v814 = vrot.slane %v813, 4
    %v815 = vmax.f32 %v813, %v814
    %v816 = vrot.slane %v815, 2
    %v817 = vmax.f32 %v815, %v816
    %v818 = vrot.slane %v817, 1
    %v819 = vmax.f32 %v817, %v818
    %v820 = vmax.f32 %v806, %v808
    %v821 = vrot.slane %v820, 4
    %v822 = vmax.f32 %v820, %v821
    %v823 = vrot.slane %v822, 2
    %v824 = vmax.f32 %v822, %v823
    %v825 = vrot.slane %v824, 1
    %v826 = vmax.f32 %v824, %v825
    %v827 = vmax.f32 %v809, %v811
    %v828 = vrot.slane %v827, 4
    %v829 = vmax.f32 %v827, %v828
    %v830 = vrot.slane %v829, 2
    %v831 = vmax.f32 %v829, %v830
    %v832 = vrot.slane %v831, 1
    %v833 = vmax.f32 %v831, %v832
    %v834 = vmax.f32 %v810, %v812
    %v835 = vrot.slane %v834, 4
    %v836 = vmax.f32 %v834, %v835
    %v837 = vrot.slane %v836, 2
    %v838 = vmax.f32 %v836, %v837
    %v839 = vrot.slane %v838, 1
    %v840 = vmax.f32 %v838, %v839
    %v841 = vld [vmem:[#allocation2 + $0x4] sm:$0xf]
    %v846 = vcombine.low %v819, %v826
    %v848 = vunpack.c.l.s4 1983009808
    %v849 = vunpack.c.0.s8 %v848
    %v850 = vlaneseq
    %v851 = vshrl.u32 %v850, 7
    %v852 = vsub.s32 %v849, %v851
    %v853 = vrot.slane %v846, %v852
    %v854 = vcombine.low %v833, %v840
    %v856 = vunpack.c.l.s4 1983009808
    %v857 = vunpack.c.0.s8 %v856
    %v858 = vlaneseq
    %v859 = vshrl.u32 %v858, 7
    %v860 = vsub.s32 %v857, %v859
    %v861 = vrot.slane %v854, %v860
    %v862 = vsel %vm628, %v853, %v853
    %v863 = vsel %vm630, %v853, %v862
    %v864 = vrot.slane %v861, 7
    %v865 = vsel %vm633, %v864, %v863
    %v866 = vsel %vm635, %v864, %v865
    %v867 = vsel %vm637, %v864, %v866
    %v868 = vsel %vm639, %v864, %v867
    %v870 = vmax.f32 %v841, %v868
    %871 = vst [vmem:[#allocation2 + $0x4] sm:$0xf] %v870
    %v872 = vld [vmem:[#allocation11 + $0x10] sm:$0xff]
    %v873 = vld [vmem:[#allocation11 + $0x30] sm:$0xff]
    %v874 = vld [vmem:[#allocation11 + $0x50] sm:$0xff]
    %v875 = vld [vmem:[#allocation11 + $0x70] sm:$0xff]
    %v876 = vld [vmem:[#allocation11 + $0x90] sm:$0xff]
    %v877 = vld [vmem:[#allocation11 + $0xb0] sm:$0xff]
    %v878 = vld [vmem:[#allocation11 + $0xd0] sm:$0xff]
    %v879 = vld [vmem:[#allocation11 + $0xf0] sm:$0xff]
    %v880 = vld [vmem:[#allocation11 + $0x110] sm:$0xff]
    %v881 = vld [vmem:[#allocation11 + $0x130] sm:$0xff]
    %v882 = vld [vmem:[#allocation11 + $0x150] sm:$0xff]
    %v883 = vld [vmem:[#allocation11 + $0x170] sm:$0xff]
    %v884 = vld [vmem:[#allocation11 + $0x190] sm:$0xff]
    %v885 = vld [vmem:[#allocation11 + $0x1b0] sm:$0xff]
    %v886 = vld [vmem:[#allocation11 + $0x1d0] sm:$0xff]
    %v887 = vld [vmem:[#allocation11 + $0x1f0] sm:$0xff]
    %v888 = vld [vmem:[#allocation12 + $0x4] sm:$0x3]
    %v890 = vlaneseq
    %v891 = vshrl.u32 %v890, 7
    %v892 = vsub.s32 0, %v891
    %v893 = vrot.slane %v888, %v892
    %v894 = vlaneseq
    %v895 = vshrl.u32 %v894, 7
    %v896 = vsub.s32 1, %v895
    %v897 = vrot.slane %v888, %v896
    %v916 = vunpack.c.l.b16 %v872
    %v917 = vunpack.c.h.b16 %v872
    %v918 = vunpack.c.l.b16 %v873
    %v919 = vunpack.c.h.b16 %v873
    %v920 = vunpack.c.l.b16 %v874
    %v921 = vunpack.c.h.b16 %v874
    %v922 = vunpack.c.l.b16 %v875
    %v923 = vunpack.c.h.b16 %v875
    %v924 = vunpack.c.l.b16 %v876
    %v925 = vunpack.c.h.b16 %v876
    %v926 = vunpack.c.l.b16 %v877
    %v927 = vunpack.c.h.b16 %v877
    %v928 = vunpack.c.l.b16 %v878
    %v929 = vunpack.c.h.b16 %v878
    %v930 = vunpack.c.l.b16 %v879
    %v931 = vunpack.c.h.b16 %v879
    %v932 = vunpack.c.l.b16 %v880
    %v933 = vunpack.c.h.b16 %v880
    %v934 = vunpack.c.l.b16 %v881
    %v935 = vunpack.c.h.b16 %v881
    %v936 = vunpack.c.l.b16 %v882
    %v937 = vunpack.c.h.b16 %v882
    %v938 = vunpack.c.l.b16 %v883
    %v939 = vunpack.c.h.b16 %v883
    %v940 = vunpack.c.l.b16 %v884
    %v941 = vunpack.c.h.b16 %v884
    %v942 = vunpack.c.l.b16 %v885
    %v943 = vunpack.c.h.b16 %v885
    %v944 = vunpack.c.l.b16 %v886
    %v945 = vunpack.c.h.b16 %v886
    %v946 = vunpack.c.l.b16 %v887
    %v947 = vunpack.c.h.b16 %v887
    %v948 = vpack.c.b16 %v918, %v916
    %v949 = vpack.c.b16 %v919, %v917
    %v950 = vpack.c.b16 %v922, %v920
    %v951 = vpack.c.b16 %v923, %v921
    %v952 = vpack.c.b16 %v926, %v924
    %v953 = vpack.c.b16 %v927, %v925
    %v954 = vpack.c.b16 %v930, %v928
    %v955 = vpack.c.b16 %v931, %v929
    %v956 = vpack.c.b16 %v934, %v932
    %v957 = vpack.c.b16 %v935, %v933
    %v958 = vpack.c.b16 %v938, %v936
    %v959 = vpack.c.b16 %v939, %v937
    %v960 = vpack.c.b16 %v942, %v940
    %v961 = vpack.c.b16 %v943, %v941
    %v962 = vpack.c.b16 %v946, %v944
    %v963 = vpack.c.b16 %v947, %v945
    %980 = vmatprep.subr.bf16.mxu0 %v949
    %981 = vmatpush1.bf16.msra.mxu0 %v948
    %982 = vmatprep.subr.bf16.mxu0 %v951
    %983 = vmatpush1.bf16.msra.mxu0 %v950
    %984 = vmatprep.subr.bf16.mxu0 %v953
    %985 = vmatpush1.bf16.msra.mxu0 %v952
    %986 = vmatprep.subr.bf16.mxu0 %v955
    %987 = vmatpush1.bf16.msra.mxu0 %v954
    %988 = vmatprep.subr.bf16.mxu0 %v957
    %989 = vmatpush1.bf16.msra.mxu0 %v956
    %990 = vmatprep.subr.bf16.mxu0 %v959
    %991 = vmatpush1.bf16.msra.mxu0 %v958
    %992 = vmatprep.subr.bf16.mxu0 %v961
    %993 = vmatpush1.bf16.msra.mxu0 %v960
    %994 = vmatprep.subr.bf16.mxu0 %v963
    %995 = vmatpush1.bf16.msra.mxu0 %v962
    %996 = vmatprep.subr.bf16.mxu0 0
    %997 = vmatpush1.bf16.msra.mxu0 0
    %998 = vmatprep.subr.bf16.mxu0 0
    %999 = vmatpush1.bf16.msra.mxu0 0
    %1000 = vmatprep.subr.bf16.mxu0 0
    %1001 = vmatpush1.bf16.msra.mxu0 0
    %1002 = vmatprep.subr.bf16.mxu0 0
    %1003 = vmatpush1.bf16.msra.mxu0 0
    %1004 = vmatprep.subr.bf16.mxu0 0
    %1005 = vmatpush1.bf16.msra.mxu0 0
    %1006 = vmatprep.subr.bf16.mxu0 0
    %1007 = vmatpush1.bf16.msra.mxu0 0
    %1008 = vmatprep.subr.bf16.mxu0 0
    %1009 = vmatpush1.bf16.msra.mxu0 0
    %1010 = vmatprep.subr.bf16.mxu0 0
    %1011 = vmatpush1.bf16.msra.mxu0 0
    %1012 = vmatprep.mubr.bf16.mxu0 0
    %1013 = vmatmul.mubr.bf16.gmra.mrb[0].mxu0 %v408
    %v1014 = vpop.f32.mrb[0].mxu0
    %v1015 = vadd.f32 %v893, %v1014
    %v1016 = vpop.f32.mrb[0].mxu0
    %v1017 = vadd.f32 %v897, %v1016
    %v1018 = vpop.f32.mrb[0].mxu0
    %v1019 = vadd.f32 %v893, %v1018
    %v1020 = vpop.f32.mrb[0].mxu0
    %v1021 = vadd.f32 %v897, %v1020
    %1022 = vmatprep.mubr.bf16.mxu0 0
    %1023 = vmatmul.mubr.bf16.gmra.mrb[0].mxu0 %v409
    %v1024 = vpop.f32.mrb[0].mxu0
    %v1025 = vadd.f32 %v893, %v1024
    %v1026 = vpop.f32.mrb[0].mxu0
    %v1027 = vadd.f32 %v897, %v1026
    %v1028 = vpop.f32.mrb[0].mxu0
    %v1029 = vadd.f32 %v893, %v1028
    %v1030 = vpop.f32.mrb[0].mxu0
    %v1031 = vadd.f32 %v897, %v1030
    %1032 = vdwg.mxu0
    %v1033 = vmax.f32 %v1015, 0.0
    %v1034 = vmax.f32 %v1017, 0.0
    %v1035 = vmax.f32 %v1019, 0.0
    %v1036 = vmax.f32 %v1021, 0.0
    %v1037 = vmax.f32 %v1025, 0.0
    %v1038 = vmax.f32 %v1027, 0.0
    %v1039 = vmax.f32 %v1029, 0.0
    %v1040 = vmax.f32 %v1031, 0.0
    %v1041 = vmax.f32 %v1033, %v1035
    %v1042 = vrot.slane %v1041, 4
    %v1043 = vmax.f32 %v1041, %v1042
    %v1044 = vrot.slane %v1043, 2
    %v1045 = vmax.f32 %v1043, %v1044
    %v1046 = vrot.slane %v1045, 1
    %v1047 = vmax.f32 %v1045, %v1046
    %v1048 = vmax.f32 %v1034, %v1036
    %v1049 = vrot.slane %v1048, 4
    %v1050 = vmax.f32 %v1048, %v1049
    %v1051 = vrot.slane %v1050, 2
    %v1052 = vmax.f32 %v1050, %v1051
    %v1053 = vrot.slane %v1052, 1
    %v1054 = vmax.f32 %v1052, %v1053
    %v1055 = vmax.f32 %v1037, %v1039
    %v1056 = vrot.slane %v1055, 4
    %v1057 = vmax.f32 %v1055, %v1056
    %v1058 = vrot.slane %v1057, 2
    %v1059 = vmax.f32 %v1057, %v1058
    %v1060 = vrot.slane %v1059, 1
    %v1061 = vmax.f32 %v1059, %v1060
    %v1062 = vmax.f32 %v1038, %v1040
    %v1063 = vrot.slane %v1062, 4
    %v1064 = vmax.f32 %v1062, %v1063
    %v1065 = vrot.slane %v1064, 2
    %v1066 = vmax.f32 %v1064, %v1065
    %v1067 = vrot.slane %v1066, 1
    %v1068 = vmax.f32 %v1066, %v1067
    %v1069 = vld [vmem:[#allocation2 + $0x8] sm:$0xf]
    %v1074 = vcombine.low %v1047, %v1054
    %v1076 = vunpack.c.l.s4 1983009808
    %v1077 = vunpack.c.0.s8 %v1076
    %v1078 = vlaneseq
    %v1079 = vshrl.u32 %v1078, 7
    %v1080 = vsub.s32 %v1077, %v1079
    %v1081 = vrot.slane %v1074, %v1080
    %v1082 = vcombine.low %v1061, %v1068
    %v1084 = vunpack.c.l.s4 1983009808
    %v1085 = vunpack.c.0.s8 %v1084
    %v1086 = vlaneseq
    %v1087 = vshrl.u32 %v1086, 7
    %v1088 = vsub.s32 %v1085, %v1087
    %v1089 = vrot.slane %v1082, %v1088
    %v1090 = vsel %vm628, %v1081, %v1081
    %v1091 = vsel %vm630, %v1081, %v1090
    %v1092 = vrot.slane %v1089, 7
    %v1093 = vsel %vm633, %v1092, %v1091
    %v1094 = vsel %vm635, %v1092, %v1093
    %v1095 = vsel %vm637, %v1092, %v1094
    %v1096 = vsel %vm639, %v1092, %v1095
    %v1098 = vmax.f32 %v1069, %v1096
    %1099 = vst [vmem:[#allocation2 + $0x8] sm:$0xf] %v1098
    %v1100 = vld [vmem:[#allocation11 + $0x18] sm:$0xff]
    %v1101 = vld [vmem:[#allocation11 + $0x38] sm:$0xff]
    %v1102 = vld [vmem:[#allocation11 + $0x58] sm:$0xff]
    %v1103 = vld [vmem:[#allocation11 + $0x78] sm:$0xff]
    %v1104 = vld [vmem:[#allocation11 + $0x98] sm:$0xff]
    %v1105 = vld [vmem:[#allocation11 + $0xb8] sm:$0xff]
    %v1106 = vld [vmem:[#allocation11 + $0xd8] sm:$0xff]
    %v1107 = vld [vmem:[#allocation11 + $0xf8] sm:$0xff]
    %v1108 = vld [vmem:[#allocation11 + $0x118] sm:$0xff]
    %v1109 = vld [vmem:[#allocation11 + $0x138] sm:$0xff]
    %v1110 = vld [vmem:[#allocation11 + $0x158] sm:$0xff]
    %v1111 = vld [vmem:[#allocation11 + $0x178] sm:$0xff]
    %v1112 = vld [vmem:[#allocation11 + $0x198] sm:$0xff]
    %v1113 = vld [vmem:[#allocation11 + $0x1b8] sm:$0xff]
    %v1114 = vld [vmem:[#allocation11 + $0x1d8] sm:$0xff]
    %v1115 = vld [vmem:[#allocation11 + $0x1f8] sm:$0xff]
    %v1116 = vld [vmem:[#allocation12 + $0x6] sm:$0x3]
    %v1118 = vlaneseq
    %v1119 = vshrl.u32 %v1118, 7
    %v1120 = vsub.s32 0, %v1119
    %v1121 = vrot.slane %v1116, %v1120
    %v1122 = vlaneseq
    %v1123 = vshrl.u32 %v1122, 7
    %v1124 = vsub.s32 1, %v1123
    %v1125 = vrot.slane %v1116, %v1124
    %v1144 = vunpack.c.l.b16 %v1100
    %v1145 = vunpack.c.h.b16 %v1100
    %v1146 = vunpack.c.l.b16 %v1101
    %v1147 = vunpack.c.h.b16 %v1101
    %v1148 = vunpack.c.l.b16 %v1102
    %v1149 = vunpack.c.h.b16 %v1102
    %v1150 = vunpack.c.l.b16 %v1103
    %v1151 = vunpack.c.h.b16 %v1103
    %v1152 = vunpack.c.l.b16 %v1104
    %v1153 = vunpack.c.h.b16 %v1104
    %v1154 = vunpack.c.l.b16 %v1105
    %v1155 = vunpack.c.h.b16 %v1105
    %v1156 = vunpack.c.l.b16 %v1106
    %v1157 = vunpack.c.h.b16 %v1106
    %v1158 = vunpack.c.l.b16 %v1107
    %v1159 = vunpack.c.h.b16 %v1107
    %v1160 = vunpack.c.l.b16 %v1108
    %v1161 = vunpack.c.h.b16 %v1108
    %v1162 = vunpack.c.l.b16 %v1109
    %v1163 = vunpack.c.h.b16 %v1109
    %v1164 = vunpack.c.l.b16 %v1110
    %v1165 = vunpack.c.h.b16 %v1110
    %v1166 = vunpack.c.l.b16 %v1111
    %v1167 = vunpack.c.h.b16 %v1111
    %v1168 = vunpack.c.l.b16 %v1112
    %v1169 = vunpack.c.h.b16 %v1112
    %v1170 = vunpack.c.l.b16 %v1113
    %v1171 = vunpack.c.h.b16 %v1113
    %v1172 = vunpack.c.l.b16 %v1114
    %v1173 = vunpack.c.h.b16 %v1114
    %v1174 = vunpack.c.l.b16 %v1115
    %v1175 = vunpack.c.h.b16 %v1115
    %v1176 = vpack.c.b16 %v1146, %v1144
    %v1177 = vpack.c.b16 %v1147, %v1145
    %v1178 = vpack.c.b16 %v1150, %v1148
    %v1179 = vpack.c.b16 %v1151, %v1149
    %v1180 = vpack.c.b16 %v1154, %v1152
    %v1181 = vpack.c.b16 %v1155, %v1153
    %v1182 = vpack.c.b16 %v1158, %v1156
    %v1183 = vpack.c.b16 %v1159, %v1157
    %v1184 = vpack.c.b16 %v1162, %v1160
    %v1185 = vpack.c.b16 %v1163, %v1161
    %v1186 = vpack.c.b16 %v1166, %v1164
    %v1187 = vpack.c.b16 %v1167, %v1165
    %v1188 = vpack.c.b16 %v1170, %v1168
    %v1189 = vpack.c.b16 %v1171, %v1169
    %v1190 = vpack.c.b16 %v1174, %v1172
    %v1191 = vpack.c.b16 %v1175, %v1173
    %1208 = vmatprep.subr.bf16.mxu0 %v1177
    %1209 = vmatpush1.bf16.msra.mxu0 %v1176
    %1210 = vmatprep.subr.bf16.mxu0 %v1179
    %1211 = vmatpush1.bf16.msra.mxu0 %v1178
    %1212 = vmatprep.subr.bf16.mxu0 %v1181
    %1213 = vmatpush1.bf16.msra.mxu0 %v1180
    %1214 = vmatprep.subr.bf16.mxu0 %v1183
    %1215 = vmatpush1.bf16.msra.mxu0 %v1182
    %1216 = vmatprep.subr.bf16.mxu0 %v1185
    %1217 = vmatpush1.bf16.msra.mxu0 %v1184
    %1218 = vmatprep.subr.bf16.mxu0 %v1187
    %1219 = vmatpush1.bf16.msra.mxu0 %v1186
    %1220 = vmatprep.subr.bf16.mxu0 %v1189
    %1221 = vmatpush1.bf16.msra.mxu0 %v1188
    %1222 = vmatprep.subr.bf16.mxu0 %v1191
    %1223 = vmatpush1.bf16.msra.mxu0 %v1190
    %1224 = vmatprep.subr.bf16.mxu0 0
    %1225 = vmatpush1.bf16.msra.mxu0 0
    %1226 = vmatprep.subr.bf16.mxu0 0
    %1227 = vmatpush1.bf16.msra.mxu0 0
    %1228 = vmatprep.subr.bf16.mxu0 0
    %1229 = vmatpush1.bf16.msra.mxu0 0
    %1230 = vmatprep.subr.bf16.mxu0 0
    %1231 = vmatpush1.bf16.msra.mxu0 0
    %1232 = vmatprep.subr.bf16.mxu0 0
    %1233 = vmatpush1.bf16.msra.mxu0 0
    %1234 = vmatprep.subr.bf16.mxu0 0
    %1235 = vmatpush1.bf16.msra.mxu0 0
    %1236 = vmatprep.subr.bf16.mxu0 0
    %1237 = vmatpush1.bf16.msra.mxu0 0
    %1238 = vmatprep.subr.bf16.mxu0 0
    %1239 = vmatpush1.bf16.msra.mxu0 0
    %1240 = vmatprep.mubr.bf16.mxu0 0
    %1241 = vmatmul.mubr.bf16.gmra.mrb[0].mxu0 %v408
    %v1242 = vpop.f32.mrb[0].mxu0
    %v1243 = vadd.f32 %v1121, %v1242
    %v1244 = vpop.f32.mrb[0].mxu0
    %v1245 = vadd.f32 %v1125, %v1244
    %v1246 = vpop.f32.mrb[0].mxu0
    %v1247 = vadd.f32 %v1121, %v1246
    %v1248 = vpop.f32.mrb[0].mxu0
    %v1249 = vadd.f32 %v1125, %v1248
    %1250 = vmatprep.mubr.bf16.mxu0 0
    %1251 = vmatmul.mubr.bf16.gmra.mrb[0].mxu0 %v409
    %v1252 = vpop.f32.mrb[0].mxu0
    %v1253 = vadd.f32 %v1121, %v1252
    %v1254 = vpop.f32.mrb[0].mxu0
    %v1255 = vadd.f32 %v1125, %v1254
    %v1256 = vpop.f32.mrb[0].mxu0
    %v1257 = vadd.f32 %v1121, %v1256
    %v1258 = vpop.f32.mrb[0].mxu0
    %v1259 = vadd.f32 %v1125, %v1258
    %1260 = vdwg.mxu0
    %v1261 = vmax.f32 %v1243, 0.0
    %v1262 = vmax.f32 %v1245, 0.0
    %v1263 = vmax.f32 %v1247, 0.0
    %v1264 = vmax.f32 %v1249, 0.0
    %v1265 = vmax.f32 %v1253, 0.0
    %v1266 = vmax.f32 %v1255, 0.0
    %v1267 = vmax.f32 %v1257, 0.0
    %v1268 = vmax.f32 %v1259, 0.0
    %v1269 = vmax.f32 %v1261, %v1263
    %v1270 = vrot.slane %v1269, 4
    %v1271 = vmax.f32 %v1269, %v1270
    %v1272 = vrot.slane %v1271, 2
    %v1273 = vmax.f32 %v1271, %v1272
    %v1274 = vrot.slane %v1273, 1
    %v1275 = vmax.f32 %v1273, %v1274
    %v1276 = vmax.f32 %v1262, %v1264
    %v1277 = vrot.slane %v1276, 4
    %v1278 = vmax.f32 %v1276, %v1277
    %v1279 = vrot.slane %v1278, 2
    %v1280 = vmax.f32 %v1278, %v1279
    %v1281 = vrot.slane %v1280, 1
    %v1282 = vmax.f32 %v1280, %v1281
    %v1283 = vmax.f32 %v1265, %v1267
    %v1284 = vrot.slane %v1283, 4
    %v1285 = vmax.f32 %v1283, %v1284
    %v1286 = vrot.slane %v1285, 2
    %v1287 = vmax.f32 %v1285, %v1286
    %v1288 = vrot.slane %v1287, 1
    %v1289 = vmax.f32 %v1287, %v1288
    %v1290 = vmax.f32 %v1266, %v1268
    %v1291 = vrot.slane %v1290, 4
    %v1292 = vmax.f32 %v1290, %v1291
    %v1293 = vrot.slane %v1292, 2
    %v1294 = vmax.f32 %v1292, %v1293
    %v1295 = vrot.slane %v1294, 1
    %v1296 = vmax.f32 %v1294, %v1295
    %v1297 = vld [vmem:[#allocation2 + $0xc] sm:$0xf]
    %v1302 = vcombine.low %v1275, %v1282
    %v1304 = vunpack.c.l.s4 1983009808
    %v1305 = vunpack.c.0.s8 %v1304
    %v1306 = vlaneseq
    %v1307 = vshrl.u32 %v1306, 7
    %v1308 = vsub.s32 %v1305, %v1307
    %v1309 = vrot.slane %v1302, %v1308
    %v1310 = vcombine.low %v1289, %v1296
    %v1312 = vunpack.c.l.s4 1983009808
    %v1313 = vunpack.c.0.s8 %v1312
    %v1314 = vlaneseq
    %v1315 = vshrl.u32 %v1314, 7
    %v1316 = vsub.s32 %v1313, %v1315
    %v1317 = vrot.slane %v1310, %v1316
    %v1318 = vsel %vm628, %v1309, %v1309
    %v1319 = vsel %vm630, %v1309, %v1318
    %v1320 = vrot.slane %v1317, 7
    %v1321 = vsel %vm633, %v1320, %v1319
    %v1322 = vsel %vm635, %v1320, %v1321
    %v1323 = vsel %vm637, %v1320, %v1322
    %v1324 = vsel %vm639, %v1320, %v1323
    %v1326 = vmax.f32 %v1297, %v1324
    %1327 = vst [vmem:[#allocation2 + $0xc] sm:$0xf] %v1326
    // Predicated region
    $region106: #{tpu_custom_call.1} parent=1 // pred_check
      %p1328 = pneg %p195
    $region107: #{tpu_custom_call.1} parent=1 // pred_check_branch
      %1330 = sbr.rel (%p1328) target = $region109
    $region108: #{tpu_custom_call.1} parent=1 // pred_region
      %v1331 = vld [vmem:[#allocation2] sm:$0xff]
      %v1332 = vld [vmem:[#allocation2 + $0x8] sm:$0xff]
      %v1333 = vld [vmem:[#allocation14] sm:$0xff]
      %v1334 = vld [vmem:[#allocation14 + $0x8] sm:$0xff]
      %v1335 = vld [vmem:[#allocation14 + $0x10] sm:$0xff]
      %v1336 = vld [vmem:[#allocation14 + $0x18] sm:$0xff]
      %v1337 = vld [vmem:[#allocation14 + $0x20] sm:$0xff]
      %v1338 = vld [vmem:[#allocation14 + $0x28] sm:$0xff]
      %v1339 = vld [vmem:[#allocation14 + $0x30] sm:$0xff]
      %v1340 = vld [vmem:[#allocation14 + $0x38] sm:$0xff]
      %v1341 = vld [vmem:[#allocation14 + $0x40] sm:$0xff]
      %v1342 = vld [vmem:[#allocation14 + $0x48] sm:$0xff]
      %v1343 = vld [vmem:[#allocation14 + $0x50] sm:$0xff]
      %v1344 = vld [vmem:[#allocation14 + $0x58] sm:$0xff]
      %v1345 = vld [vmem:[#allocation14 + $0x60] sm:$0xff]
      %v1346 = vld [vmem:[#allocation14 + $0x68] sm:$0xff]
      %v1347 = vld [vmem:[#allocation14 + $0x70] sm:$0xff]
      %v1348 = vld [vmem:[#allocation14 + $0x78] sm:$0xff]
      %v1349 = vld [vmem:[#allocation14 + $0x80] sm:$0xff]
      %v1350 = vld [vmem:[#allocation14 + $0x88] sm:$0xff]
      %v1351 = vld [vmem:[#allocation14 + $0x90] sm:$0xff]
      %v1352 = vld [vmem:[#allocation14 + $0x98] sm:$0xff]
      %v1353 = vld [vmem:[#allocation14 + $0xa0] sm:$0xff]
      %v1354 = vld [vmem:[#allocation14 + $0xa8] sm:$0xff]
      %v1355 = vld [vmem:[#allocation14 + $0xb0] sm:$0xff]
      %v1356 = vld [vmem:[#allocation14 + $0xb8] sm:$0xff]
      %v1357 = vld [vmem:[#allocation14 + $0xc0] sm:$0xff]
      %v1358 = vld [vmem:[#allocation14 + $0xc8] sm:$0xff]
      %v1359 = vld [vmem:[#allocation14 + $0xd0] sm:$0xff]
      %v1360 = vld [vmem:[#allocation14 + $0xd8] sm:$0xff]
      %v1361 = vld [vmem:[#allocation14 + $0xe0] sm:$0xff]
      %v1362 = vld [vmem:[#allocation14 + $0xe8] sm:$0xff]
      %v1363 = vld [vmem:[#allocation14 + $0xf0] sm:$0xff]
      %v1364 = vld [vmem:[#allocation14 + $0xf8] sm:$0xff]
      %v1365 = vld [vmem:[#allocation14 + $0x100] sm:$0xff]
      %v1366 = vld [vmem:[#allocation14 + $0x108] sm:$0xff]
      %v1367 = vld [vmem:[#allocation14 + $0x110] sm:$0xff]
      %v1368 = vld [vmem:[#allocation14 + $0x118] sm:$0xff]
      %v1369 = vld [vmem:[#allocation14 + $0x120] sm:$0xff]
      %v1370 = vld [vmem:[#allocation14 + $0x128] sm:$0xff]
      %v1371 = vld [vmem:[#allocation14 + $0x130] sm:$0xff]
      %v1372 = vld [vmem:[#allocation14 + $0x138] sm:$0xff]
      %v1373 = vld [vmem:[#allocation14 + $0x140] sm:$0xff]
      %v1374 = vld [vmem:[#allocation14 + $0x148] sm:$0xff]
      %v1375 = vld [vmem:[#allocation14 + $0x150] sm:$0xff]
      %v1376 = vld [vmem:[#allocation14 + $0x158] sm:$0xff]
      %v1377 = vld [vmem:[#allocation14 + $0x160] sm:$0xff]
      %v1378 = vld [vmem:[#allocation14 + $0x168] sm:$0xff]
      %v1379 = vld [vmem:[#allocation14 + $0x170] sm:$0xff]
      %v1380 = vld [vmem:[#allocation14 + $0x178] sm:$0xff]
      %v1381 = vld [vmem:[#allocation14 + $0x180] sm:$0xff]
      %v1382 = vld [vmem:[#allocation14 + $0x188] sm:$0xff]
      %v1383 = vld [vmem:[#allocation14 + $0x190] sm:$0xff]
      %v1384 = vld [vmem:[#allocation14 + $0x198] sm:$0xff]
      %v1385 = vld [vmem:[#allocation14 + $0x1a0] sm:$0xff]
      %v1386 = vld [vmem:[#allocation14 + $0x1a8] sm:$0xff]
      %v1387 = vld [vmem:[#allocation14 + $0x1b0] sm:$0xff]
      %v1388 = vld [vmem:[#allocation14 + $0x1b8] sm:$0xff]
      %v1389 = vld [vmem:[#allocation14 + $0x1c0] sm:$0xff]
      %v1390 = vld [vmem:[#allocation14 + $0x1c8] sm:$0xff]
      %v1391 = vld [vmem:[#allocation14 + $0x1d0] sm:$0xff]
      %v1392 = vld [vmem:[#allocation14 + $0x1d8] sm:$0xff]
      %v1393 = vld [vmem:[#allocation14 + $0x1e0] sm:$0xff]
      %v1394 = vld [vmem:[#allocation14 + $0x1e8] sm:$0xff]
      %v1395 = vld [vmem:[#allocation14 + $0x1f0] sm:$0xff]
      %v1396 = vld [vmem:[#allocation14 + $0x1f8] sm:$0xff]
      %v1397 = vld [vmem:[#allocation14 + $0x200] sm:$0xff]
      %v1398 = vld [vmem:[#allocation14 + $0x208] sm:$0xff]
      %v1399 = vld [vmem:[#allocation14 + $0x210] sm:$0xff]
      %v1400 = vld [vmem:[#allocation14 + $0x218] sm:$0xff]
      %v1401 = vld [vmem:[#allocation14 + $0x220] sm:$0xff]
      %v1402 = vld [vmem:[#allocation14 + $0x228] sm:$0xff]
      %v1403 = vld [vmem:[#allocation14 + $0x230] sm:$0xff]
      %v1404 = vld [vmem:[#allocation14 + $0x238] sm:$0xff]
      %v1405 = vld [vmem:[#allocation14 + $0x240] sm:$0xff]
      %v1406 = vld [vmem:[#allocation14 + $0x248] sm:$0xff]
      %v1407 = vld [vmem:[#allocation14 + $0x250] sm:$0xff]
      %v1408 = vld [vmem:[#allocation14 + $0x258] sm:$0xff]
      %v1409 = vld [vmem:[#allocation14 + $0x260] sm:$0xff]
      %v1410 = vld [vmem:[#allocation14 + $0x268] sm:$0xff]
      %v1411 = vld [vmem:[#allocation14 + $0x270] sm:$0xff]
      %v1412 = vld [vmem:[#allocation14 + $0x278] sm:$0xff]
      %v1413 = vld [vmem:[#allocation14 + $0x280] sm:$0xff]
      %v1414 = vld [vmem:[#allocation14 + $0x288] sm:$0xff]
      %v1415 = vld [vmem:[#allocation14 + $0x290] sm:$0xff]
      %v1416 = vld [vmem:[#allocation14 + $0x298] sm:$0xff]
      %v1417 = vld [vmem:[#allocation14 + $0x2a0] sm:$0xff]
      %v1418 = vld [vmem:[#allocation14 + $0x2a8] sm:$0xff]
      %v1419 = vld [vmem:[#allocation14 + $0x2b0] sm:$0xff]
      %v1420 = vld [vmem:[#allocation14 + $0x2b8] sm:$0xff]
      %v1421 = vld [vmem:[#allocation14 + $0x2c0] sm:$0xff]
      %v1422 = vld [vmem:[#allocation14 + $0x2c8] sm:$0xff]
      %v1423 = vld [vmem:[#allocation14 + $0x2d0] sm:$0xff]
      %v1424 = vld [vmem:[#allocation14 + $0x2d8] sm:$0xff]
      %v1425 = vld [vmem:[#allocation14 + $0x2e0] sm:$0xff]
      %v1426 = vld [vmem:[#allocation14 + $0x2e8] sm:$0xff]
      %v1427 = vld [vmem:[#allocation14 + $0x2f0] sm:$0xff]
      %v1428 = vld [vmem:[#allocation14 + $0x2f8] sm:$0xff]
      %v1429 = vld [vmem:[#allocation14 + $0x300] sm:$0xff]
      %v1430 = vld [vmem:[#allocation14 + $0x308] sm:$0xff]
      %v1431 = vld [vmem:[#allocation14 + $0x310] sm:$0xff]
      %v1432 = vld [vmem:[#allocation14 + $0x318] sm:$0xff]
      %v1433 = vld [vmem:[#allocation14 + $0x320] sm:$0xff]
      %v1434 = vld [vmem:[#allocation14 + $0x328] sm:$0xff]
      %v1435 = vld [vmem:[#allocation14 + $0x330] sm:$0xff]
      %v1436 = vld [vmem:[#allocation14 + $0x338] sm:$0xff]
      %v1437 = vld [vmem:[#allocation14 + $0x340] sm:$0xff]
      %v1438 = vld [vmem:[#allocation14 + $0x348] sm:$0xff]
      %v1439 = vld [vmem:[#allocation14 + $0x350] sm:$0xff]
      %v1440 = vld [vmem:[#allocation14 + $0x358] sm:$0xff]
      %v1441 = vld [vmem:[#allocation14 + $0x360] sm:$0xff]
      %v1442 = vld [vmem:[#allocation14 + $0x368] sm:$0xff]
      %v1443 = vld [vmem:[#allocation14 + $0x370] sm:$0xff]
      %v1444 = vld [vmem:[#allocation14 + $0x378] sm:$0xff]
      %v1445 = vld [vmem:[#allocation14 + $0x380] sm:$0xff]
      %v1446 = vld [vmem:[#allocation14 + $0x388] sm:$0xff]
      %v1447 = vld [vmem:[#allocation14 + $0x390] sm:$0xff]
      %v1448 = vld [vmem:[#allocation14 + $0x398] sm:$0xff]
      %v1449 = vld [vmem:[#allocation14 + $0x3a0] sm:$0xff]
      %v1450 = vld [vmem:[#allocation14 + $0x3a8] sm:$0xff]
      %v1451 = vld [vmem:[#allocation14 + $0x3b0] sm:$0xff]
      %v1452 = vld [vmem:[#allocation14 + $0x3b8] sm:$0xff]
      %v1453 = vld [vmem:[#allocation14 + $0x3c0] sm:$0xff]
      %v1454 = vld [vmem:[#allocation14 + $0x3c8] sm:$0xff]
      %v1455 = vld [vmem:[#allocation14 + $0x3d0] sm:$0xff]
      %v1456 = vld [vmem:[#allocation14 + $0x3d8] sm:$0xff]
      %v1457 = vld [vmem:[#allocation14 + $0x3e0] sm:$0xff]
      %v1458 = vld [vmem:[#allocation14 + $0x3e8] sm:$0xff]
      %v1459 = vld [vmem:[#allocation14 + $0x3f0] sm:$0xff]
      %v1460 = vld [vmem:[#allocation14 + $0x3f8] sm:$0xff]
      %v1461 = vld [vmem:[#allocation14 + $0x400] sm:$0xff]
      %v1462 = vld [vmem:[#allocation14 + $0x408] sm:$0xff]
      %v1463 = vld [vmem:[#allocation14 + $0x410] sm:$0xff]
      %v1464 = vld [vmem:[#allocation14 + $0x418] sm:$0xff]
      %v1465 = vld [vmem:[#allocation14 + $0x420] sm:$0xff]
      %v1466 = vld [vmem:[#allocation14 + $0x428] sm:$0xff]
      %v1467 = vld [vmem:[#allocation14 + $0x430] sm:$0xff]
      %v1468 = vld [vmem:[#allocation14 + $0x438] sm:$0xff]
      %v1469 = vld [vmem:[#allocation14 + $0x440] sm:$0xff]
      %v1470 = vld [vmem:[#allocation14 + $0x448] sm:$0xff]
      %v1471 = vld [vmem:[#allocation14 + $0x450] sm:$0xff]
      %v1472 = vld [vmem:[#allocation14 + $0x458] sm:$0xff]
      %v1473 = vld [vmem:[#allocation14 + $0x460] sm:$0xff]
      %v1474 = vld [vmem:[#allocation14 + $0x468] sm:$0xff]
      %v1475 = vld [vmem:[#allocation14 + $0x470] sm:$0xff]
      %v1476 = vld [vmem:[#allocation14 + $0x478] sm:$0xff]
      %v1477 = vld [vmem:[#allocation14 + $0x480] sm:$0xff]
      %v1478 = vld [vmem:[#allocation14 + $0x488] sm:$0xff]
      %v1479 = vld [vmem:[#allocation14 + $0x490] sm:$0xff]
      %v1480 = vld [vmem:[#allocation14 + $0x498] sm:$0xff]
      %v1481 = vld [vmem:[#allocation14 + $0x4a0] sm:$0xff]
      %v1482 = vld [vmem:[#allocation14 + $0x4a8] sm:$0xff]
      %v1483 = vld [vmem:[#allocation14 + $0x4b0] sm:$0xff]
      %v1484 = vld [vmem:[#allocation14 + $0x4b8] sm:$0xff]
      %v1485 = vld [vmem:[#allocation14 + $0x4c0] sm:$0xff]
      %v1486 = vld [vmem:[#allocation14 + $0x4c8] sm:$0xff]
      %v1487 = vld [vmem:[#allocation14 + $0x4d0] sm:$0xff]
      %v1488 = vld [vmem:[#allocation14 + $0x4d8] sm:$0xff]
      %v1489 = vld [vmem:[#allocation14 + $0x4e0] sm:$0xff]
      %v1490 = vld [vmem:[#allocation14 + $0x4e8] sm:$0xff]
      %v1491 = vld [vmem:[#allocation14 + $0x4f0] sm:$0xff]
      %v1492 = vld [vmem:[#allocation14 + $0x4f8] sm:$0xff]
      %v1493 = vld [vmem:[#allocation14 + $0x500] sm:$0xff]
      %v1494 = vld [vmem:[#allocation14 + $0x508] sm:$0xff]
      %v1495 = vld [vmem:[#allocation14 + $0x510] sm:$0xff]
      %v1496 = vld [vmem:[#allocation14 + $0x518] sm:$0xff]
      %v1497 = vld [vmem:[#allocation14 + $0x520] sm:$0xff]
      %v1498 = vld [vmem:[#allocation14 + $0x528] sm:$0xff]
      %v1499 = vld [vmem:[#allocation14 + $0x530] sm:$0xff]
      %v1500 = vld [vmem:[#allocation14 + $0x538] sm:$0xff]
      %v1501 = vld [vmem:[#allocation14 + $0x540] sm:$0xff]
      %v1502 = vld [vmem:[#allocation14 + $0x548] sm:$0xff]
      %v1503 = vld [vmem:[#allocation14 + $0x550] sm:$0xff]
      %v1504 = vld [vmem:[#allocation14 + $0x558] sm:$0xff]
      %v1505 = vld [vmem:[#allocation14 + $0x560] sm:$0xff]
      %v1506 = vld [vmem:[#allocation14 + $0x568] sm:$0xff]
      %v1507 = vld [vmem:[#allocation14 + $0x570] sm:$0xff]
      %v1508 = vld [vmem:[#allocation14 + $0x578] sm:$0xff]
      %v1509 = vld [vmem:[#allocation14 + $0x580] sm:$0xff]
      %v1510 = vld [vmem:[#allocation14 + $0x588] sm:$0xff]
      %v1511 = vld [vmem:[#allocation14 + $0x590] sm:$0xff]
      %v1512 = vld [vmem:[#allocation14 + $0x598] sm:$0xff]
      %v1513 = vld [vmem:[#allocation14 + $0x5a0] sm:$0xff]
      %v1514 = vld [vmem:[#allocation14 + $0x5a8] sm:$0xff]
      %v1515 = vld [vmem:[#allocation14 + $0x5b0] sm:$0xff]
      %v1516 = vld [vmem:[#allocation14 + $0x5b8] sm:$0xff]
      %v1517 = vld [vmem:[#allocation14 + $0x5c0] sm:$0xff]
      %v1518 = vld [vmem:[#allocation14 + $0x5c8] sm:$0xff]
      %v1519 = vld [vmem:[#allocation14 + $0x5d0] sm:$0xff]
      %v1520 = vld [vmem:[#allocation14 + $0x5d8] sm:$0xff]
      %v1521 = vld [vmem:[#allocation14 + $0x5e0] sm:$0xff]
      %v1522 = vld [vmem:[#allocation14 + $0x5e8] sm:$0xff]
      %v1523 = vld [vmem:[#allocation14 + $0x5f0] sm:$0xff]
      %v1524 = vld [vmem:[#allocation14 + $0x5f8] sm:$0xff]
      %v1525 = vld [vmem:[#allocation14 + $0x600] sm:$0xff]
      %v1526 = vld [vmem:[#allocation14 + $0x608] sm:$0xff]
      %v1527 = vld [vmem:[#allocation14 + $0x610] sm:$0xff]
      %v1528 = vld [vmem:[#allocation14 + $0x618] sm:$0xff]
      %v1529 = vld [vmem:[#allocation14 + $0x620] sm:$0xff]
      %v1530 = vld [vmem:[#allocation14 + $0x628] sm:$0xff]
      %v1531 = vld [vmem:[#allocation14 + $0x630] sm:$0xff]
      %v1532 = vld [vmem:[#allocation14 + $0x638] sm:$0xff]
      %v1533 = vld [vmem:[#allocation14 + $0x640] sm:$0xff]
      %v1534 = vld [vmem:[#allocation14 + $0x648] sm:$0xff]
      %v1535 = vld [vmem:[#allocation14 + $0x650] sm:$0xff]
      %v1536 = vld [vmem:[#allocation14 + $0x658] sm:$0xff]
      %v1537 = vld [vmem:[#allocation14 + $0x660] sm:$0xff]
      %v1538 = vld [vmem:[#allocation14 + $0x668] sm:$0xff]
      %v1539 = vld [vmem:[#allocation14 + $0x670] sm:$0xff]
      %v1540 = vld [vmem:[#allocation14 + $0x678] sm:$0xff]
      %v1541 = vld [vmem:[#allocation14 + $0x680] sm:$0xff]
      %v1542 = vld [vmem:[#allocation14 + $0x688] sm:$0xff]
      %v1543 = vld [vmem:[#allocation14 + $0x690] sm:$0xff]
      %v1544 = vld [vmem:[#allocation14 + $0x698] sm:$0xff]
      %v1545 = vld [vmem:[#allocation14 + $0x6a0] sm:$0xff]
      %v1546 = vld [vmem:[#allocation14 + $0x6a8] sm:$0xff]
      %v1547 = vld [vmem:[#allocation14 + $0x6b0] sm:$0xff]
      %v1548 = vld [vmem:[#allocation14 + $0x6b8] sm:$0xff]
      %v1549 = vld [vmem:[#allocation14 + $0x6c0] sm:$0xff]
      %v1550 = vld [vmem:[#allocation14 + $0x6c8] sm:$0xff]
      %v1551 = vld [vmem:[#allocation14 + $0x6d0] sm:$0xff]
      %v1552 = vld [vmem:[#allocation14 + $0x6d8] sm:$0xff]
      %v1553 = vld [vmem:[#allocation14 + $0x6e0] sm:$0xff]
      %v1554 = vld [vmem:[#allocation14 + $0x6e8] sm:$0xff]
      %v1555 = vld [vmem:[#allocation14 + $0x6f0] sm:$0xff]
      %v1556 = vld [vmem:[#allocation14 + $0x6f8] sm:$0xff]
      %v1557 = vld [vmem:[#allocation14 + $0x700] sm:$0xff]
      %v1558 = vld [vmem:[#allocation14 + $0x708] sm:$0xff]
      %v1559 = vld [vmem:[#allocation14 + $0x710] sm:$0xff]
      %v1560 = vld [vmem:[#allocation14 + $0x718] sm:$0xff]
      %v1561 = vld [vmem:[#allocation14 + $0x720] sm:$0xff]
      %v1562 = vld [vmem:[#allocation14 + $0x728] sm:$0xff]
      %v1563 = vld [vmem:[#allocation14 + $0x730] sm:$0xff]
      %v1564 = vld [vmem:[#allocation14 + $0x738] sm:$0xff]
      %v1565 = vld [vmem:[#allocation14 + $0x740] sm:$0xff]
      %v1566 = vld [vmem:[#allocation14 + $0x748] sm:$0xff]
      %v1567 = vld [vmem:[#allocation14 + $0x750] sm:$0xff]
      %v1568 = vld [vmem:[#allocation14 + $0x758] sm:$0xff]
      %v1569 = vld [vmem:[#allocation14 + $0x760] sm:$0xff]
      %v1570 = vld [vmem:[#allocation14 + $0x768] sm:$0xff]
      %v1571 = vld [vmem:[#allocation14 + $0x770] sm:$0xff]
      %v1572 = vld [vmem:[#allocation14 + $0x778] sm:$0xff]
      %v1573 = vld [vmem:[#allocation14 + $0x780] sm:$0xff]
      %v1574 = vld [vmem:[#allocation14 + $0x788] sm:$0xff]
      %v1575 = vld [vmem:[#allocation14 + $0x790] sm:$0xff]
      %v1576 = vld [vmem:[#allocation14 + $0x798] sm:$0xff]
      %v1577 = vld [vmem:[#allocation14 + $0x7a0] sm:$0xff]
      %v1578 = vld [vmem:[#allocation14 + $0x7a8] sm:$0xff]
      %v1579 = vld [vmem:[#allocation14 + $0x7b0] sm:$0xff]
      %v1580 = vld [vmem:[#allocation14 + $0x7b8] sm:$0xff]
      %v1581 = vld [vmem:[#allocation14 + $0x7c0] sm:$0xff]
      %v1582 = vld [vmem:[#allocation14 + $0x7c8] sm:$0xff]
      %v1583 = vld [vmem:[#allocation14 + $0x7d0] sm:$0xff]
      %v1584 = vld [vmem:[#allocation14 + $0x7d8] sm:$0xff]
      %v1585 = vld [vmem:[#allocation14 + $0x7e0] sm:$0xff]
      %v1586 = vld [vmem:[#allocation14 + $0x7e8] sm:$0xff]
      %v1587 = vld [vmem:[#allocation14 + $0x7f0] sm:$0xff]
      %v1588 = vld [vmem:[#allocation14 + $0x7f8] sm:$0xff]
      %v1589 = vld [vmem:[#allocation14 + $0x800] sm:$0xff]
      %v1590 = vld [vmem:[#allocation14 + $0x808] sm:$0xff]
      %v1591 = vld [vmem:[#allocation14 + $0x810] sm:$0xff]
      %v1592 = vld [vmem:[#allocation14 + $0x818] sm:$0xff]
      %v1593 = vld [vmem:[#allocation14 + $0x820] sm:$0xff]
      %v1594 = vld [vmem:[#allocation14 + $0x828] sm:$0xff]
      %v1595 = vld [vmem:[#allocation14 + $0x830] sm:$0xff]
      %v1596 = vld [vmem:[#allocation14 + $0x838] sm:$0xff]
      %v1597 = vld [vmem:[#allocation14 + $0x840] sm:$0xff]
      %v1598 = vld [vmem:[#allocation14 + $0x848] sm:$0xff]
      %v1599 = vld [vmem:[#allocation14 + $0x850] sm:$0xff]
      %v1600 = vld [vmem:[#allocation14 + $0x858] sm:$0xff]
      %v1601 = vld [vmem:[#allocation14 + $0x860] sm:$0xff]
      %v1602 = vld [vmem:[#allocation14 + $0x868] sm:$0xff]
      %v1603 = vld [vmem:[#allocation14 + $0x870] sm:$0xff]
      %v1604 = vld [vmem:[#allocation14 + $0x878] sm:$0xff]
      %v1605 = vld [vmem:[#allocation14 + $0x880] sm:$0xff]
      %v1606 = vld [vmem:[#allocation14 + $0x888] sm:$0xff]
      %v1607 = vld [vmem:[#allocation14 + $0x890] sm:$0xff]
      %v1608 = vld [vmem:[#allocation14 + $0x898] sm:$0xff]
      %v1609 = vld [vmem:[#allocation14 + $0x8a0] sm:$0xff]
      %v1610 = vld [vmem:[#allocation14 + $0x8a8] sm:$0xff]
      %v1611 = vld [vmem:[#allocation14 + $0x8b0] sm:$0xff]
      %v1612 = vld [vmem:[#allocation14 + $0x8b8] sm:$0xff]
      %v1613 = vld [vmem:[#allocation14 + $0x8c0] sm:$0xff]
      %v1614 = vld [vmem:[#allocation14 + $0x8c8] sm:$0xff]
      %v1615 = vld [vmem:[#allocation14 + $0x8d0] sm:$0xff]
      %v1616 = vld [vmem:[#allocation14 + $0x8d8] sm:$0xff]
      %v1617 = vld [vmem:[#allocation14 + $0x8e0] sm:$0xff]
      %v1618 = vld [vmem:[#allocation14 + $0x8e8] sm:$0xff]
      %v1619 = vld [vmem:[#allocation14 + $0x8f0] sm:$0xff]
      %v1620 = vld [vmem:[#allocation14 + $0x8f8] sm:$0xff]
      %v1621 = vld [vmem:[#allocation14 + $0x900] sm:$0xff]
      %v1622 = vld [vmem:[#allocation14 + $0x908] sm:$0xff]
      %v1623 = vld [vmem:[#allocation14 + $0x910] sm:$0xff]
      %v1624 = vld [vmem:[#allocation14 + $0x918] sm:$0xff]
      %v1625 = vld [vmem:[#allocation14 + $0x920] sm:$0xff]
      %v1626 = vld [vmem:[#allocation14 + $0x928] sm:$0xff]
      %v1627 = vld [vmem:[#allocation14 + $0x930] sm:$0xff]
      %v1628 = vld [vmem:[#allocation14 + $0x938] sm:$0xff]
      %v1629 = vld [vmem:[#allocation14 + $0x940] sm:$0xff]
      %v1630 = vld [vmem:[#allocation14 + $0x948] sm:$0xff]
      %v1631 = vld [vmem:[#allocation14 + $0x950] sm:$0xff]
      %v1632 = vld [vmem:[#allocation14 + $0x958] sm:$0xff]
      %v1633 = vld [vmem:[#allocation14 + $0x960] sm:$0xff]
      %v1634 = vld [vmem:[#allocation14 + $0x968] sm:$0xff]
      %v1635 = vld [vmem:[#allocation14 + $0x970] sm:$0xff]
      %v1636 = vld [vmem:[#allocation14 + $0x978] sm:$0xff]
      %v1637 = vld [vmem:[#allocation14 + $0x980] sm:$0xff]
      %v1638 = vld [vmem:[#allocation14 + $0x988] sm:$0xff]
      %v1639 = vld [vmem:[#allocation14 + $0x990] sm:$0xff]
      %v1640 = vld [vmem:[#allocation14 + $0x998] sm:$0xff]
      %v1641 = vld [vmem:[#allocation14 + $0x9a0] sm:$0xff]
      %v1642 = vld [vmem:[#allocation14 + $0x9a8] sm:$0xff]
      %v1643 = vld [vmem:[#allocation14 + $0x9b0] sm:$0xff]
      %v1644 = vld [vmem:[#allocation14 + $0x9b8] sm:$0xff]
      %v1645 = vld [vmem:[#allocation14 + $0x9c0] sm:$0xff]
      %v1646 = vld [vmem:[#allocation14 + $0x9c8] sm:$0xff]
      %v1647 = vld [vmem:[#allocation14 + $0x9d0] sm:$0xff]
      %v1648 = vld [vmem:[#allocation14 + $0x9d8] sm:$0xff]
      %v1649 = vld [vmem:[#allocation14 + $0x9e0] sm:$0xff]
      %v1650 = vld [vmem:[#allocation14 + $0x9e8] sm:$0xff]
      %v1651 = vld [vmem:[#allocation14 + $0x9f0] sm:$0xff]
      %v1652 = vld [vmem:[#allocation14 + $0x9f8] sm:$0xff]
      %v1653 = vld [vmem:[#allocation14 + $0xa00] sm:$0xff]
      %v1654 = vld [vmem:[#allocation14 + $0xa08] sm:$0xff]
      %v1655 = vld [vmem:[#allocation14 + $0xa10] sm:$0xff]
      %v1656 = vld [vmem:[#allocation14 + $0xa18] sm:$0xff]
      %v1657 = vld [vmem:[#allocation14 + $0xa20] sm:$0xff]
      %v1658 = vld [vmem:[#allocation14 + $0xa28] sm:$0xff]
      %v1659 = vld [vmem:[#allocation14 + $0xa30] sm:$0xff]
      %v1660 = vld [vmem:[#allocation14 + $0xa38] sm:$0xff]
      %v1661 = vld [vmem:[#allocation14 + $0xa40] sm:$0xff]
      %v1662 = vld [vmem:[#allocation14 + $0xa48] sm:$0xff]
      %v1663 = vld [vmem:[#allocation14 + $0xa50] sm:$0xff]
      %v1664 = vld [vmem:[#allocation14 + $0xa58] sm:$0xff]
      %v1665 = vld [vmem:[#allocation14 + $0xa60] sm:$0xff]
      %v1666 = vld [vmem:[#allocation14 + $0xa68] sm:$0xff]
      %v1667 = vld [vmem:[#allocation14 + $0xa70] sm:$0xff]
      %v1668 = vld [vmem:[#allocation14 + $0xa78] sm:$0xff]
      %v1669 = vld [vmem:[#allocation14 + $0xa80] sm:$0xff]
      %v1670 = vld [vmem:[#allocation14 + $0xa88] sm:$0xff]
      %v1671 = vld [vmem:[#allocation14 + $0xa90] sm:$0xff]
      %v1672 = vld [vmem:[#allocation14 + $0xa98] sm:$0xff]
      %v1673 = vld [vmem:[#allocation14 + $0xaa0] sm:$0xff]
      %v1674 = vld [vmem:[#allocation14 + $0xaa8] sm:$0xff]
      %v1675 = vld [vmem:[#allocation14 + $0xab0] sm:$0xff]
      %v1676 = vld [vmem:[#allocation14 + $0xab8] sm:$0xff]
      %v1677 = vld [vmem:[#allocation14 + $0xac0] sm:$0xff]
      %v1678 = vld [vmem:[#allocation14 + $0xac8] sm:$0xff]
      %v1679 = vld [vmem:[#allocation14 + $0xad0] sm:$0xff]
      %v1680 = vld [vmem:[#allocation14 + $0xad8] sm:$0xff]
      %v1681 = vld [vmem:[#allocation14 + $0xae0] sm:$0xff]
      %v1682 = vld [vmem:[#allocation14 + $0xae8] sm:$0xff]
      %v1683 = vld [vmem:[#allocation14 + $0xaf0] sm:$0xff]
      %v1684 = vld [vmem:[#allocation14 + $0xaf8] sm:$0xff]
      %v1685 = vld [vmem:[#allocation14 + $0xb00] sm:$0xff]
      %v1686 = vld [vmem:[#allocation14 + $0xb08] sm:$0xff]
      %v1687 = vld [vmem:[#allocation14 + $0xb10] sm:$0xff]
      %v1688 = vld [vmem:[#allocation14 + $0xb18] sm:$0xff]
      %v1689 = vld [vmem:[#allocation14 + $0xb20] sm:$0xff]
      %v1690 = vld [vmem:[#allocation14 + $0xb28] sm:$0xff]
      %v1691 = vld [vmem:[#allocation14 + $0xb30] sm:$0xff]
      %v1692 = vld [vmem:[#allocation14 + $0xb38] sm:$0xff]
      %v1693 = vld [vmem:[#allocation14 + $0xb40] sm:$0xff]
      %v1694 = vld [vmem:[#allocation14 + $0xb48] sm:$0xff]
      %v1695 = vld [vmem:[#allocation14 + $0xb50] sm:$0xff]
      %v1696 = vld [vmem:[#allocation14 + $0xb58] sm:$0xff]
      %v1697 = vld [vmem:[#allocation14 + $0xb60] sm:$0xff]
      %v1698 = vld [vmem:[#allocation14 + $0xb68] sm:$0xff]
      %v1699 = vld [vmem:[#allocation14 + $0xb70] sm:$0xff]
      %v1700 = vld [vmem:[#allocation14 + $0xb78] sm:$0xff]
      %v1701 = vld [vmem:[#allocation14 + $0xb80] sm:$0xff]
      %v1702 = vld [vmem:[#allocation14 + $0xb88] sm:$0xff]
      %v1703 = vld [vmem:[#allocation14 + $0xb90] sm:$0xff]
      %v1704 = vld [vmem:[#allocation14 + $0xb98] sm:$0xff]
      %v1705 = vld [vmem:[#allocation14 + $0xba0] sm:$0xff]
      %v1706 = vld [vmem:[#allocation14 + $0xba8] sm:$0xff]
      %v1707 = vld [vmem:[#allocation14 + $0xbb0] sm:$0xff]
      %v1708 = vld [vmem:[#allocation14 + $0xbb8] sm:$0xff]
      %v1709 = vld [vmem:[#allocation14 + $0xbc0] sm:$0xff]
      %v1710 = vld [vmem:[#allocation14 + $0xbc8] sm:$0xff]
      %v1711 = vld [vmem:[#allocation14 + $0xbd0] sm:$0xff]
      %v1712 = vld [vmem:[#allocation14 + $0xbd8] sm:$0xff]
      %v1713 = vld [vmem:[#allocation14 + $0xbe0] sm:$0xff]
      %v1714 = vld [vmem:[#allocation14 + $0xbe8] sm:$0xff]
      %v1715 = vld [vmem:[#allocation14 + $0xbf0] sm:$0xff]
      %v1716 = vld [vmem:[#allocation14 + $0xbf8] sm:$0xff]
      %v1717 = vld [vmem:[#allocation14 + $0xc00] sm:$0xff]
      %v1718 = vld [vmem:[#allocation14 + $0xc08] sm:$0xff]
      %v1719 = vld [vmem:[#allocation14 + $0xc10] sm:$0xff]
      %v1720 = vld [vmem:[#allocation14 + $0xc18] sm:$0xff]
      %v1721 = vld [vmem:[#allocation14 + $0xc20] sm:$0xff]
      %v1722 = vld [vmem:[#allocation14 + $0xc28] sm:$0xff]
      %v1723 = vld [vmem:[#allocation14 + $0xc30] sm:$0xff]
      %v1724 = vld [vmem:[#allocation14 + $0xc38] sm:$0xff]
      %v1725 = vld [vmem:[#allocation14 + $0xc40] sm:$0xff]
      %v1726 = vld [vmem:[#allocation14 + $0xc48] sm:$0xff]
      %v1727 = vld [vmem:[#allocation14 + $0xc50] sm:$0xff]
      %v1728 = vld [vmem:[#allocation14 + $0xc58] sm:$0xff]
      %v1729 = vld [vmem:[#allocation14 + $0xc60] sm:$0xff]
      %v1730 = vld [vmem:[#allocation14 + $0xc68] sm:$0xff]
      %v1731 = vld [vmem:[#allocation14 + $0xc70] sm:$0xff]
      %v1732 = vld [vmem:[#allocation14 + $0xc78] sm:$0xff]
      %v1733 = vld [vmem:[#allocation14 + $0xc80] sm:$0xff]
      %v1734 = vld [vmem:[#allocation14 + $0xc88] sm:$0xff]
      %v1735 = vld [vmem:[#allocation14 + $0xc90] sm:$0xff]
      %v1736 = vld [vmem:[#allocation14 + $0xc98] sm:$0xff]
      %v1737 = vld [vmem:[#allocation14 + $0xca0] sm:$0xff]
      %v1738 = vld [vmem:[#allocation14 + $0xca8] sm:$0xff]
      %v1739 = vld [vmem:[#allocation14 + $0xcb0] sm:$0xff]
      %v1740 = vld [vmem:[#allocation14 + $0xcb8] sm:$0xff]
      %v1741 = vld [vmem:[#allocation14 + $0xcc0] sm:$0xff]
      %v1742 = vld [vmem:[#allocation14 + $0xcc8] sm:$0xff]
      %v1743 = vld [vmem:[#allocation14 + $0xcd0] sm:$0xff]
      %v1744 = vld [vmem:[#allocation14 + $0xcd8] sm:$0xff]
      %v1745 = vld [vmem:[#allocation14 + $0xce0] sm:$0xff]
      %v1746 = vld [vmem:[#allocation14 + $0xce8] sm:$0xff]
      %v1747 = vld [vmem:[#allocation14 + $0xcf0] sm:$0xff]
      %v1748 = vld [vmem:[#allocation14 + $0xcf8] sm:$0xff]
      %v1749 = vld [vmem:[#allocation14 + $0xd00] sm:$0xff]
      %v1750 = vld [vmem:[#allocation14 + $0xd08] sm:$0xff]
      %v1751 = vld [vmem:[#allocation14 + $0xd10] sm:$0xff]
      %v1752 = vld [vmem:[#allocation14 + $0xd18] sm:$0xff]
      %v1753 = vld [vmem:[#allocation14 + $0xd20] sm:$0xff]
      %v1754 = vld [vmem:[#allocation14 + $0xd28] sm:$0xff]
      %v1755 = vld [vmem:[#allocation14 + $0xd30] sm:$0xff]
      %v1756 = vld [vmem:[#allocation14 + $0xd38] sm:$0xff]
      %v1757 = vld [vmem:[#allocation14 + $0xd40] sm:$0xff]
      %v1758 = vld [vmem:[#allocation14 + $0xd48] sm:$0xff]
      %v1759 = vld [vmem:[#allocation14 + $0xd50] sm:$0xff]
      %v1760 = vld [vmem:[#allocation14 + $0xd58] sm:$0xff]
      %v1761 = vld [vmem:[#allocation14 + $0xd60] sm:$0xff]
      %v1762 = vld [vmem:[#allocation14 + $0xd68] sm:$0xff]
      %v1763 = vld [vmem:[#allocation14 + $0xd70] sm:$0xff]
      %v1764 = vld [vmem:[#allocation14 + $0xd78] sm:$0xff]
      %v1765 = vld [vmem:[#allocation14 + $0xd80] sm:$0xff]
      %v1766 = vld [vmem:[#allocation14 + $0xd88] sm:$0xff]
      %v1767 = vld [vmem:[#allocation14 + $0xd90] sm:$0xff]
      %v1768 = vld [vmem:[#allocation14 + $0xd98] sm:$0xff]
      %v1769 = vld [vmem:[#allocation14 + $0xda0] sm:$0xff]
      %v1770 = vld [vmem:[#allocation14 + $0xda8] sm:$0xff]
      %v1771 = vld [vmem:[#allocation14 + $0xdb0] sm:$0xff]
      %v1772 = vld [vmem:[#allocation14 + $0xdb8] sm:$0xff]
      %v1773 = vld [vmem:[#allocation14 + $0xdc0] sm:$0xff]
      %v1774 = vld [vmem:[#allocation14 + $0xdc8] sm:$0xff]
      %v1775 = vld [vmem:[#allocation14 + $0xdd0] sm:$0xff]
      %v1776 = vld [vmem:[#allocation14 + $0xdd8] sm:$0xff]
      %v1777 = vld [vmem:[#allocation14 + $0xde0] sm:$0xff]
      %v1778 = vld [vmem:[#allocation14 + $0xde8] sm:$0xff]
      %v1779 = vld [vmem:[#allocation14 + $0xdf0] sm:$0xff]
      %v1780 = vld [vmem:[#allocation14 + $0xdf8] sm:$0xff]
      %v1781 = vld [vmem:[#allocation14 + $0xe00] sm:$0xff]
      %v1782 = vld [vmem:[#allocation14 + $0xe08] sm:$0xff]
      %v1783 = vld [vmem:[#allocation14 + $0xe10] sm:$0xff]
      %v1784 = vld [vmem:[#allocation14 + $0xe18] sm:$0xff]
      %v1785 = vld [vmem:[#allocation14 + $0xe20] sm:$0xff]
      %v1786 = vld [vmem:[#allocation14 + $0xe28] sm:$0xff]
      %v1787 = vld [vmem:[#allocation14 + $0xe30] sm:$0xff]
      %v1788 = vld [vmem:[#allocation14 + $0xe38] sm:$0xff]
      %v1789 = vld [vmem:[#allocation14 + $0xe40] sm:$0xff]
      %v1790 = vld [vmem:[#allocation14 + $0xe48] sm:$0xff]
      %v1791 = vld [vmem:[#allocation14 + $0xe50] sm:$0xff]
      %v1792 = vld [vmem:[#allocation14 + $0xe58] sm:$0xff]
      %v1793 = vld [vmem:[#allocation14 + $0xe60] sm:$0xff]
      %v1794 = vld [vmem:[#allocation14 + $0xe68] sm:$0xff]
      %v1795 = vld [vmem:[#allocation14 + $0xe70] sm:$0xff]
      %v1796 = vld [vmem:[#allocation14 + $0xe78] sm:$0xff]
      %v1797 = vld [vmem:[#allocation14 + $0xe80] sm:$0xff]
      %v1798 = vld [vmem:[#allocation14 + $0xe88] sm:$0xff]
      %v1799 = vld [vmem:[#allocation14 + $0xe90] sm:$0xff]
      %v1800 = vld [vmem:[#allocation14 + $0xe98] sm:$0xff]
      %v1801 = vld [vmem:[#allocation14 + $0xea0] sm:$0xff]
      %v1802 = vld [vmem:[#allocation14 + $0xea8] sm:$0xff]
      %v1803 = vld [vmem:[#allocation14 + $0xeb0] sm:$0xff]
      %v1804 = vld [vmem:[#allocation14 + $0xeb8] sm:$0xff]
      %v1805 = vld [vmem:[#allocation14 + $0xec0] sm:$0xff]
      %v1806 = vld [vmem:[#allocation14 + $0xec8] sm:$0xff]
      %v1807 = vld [vmem:[#allocation14 + $0xed0] sm:$0xff]
      %v1808 = vld [vmem:[#allocation14 + $0xed8] sm:$0xff]
      %v1809 = vld [vmem:[#allocation14 + $0xee0] sm:$0xff]
      %v1810 = vld [vmem:[#allocation14 + $0xee8] sm:$0xff]
      %v1811 = vld [vmem:[#allocation14 + $0xef0] sm:$0xff]
      %v1812 = vld [vmem:[#allocation14 + $0xef8] sm:$0xff]
      %v1813 = vld [vmem:[#allocation14 + $0xf00] sm:$0xff]
      %v1814 = vld [vmem:[#allocation14 + $0xf08] sm:$0xff]
      %v1815 = vld [vmem:[#allocation14 + $0xf10] sm:$0xff]
      %v1816 = vld [vmem:[#allocation14 + $0xf18] sm:$0xff]
      %v1817 = vld [vmem:[#allocation14 + $0xf20] sm:$0xff]
      %v1818 = vld [vmem:[#allocation14 + $0xf28] sm:$0xff]
      %v1819 = vld [vmem:[#allocation14 + $0xf30] sm:$0xff]
      %v1820 = vld [vmem:[#allocation14 + $0xf38] sm:$0xff]
      %v1821 = vld [vmem:[#allocation14 + $0xf40] sm:$0xff]
      %v1822 = vld [vmem:[#allocation14 + $0xf48] sm:$0xff]
      %v1823 = vld [vmem:[#allocation14 + $0xf50] sm:$0xff]
      %v1824 = vld [vmem:[#allocation14 + $0xf58] sm:$0xff]
      %v1825 = vld [vmem:[#allocation14 + $0xf60] sm:$0xff]
      %v1826 = vld [vmem:[#allocation14 + $0xf68] sm:$0xff]
      %v1827 = vld [vmem:[#allocation14 + $0xf70] sm:$0xff]
      %v1828 = vld [vmem:[#allocation14 + $0xf78] sm:$0xff]
      %v1829 = vld [vmem:[#allocation14 + $0xf80] sm:$0xff]
      %v1830 = vld [vmem:[#allocation14 + $0xf88] sm:$0xff]
      %v1831 = vld [vmem:[#allocation14 + $0xf90] sm:$0xff]
      %v1832 = vld [vmem:[#allocation14 + $0xf98] sm:$0xff]
      %v1833 = vld [vmem:[#allocation14 + $0xfa0] sm:$0xff]
      %v1834 = vld [vmem:[#allocation14 + $0xfa8] sm:$0xff]
      %v1835 = vld [vmem:[#allocation14 + $0xfb0] sm:$0xff]
      %v1836 = vld [vmem:[#allocation14 + $0xfb8] sm:$0xff]
      %v1837 = vld [vmem:[#allocation14 + $0xfc0] sm:$0xff]
      %v1838 = vld [vmem:[#allocation14 + $0xfc8] sm:$0xff]
      %v1839 = vld [vmem:[#allocation14 + $0xfd0] sm:$0xff]
      %v1840 = vld [vmem:[#allocation14 + $0xfd8] sm:$0xff]
      %v1841 = vld [vmem:[#allocation14 + $0xfe0] sm:$0xff]
      %v1842 = vld [vmem:[#allocation14 + $0xfe8] sm:$0xff]
      %v1843 = vld [vmem:[#allocation14 + $0xff0] sm:$0xff]
      %v1844 = vld [vmem:[#allocation14 + $0xff8] sm:$0xff]
      %v1845 = vld [vmem:[#allocation15] sm:$0xf]
      %v1847 = vlaneseq
      %v1848 = vshrl.u32 %v1847, 7
      %v1849 = vsub.s32 0, %v1848
      %v1850 = vrot.slane %v1845, %v1849
      %v1851 = vlaneseq
      %v1852 = vshrl.u32 %v1851, 7
      %v1853 = vsub.s32 1, %v1852
      %v1854 = vrot.slane %v1845, %v1853
      %v1855 = vlaneseq
      %v1856 = vshrl.u32 %v1855, 7
      %v1857 = vsub.s32 2, %v1856
      %v1858 = vrot.slane %v1845, %v1857
      %v1859 = vlaneseq
      %v1860 = vshrl.u32 %v1859, 7
      %v1861 = vsub.s32 3, %v1860
      %v1862 = vrot.slane %v1845, %v1861
      %v1869 = vcombine.high %v1331, %v1331
      %v1871 = vunpack.c.l.s4 1983009808
      %v1872 = vunpack.c.0.s8 %v1871
      %v1873 = vlaneseq
      %v1874 = vshrl.u32 %v1873, 7
      %v1875 = vsub.s32 %v1872, %v1874
      %v1876 = vrot.slane %v1331, %v1875
      %v1878 = vunpack.c.l.s4 1983009808
      %v1879 = vunpack.c.0.s8 %v1878
      %v1880 = vlaneseq
      %v1881 = vshrl.u32 %v1880, 7
      %v1882 = vsub.s32 %v1879, %v1881
      %v1883 = vrot.slane %v1869, %v1882
      %v1884 = vcombine.high %v1876, %v1876
      %v1885 = vcombine.high %v1883, %v1883
      %v1886 = vcombine.high %v1332, %v1332
      %v1888 = vunpack.c.l.s4 1983009808
      %v1889 = vunpack.c.0.s8 %v1888
      %v1890 = vlaneseq
      %v1891 = vshrl.u32 %v1890, 7
      %v1892 = vsub.s32 %v1889, %v1891
      %v1893 = vrot.slane %v1332, %v1892
      %v1895 = vunpack.c.l.s4 1983009808
      %v1896 = vunpack.c.0.s8 %v1895
      %v1897 = vlaneseq
      %v1898 = vshrl.u32 %v1897, 7
      %v1899 = vsub.s32 %v1896, %v1898
      %v1900 = vrot.slane %v1886, %v1899
      %v1901 = vcombine.high %v1893, %v1893
      %v1902 = vcombine.high %v1900, %v1900
      %1911 = vmatprep.subr.mxu0 %v1334
      %1912 = vmatpush1.msra.mxu0 %v1333
      %1913 = vmatprep.subr.mxu0 %v1338
      %1914 = vmatpush1.msra.mxu0 %v1337
      %1915 = vmatprep.subr.mxu0 %v1342
      %1916 = vmatpush1.msra.mxu0 %v1341
      %1917 = vmatprep.subr.mxu0 %v1346
      %1918 = vmatpush1.msra.mxu0 %v1345
      %1919 = vmatprep.subr.mxu0 %v1350
      %1920 = vmatpush1.msra.mxu0 %v1349
      %1921 = vmatprep.subr.mxu0 %v1354
      %1922 = vmatpush1.msra.mxu0 %v1353
      %1923 = vmatprep.subr.mxu0 %v1358
      %1924 = vmatpush1.msra.mxu0 %v1357
      %1925 = vmatprep.subr.mxu0 %v1362
      %1926 = vmatpush1.msra.mxu0 %v1361
      %1927 = vmatprep.subr.mxu0 %v1366
      %1928 = vmatpush1.msra.mxu0 %v1365
      %1929 = vmatprep.subr.mxu0 %v1370
      %1930 = vmatpush1.msra.mxu0 %v1369
      %1931 = vmatprep.subr.mxu0 %v1374
      %1932 = vmatpush1.msra.mxu0 %v1373
      %1933 = vmatprep.subr.mxu0 %v1378
      %1934 = vmatpush1.msra.mxu0 %v1377
      %1935 = vmatprep.subr.mxu0 %v1382
      %1936 = vmatpush1.msra.mxu0 %v1381
      %1937 = vmatprep.subr.mxu0 %v1386
      %1938 = vmatpush1.msra.mxu0 %v1385
      %1939 = vmatprep.subr.mxu0 %v1390
      %1940 = vmatpush1.msra.mxu0 %v1389
      %1941 = vmatprep.subr.mxu0 %v1394
      %1942 = vmatpush1.msra.mxu0 %v1393
      %1943 = vmatprep.subr.mxu0 %v1398
      %1944 = vmatpush1.msra.mxu0 %v1397
      %1945 = vmatprep.subr.mxu0 %v1402
      %1946 = vmatpush1.msra.mxu0 %v1401
      %1947 = vmatprep.subr.mxu0 %v1406
      %1948 = vmatpush1.msra.mxu0 %v1405
      %1949 = vmatprep.subr.mxu0 %v1410
      %1950 = vmatpush1.msra.mxu0 %v1409
      %1951 = vmatprep.subr.mxu0 %v1414
      %1952 = vmatpush1.msra.mxu0 %v1413
      %1953 = vmatprep.subr.mxu0 %v1418
      %1954 = vmatpush1.msra.mxu0 %v1417
      %1955 = vmatprep.subr.mxu0 %v1422
      %1956 = vmatpush1.msra.mxu0 %v1421
      %1957 = vmatprep.subr.mxu0 %v1426
      %1958 = vmatpush1.msra.mxu0 %v1425
      %1959 = vmatprep.subr.mxu0 %v1430
      %1960 = vmatpush1.msra.mxu0 %v1429
      %1961 = vmatprep.subr.mxu0 %v1434
      %1962 = vmatpush1.msra.mxu0 %v1433
      %1963 = vmatprep.subr.mxu0 %v1438
      %1964 = vmatpush1.msra.mxu0 %v1437
      %1965 = vmatprep.subr.mxu0 %v1442
      %1966 = vmatpush1.msra.mxu0 %v1441
      %1967 = vmatprep.subr.mxu0 %v1446
      %1968 = vmatpush1.msra.mxu0 %v1445
      %1969 = vmatprep.subr.mxu0 %v1450
      %1970 = vmatpush1.msra.mxu0 %v1449
      %1971 = vmatprep.subr.mxu0 %v1454
      %1972 = vmatpush1.msra.mxu0 %v1453
      %1973 = vmatprep.subr.mxu0 %v1458
      %1974 = vmatpush1.msra.mxu0 %v1457
      %1975 = vmatprep.mubr.f32.mxu0 %v1884
      %1976 = vmatmul.mubr.f32.gmra.mrb[0].mxu0 %v1876
      %v1977 = vpop.f32.mrb[0].mxu0
      %v1978 = vadd.f32 %v1850, %v1977
      %v1979 = vpop.f32.mrb[0].mxu0
      %v1980 = vadd.f32 %v1854, %v1979
      %1981 = vdwg.mxu0
      %1982 = vmatprep.subr.mxu0 %v1462
      %1983 = vmatpush1.msra.mxu0 %v1461
      %1984 = vmatprep.subr.mxu0 %v1466
      %1985 = vmatpush1.msra.mxu0 %v1465
      %1986 = vmatprep.subr.mxu0 %v1470
      %1987 = vmatpush1.msra.mxu0 %v1469
      %1988 = vmatprep.subr.mxu0 %v1474
      %1989 = vmatpush1.msra.mxu0 %v1473
      %1990 = vmatprep.subr.mxu0 %v1478
      %1991 = vmatpush1.msra.mxu0 %v1477
      %1992 = vmatprep.subr.mxu0 %v1482
      %1993 = vmatpush1.msra.mxu0 %v1481
      %1994 = vmatprep.subr.mxu0 %v1486
      %1995 = vmatpush1.msra.mxu0 %v1485
      %1996 = vmatprep.subr.mxu0 %v1490
      %1997 = vmatpush1.msra.mxu0 %v1489
      %1998 = vmatprep.subr.mxu0 %v1494
      %1999 = vmatpush1.msra.mxu0 %v1493
      %2000 = vmatprep.subr.mxu0 %v1498
      %2001 = vmatpush1.msra.mxu0 %v1497
      %2002 = vmatprep.subr.mxu0 %v1502
      %2003 = vmatpush1.msra.mxu0 %v1501
      %2004 = vmatprep.subr.mxu0 %v1506
      %2005 = vmatpush1.msra.mxu0 %v1505
      %2006 = vmatprep.subr.mxu0 %v1510
      %2007 = vmatpush1.msra.mxu0 %v1509
      %2008 = vmatprep.subr.mxu0 %v1514
      %2009 = vmatpush1.msra.mxu0 %v1513
      %2010 = vmatprep.subr.mxu0 %v1518
      %2011 = vmatpush1.msra.mxu0 %v1517
      %2012 = vmatprep.subr.mxu0 %v1522
      %2013 = vmatpush1.msra.mxu0 %v1521
      %2014 = vmatprep.subr.mxu0 %v1526
      %2015 = vmatpush1.msra.mxu0 %v1525
      %2016 = vmatprep.subr.mxu0 %v1530
      %2017 = vmatpush1.msra.mxu0 %v1529
      %2018 = vmatprep.subr.mxu0 %v1534
      %2019 = vmatpush1.msra.mxu0 %v1533
      %2020 = vmatprep.subr.mxu0 %v1538
      %2021 = vmatpush1.msra.mxu0 %v1537
      %2022 = vmatprep.subr.mxu0 %v1542
      %2023 = vmatpush1.msra.mxu0 %v1541
      %2024 = vmatprep.subr.mxu0 %v1546
      %2025 = vmatpush1.msra.mxu0 %v1545
      %2026 = vmatprep.subr.mxu0 %v1550
      %2027 = vmatpush1.msra.mxu0 %v1549
      %2028 = vmatprep.subr.mxu0 %v1554
      %2029 = vmatpush1.msra.mxu0 %v1553
      %2030 = vmatprep.subr.mxu0 %v1558
      %2031 = vmatpush1.msra.mxu0 %v1557
      %2032 = vmatprep.subr.mxu0 %v1562
      %2033 = vmatpush1.msra.mxu0 %v1561
      %2034 = vmatprep.subr.mxu0 %v1566
      %2035 = vmatpush1.msra.mxu0 %v1565
      %2036 = vmatprep.subr.mxu0 %v1570
      %2037 = vmatpush1.msra.mxu0 %v1569
      %2038 = vmatprep.subr.mxu0 %v1574
      %2039 = vmatpush1.msra.mxu0 %v1573
      %2040 = vmatprep.subr.mxu0 %v1578
      %2041 = vmatpush1.msra.mxu0 %v1577
      %2042 = vmatprep.subr.mxu0 %v1582
      %2043 = vmatpush1.msra.mxu0 %v1581
      %2044 = vmatprep.subr.mxu0 %v1586
      %2045 = vmatpush1.msra.mxu0 %v1585
      %2046 = vmatprep.mubr.f32.mxu0 %v1885
      %2047 = vmatmul.mubr.f32.gmra.mrb[0].mxu0 %v1883
      %v2048 = vpop.f32.mrb[0].mxu0
      %v2049 = vadd.f32 %v1978, %v2048
      %v2050 = vpop.f32.mrb[0].mxu0
      %v2051 = vadd.f32 %v1980, %v2050
      %2052 = vdwg.mxu0
      %2053 = vmatprep.subr.mxu0 %v1590
      %2054 = vmatpush1.msra.mxu0 %v1589
      %2055 = vmatprep.subr.mxu0 %v1594
      %2056 = vmatpush1.msra.mxu0 %v1593
      %2057 = vmatprep.subr.mxu0 %v1598
      %2058 = vmatpush1.msra.mxu0 %v1597
      %2059 = vmatprep.subr.mxu0 %v1602
      %2060 = vmatpush1.msra.mxu0 %v1601
      %2061 = vmatprep.subr.mxu0 %v1606
      %2062 = vmatpush1.msra.mxu0 %v1605
      %2063 = vmatprep.subr.mxu0 %v1610
      %2064 = vmatpush1.msra.mxu0 %v1609
      %2065 = vmatprep.subr.mxu0 %v1614
      %2066 = vmatpush1.msra.mxu0 %v1613
      %2067 = vmatprep.subr.mxu0 %v1618
      %2068 = vmatpush1.msra.mxu0 %v1617
      %2069 = vmatprep.subr.mxu0 %v1622
      %2070 = vmatpush1.msra.mxu0 %v1621
      %2071 = vmatprep.subr.mxu0 %v1626
      %2072 = vmatpush1.msra.mxu0 %v1625
      %2073 = vmatprep.subr.mxu0 %v1630
      %2074 = vmatpush1.msra.mxu0 %v1629
      %2075 = vmatprep.subr.mxu0 %v1634
      %2076 = vmatpush1.msra.mxu0 %v1633
      %2077 = vmatprep.subr.mxu0 %v1638
      %2078 = vmatpush1.msra.mxu0 %v1637
      %2079 = vmatprep.subr.mxu0 %v1642
      %2080 = vmatpush1.msra.mxu0 %v1641
      %2081 = vmatprep.subr.mxu0 %v1646
      %2082 = vmatpush1.msra.mxu0 %v1645
      %2083 = vmatprep.subr.mxu0 %v1650
      %2084 = vmatpush1.msra.mxu0 %v1649
      %2085 = vmatprep.subr.mxu0 %v1654
      %2086 = vmatpush1.msra.mxu0 %v1653
      %2087 = vmatprep.subr.mxu0 %v1658
      %2088 = vmatpush1.msra.mxu0 %v1657
      %2089 = vmatprep.subr.mxu0 %v1662
      %2090 = vmatpush1.msra.mxu0 %v1661
      %2091 = vmatprep.subr.mxu0 %v1666
      %2092 = vmatpush1.msra.mxu0 %v1665
      %2093 = vmatprep.subr.mxu0 %v1670
      %2094 = vmatpush1.msra.mxu0 %v1669
      %2095 = vmatprep.subr.mxu0 %v1674
      %2096 = vmatpush1.msra.mxu0 %v1673
      %2097 = vmatprep.subr.mxu0 %v1678
      %2098 = vmatpush1.msra.mxu0 %v1677
      %2099 = vmatprep.subr.mxu0 %v1682
      %2100 = vmatpush1.msra.mxu0 %v1681
      %2101 = vmatprep.subr.mxu0 %v1686
      %2102 = vmatpush1.msra.mxu0 %v1685
      %2103 = vmatprep.subr.mxu0 %v1690
      %2104 = vmatpush1.msra.mxu0 %v1689
      %2105 = vmatprep.subr.mxu0 %v1694
      %2106 = vmatpush1.msra.mxu0 %v1693
      %2107 = vmatprep.subr.mxu0 %v1698
      %2108 = vmatpush1.msra.mxu0 %v1697
      %2109 = vmatprep.subr.mxu0 %v1702
      %2110 = vmatpush1.msra.mxu0 %v1701
      %2111 = vmatprep.subr.mxu0 %v1706
      %2112 = vmatpush1.msra.mxu0 %v1705
      %2113 = vmatprep.subr.mxu0 %v1710
      %2114 = vmatpush1.msra.mxu0 %v1709
      %2115 = vmatprep.subr.mxu0 %v1714
      %2116 = vmatpush1.msra.mxu0 %v1713
      %2117 = vmatprep.mubr.f32.mxu0 %v1901
      %2118 = vmatmul.mubr.f32.gmra.mrb[0].mxu0 %v1893
      %v2119 = vpop.f32.mrb[0].mxu0
      %v2120 = vadd.f32 %v2049, %v2119
      %v2121 = vpop.f32.mrb[0].mxu0
      %v2122 = vadd.f32 %v2051, %v2121
      %2123 = vdwg.mxu0
      %2124 = vmatprep.subr.mxu0 %v1718
      %2125 = vmatpush1.msra.mxu0 %v1717
      %2126 = vmatprep.subr.mxu0 %v1722
      %2127 = vmatpush1.msra.mxu0 %v1721
      %2128 = vmatprep.subr.mxu0 %v1726
      %2129 = vmatpush1.msra.mxu0 %v1725
      %2130 = vmatprep.subr.mxu0 %v1730
      %2131 = vmatpush1.msra.mxu0 %v1729
      %2132 = vmatprep.subr.mxu0 %v1734
      %2133 = vmatpush1.msra.mxu0 %v1733
      %2134 = vmatprep.subr.mxu0 %v1738
      %2135 = vmatpush1.msra.mxu0 %v1737
      %2136 = vmatprep.subr.mxu0 %v1742
      %2137 = vmatpush1.msra.mxu0 %v1741
      %2138 = vmatprep.subr.mxu0 %v1746
      %2139 = vmatpush1.msra.mxu0 %v1745
      %2140 = vmatprep.subr.mxu0 %v1750
      %2141 = vmatpush1.msra.mxu0 %v1749
      %2142 = vmatprep.subr.mxu0 %v1754
      %2143 = vmatpush1.msra.mxu0 %v1753
      %2144 = vmatprep.subr.mxu0 %v1758
      %2145 = vmatpush1.msra.mxu0 %v1757
      %2146 = vmatprep.subr.mxu0 %v1762
      %2147 = vmatpush1.msra.mxu0 %v1761
      %2148 = vmatprep.subr.mxu0 %v1766
      %2149 = vmatpush1.msra.mxu0 %v1765
      %2150 = vmatprep.subr.mxu0 %v1770
      %2151 = vmatpush1.msra.mxu0 %v1769
      %2152 = vmatprep.subr.mxu0 %v1774
      %2153 = vmatpush1.msra.mxu0 %v1773
      %2154 = vmatprep.subr.mxu0 %v1778
      %2155 = vmatpush1.msra.mxu0 %v1777
      %2156 = vmatprep.subr.mxu0 %v1782
      %2157 = vmatpush1.msra.mxu0 %v1781
      %2158 = vmatprep.subr.mxu0 %v1786
      %2159 = vmatpush1.msra.mxu0 %v1785
      %2160 = vmatprep.subr.mxu0 %v1790
      %2161 = vmatpush1.msra.mxu0 %v1789
      %2162 = vmatprep.subr.mxu0 %v1794
      %2163 = vmatpush1.msra.mxu0 %v1793
      %2164 = vmatprep.subr.mxu0 %v1798
      %2165 = vmatpush1.msra.mxu0 %v1797
      %2166 = vmatprep.subr.mxu0 %v1802
      %2167 = vmatpush1.msra.mxu0 %v1801
      %2168 = vmatprep.subr.mxu0 %v1806
      %2169 = vmatpush1.msra.mxu0 %v1805
      %2170 = vmatprep.subr.mxu0 %v1810
      %2171 = vmatpush1.msra.mxu0 %v1809
      %2172 = vmatprep.subr.mxu0 %v1814
      %2173 = vmatpush1.msra.mxu0 %v1813
      %2174 = vmatprep.subr.mxu0 %v1818
      %2175 = vmatpush1.msra.mxu0 %v1817
      %2176 = vmatprep.subr.mxu0 %v1822
      %2177 = vmatpush1.msra.mxu0 %v1821
      %2178 = vmatprep.subr.mxu0 %v1826
      %2179 = vmatpush1.msra.mxu0 %v1825
      %2180 = vmatprep.subr.mxu0 %v1830
      %2181 = vmatpush1.msra.mxu0 %v1829
      %2182 = vmatprep.subr.mxu0 %v1834
      %2183 = vmatpush1.msra.mxu0 %v1833
      %2184 = vmatprep.subr.mxu0 %v1838
      %2185 = vmatpush1.msra.mxu0 %v1837
      %2186 = vmatprep.subr.mxu0 %v1842
      %2187 = vmatpush1.msra.mxu0 %v1841
      %2188 = vmatprep.mubr.f32.mxu0 %v1902
      %2189 = vmatmul.mubr.f32.gmra.mrb[0].mxu0 %v1900
      %v2190 = vpop.f32.mrb[0].mxu0
      %v2191 = vadd.f32 %v2120, %v2190
      %v2192 = vpop.f32.mrb[0].mxu0
      %v2193 = vadd.f32 %v2122, %v2192
      %2194 = vdwg.mxu0
      %2195 = vmatprep.subr.mxu0 %v1336
      %2196 = vmatpush1.msra.mxu0 %v1335
      %2197 = vmatprep.subr.mxu0 %v1340
      %2198 = vmatpush1.msra.mxu0 %v1339
      %2199 = vmatprep.subr.mxu0 %v1344
      %2200 = vmatpush1.msra.mxu0 %v1343
      %2201 = vmatprep.subr.mxu0 %v1348
      %2202 = vmatpush1.msra.mxu0 %v1347
      %2203 = vmatprep.subr.mxu0 %v1352
      %2204 = vmatpush1.msra.mxu0 %v1351
      %2205 = vmatprep.subr.mxu0 %v1356
      %2206 = vmatpush1.msra.mxu0 %v1355
      %2207 = vmatprep.subr.mxu0 %v1360
      %2208 = vmatpush1.msra.mxu0 %v1359
      %2209 = vmatprep.subr.mxu0 %v1364
      %2210 = vmatpush1.msra.mxu0 %v1363
      %2211 = vmatprep.subr.mxu0 %v1368
      %2212 = vmatpush1.msra.mxu0 %v1367
      %2213 = vmatprep.subr.mxu0 %v1372
      %2214 = vmatpush1.msra.mxu0 %v1371
      %2215 = vmatprep.subr.mxu0 %v1376
      %2216 = vmatpush1.msra.mxu0 %v1375
      %2217 = vmatprep.subr.mxu0 %v1380
      %2218 = vmatpush1.msra.mxu0 %v1379
      %2219 = vmatprep.subr.mxu0 %v1384
      %2220 = vmatpush1.msra.mxu0 %v1383
      %2221 = vmatprep.subr.mxu0 %v1388
      %2222 = vmatpush1.msra.mxu0 %v1387
      %2223 = vmatprep.subr.mxu0 %v1392
      %2224 = vmatpush1.msra.mxu0 %v1391
      %2225 = vmatprep.subr.mxu0 %v1396
      %2226 = vmatpush1.msra.mxu0 %v1395
      %2227 = vmatprep.subr.mxu0 %v1400
      %2228 = vmatpush1.msra.mxu0 %v1399
      %2229 = vmatprep.subr.mxu0 %v1404
      %2230 = vmatpush1.msra.mxu0 %v1403
      %2231 = vmatprep.subr.mxu0 %v1408
      %2232 = vmatpush1.msra.mxu0 %v1407
      %2233 = vmatprep.subr.mxu0 %v1412
      %2234 = vmatpush1.msra.mxu0 %v1411
      %2235 = vmatprep.subr.mxu0 %v1416
      %2236 = vmatpush1.msra.mxu0 %v1415
      %2237 = vmatprep.subr.mxu0 %v1420
      %2238 = vmatpush1.msra.mxu0 %v1419
      %2239 = vmatprep.subr.mxu0 %v1424
      %2240 = vmatpush1.msra.mxu0 %v1423
      %2241 = vmatprep.subr.mxu0 %v1428
      %2242 = vmatpush1.msra.mxu0 %v1427
      %2243 = vmatprep.subr.mxu0 %v1432
      %2244 = vmatpush1.msra.mxu0 %v1431
      %2245 = vmatprep.subr.mxu0 %v1436
      %2246 = vmatpush1.msra.mxu0 %v1435
      %2247 = vmatprep.subr.mxu0 %v1440
      %2248 = vmatpush1.msra.mxu0 %v1439
      %2249 = vmatprep.subr.mxu0 %v1444
      %2250 = vmatpush1.msra.mxu0 %v1443
      %2251 = vmatprep.subr.mxu0 %v1448
      %2252 = vmatpush1.msra.mxu0 %v1447
      %2253 = vmatprep.subr.mxu0 %v1452
      %2254 = vmatpush1.msra.mxu0 %v1451
      %2255 = vmatprep.subr.mxu0 %v1456
      %2256 = vmatpush1.msra.mxu0 %v1455
      %2257 = vmatprep.subr.mxu0 %v1460
      %2258 = vmatpush1.msra.mxu0 %v1459
      %2259 = vmatprep.mubr.f32.mxu0 %v1884
      %2260 = vmatmul.mubr.f32.gmra.mrb[0].mxu0 %v1876
      %v2261 = vpop.f32.mrb[0].mxu0
      %v2262 = vadd.f32 %v1858, %v2261
      %v2263 = vpop.f32.mrb[0].mxu0
      %v2264 = vadd.f32 %v1862, %v2263
      %2265 = vdwg.mxu0
      %2266 = vmatprep.subr.mxu0 %v1464
      %2267 = vmatpush1.msra.mxu0 %v1463
      %2268 = vmatprep.subr.mxu0 %v1468
      %2269 = vmatpush1.msra.mxu0 %v1467
      %2270 = vmatprep.subr.mxu0 %v1472
      %2271 = vmatpush1.msra.mxu0 %v1471
      %2272 = vmatprep.subr.mxu0 %v1476
      %2273 = vmatpush1.msra.mxu0 %v1475
      %2274 = vmatprep.subr.mxu0 %v1480
      %2275 = vmatpush1.msra.mxu0 %v1479
      %2276 = vmatprep.subr.mxu0 %v1484
      %2277 = vmatpush1.msra.mxu0 %v1483
      %2278 = vmatprep.subr.mxu0 %v1488
      %2279 = vmatpush1.msra.mxu0 %v1487
      %2280 = vmatprep.subr.mxu0 %v1492
      %2281 = vmatpush1.msra.mxu0 %v1491
      %2282 = vmatprep.subr.mxu0 %v1496
      %2283 = vmatpush1.msra.mxu0 %v1495
      %2284 = vmatprep.subr.mxu0 %v1500
      %2285 = vmatpush1.msra.mxu0 %v1499
      %2286 = vmatprep.subr.mxu0 %v1504
      %2287 = vmatpush1.msra.mxu0 %v1503
      %2288 = vmatprep.subr.mxu0 %v1508
      %2289 = vmatpush1.msra.mxu0 %v1507
      %2290 = vmatprep.subr.mxu0 %v1512
      %2291 = vmatpush1.msra.mxu0 %v1511
      %2292 = vmatprep.subr.mxu0 %v1516
      %2293 = vmatpush1.msra.mxu0 %v1515
      %2294 = vmatprep.subr.mxu0 %v1520
      %2295 = vmatpush1.msra.mxu0 %v1519
      %2296 = vmatprep.subr.mxu0 %v1524
      %2297 = vmatpush1.msra.mxu0 %v1523
      %2298 = vmatprep.subr.mxu0 %v1528
      %2299 = vmatpush1.msra.mxu0 %v1527
      %2300 = vmatprep.subr.mxu0 %v1532
      %2301 = vmatpush1.msra.mxu0 %v1531
      %2302 = vmatprep.subr.mxu0 %v1536
      %2303 = vmatpush1.msra.mxu0 %v1535
      %2304 = vmatprep.subr.mxu0 %v1540
      %2305 = vmatpush1.msra.mxu0 %v1539
      %2306 = vmatprep.subr.mxu0 %v1544
      %2307 = vmatpush1.msra.mxu0 %v1543
      %2308 = vmatprep.subr.mxu0 %v1548
      %2309 = vmatpush1.msra.mxu0 %v1547
      %2310 = vmatprep.subr.mxu0 %v1552
      %2311 = vmatpush1.msra.mxu0 %v1551
      %2312 = vmatprep.subr.mxu0 %v1556
      %2313 = vmatpush1.msra.mxu0 %v1555
      %2314 = vmatprep.subr.mxu0 %v1560
      %2315 = vmatpush1.msra.mxu0 %v1559
      %2316 = vmatprep.subr.mxu0 %v1564
      %2317 = vmatpush1.msra.mxu0 %v1563
      %2318 = vmatprep.subr.mxu0 %v1568
      %2319 = vmatpush1.msra.mxu0 %v1567
      %2320 = vmatprep.subr.mxu0 %v1572
      %2321 = vmatpush1.msra.mxu0 %v1571
      %2322 = vmatprep.subr.mxu0 %v1576
      %2323 = vmatpush1.msra.mxu0 %v1575
      %2324 = vmatprep.subr.mxu0 %v1580
      %2325 = vmatpush1.msra.mxu0 %v1579
      %2326 = vmatprep.subr.mxu0 %v1584
      %2327 = vmatpush1.msra.mxu0 %v1583
      %2328 = vmatprep.subr.mxu0 %v1588
      %2329 = vmatpush1.msra.mxu0 %v1587
      %2330 = vmatprep.mubr.f32.mxu0 %v1885
      %2331 = vmatmul.mubr.f32.gmra.mrb[0].mxu0 %v1883
      %v2332 = vpop.f32.mrb[0].mxu0
      %v2333 = vadd.f32 %v2262, %v2332
      %v2334 = vpop.f32.mrb[0].mxu0
      %v2335 = vadd.f32 %v2264, %v2334
      %2336 = vdwg.mxu0
      %2337 = vmatprep.subr.mxu0 %v1592
      %2338 = vmatpush1.msra.mxu0 %v1591
      %2339 = vmatprep.subr.mxu0 %v1596
      %2340 = vmatpush1.msra.mxu0 %v1595
      %2341 = vmatprep.subr.mxu0 %v1600
      %2342 = vmatpush1.msra.mxu0 %v1599
      %2343 = vmatprep.subr.mxu0 %v1604
      %2344 = vmatpush1.msra.mxu0 %v1603
      %2345 = vmatprep.subr.mxu0 %v1608
      %2346 = vmatpush1.msra.mxu0 %v1607
      %2347 = vmatprep.subr.mxu0 %v1612
      %2348 = vmatpush1.msra.mxu0 %v1611
      %2349 = vmatprep.subr.mxu0 %v1616
      %2350 = vmatpush1.msra.mxu0 %v1615
      %2351 = vmatprep.subr.mxu0 %v1620
      %2352 = vmatpush1.msra.mxu0 %v1619
      %2353 = vmatprep.subr.mxu0 %v1624
      %2354 = vmatpush1.msra.mxu0 %v1623
      %2355 = vmatprep.subr.mxu0 %v1628
      %2356 = vmatpush1.msra.mxu0 %v1627
      %2357 = vmatprep.subr.mxu0 %v1632
      %2358 = vmatpush1.msra.mxu0 %v1631
      %2359 = vmatprep.subr.mxu0 %v1636
      %2360 = vmatpush1.msra.mxu0 %v1635
      %2361 = vmatprep.subr.mxu0 %v1640
      %2362 = vmatpush1.msra.mxu0 %v1639
      %2363 = vmatprep.subr.mxu0 %v1644
      %2364 = vmatpush1.msra.mxu0 %v1643
      %2365 = vmatprep.subr.mxu0 %v1648
      %2366 = vmatpush1.msra.mxu0 %v1647
      %2367 = vmatprep.subr.mxu0 %v1652
      %2368 = vmatpush1.msra.mxu0 %v1651
      %2369 = vmatprep.subr.mxu0 %v1656
      %2370 = vmatpush1.msra.mxu0 %v1655
      %2371 = vmatprep.subr.mxu0 %v1660
      %2372 = vmatpush1.msra.mxu0 %v1659
      %2373 = vmatprep.subr.mxu0 %v1664
      %2374 = vmatpush1.msra.mxu0 %v1663
      %2375 = vmatprep.subr.mxu0 %v1668
      %2376 = vmatpush1.msra.mxu0 %v1667
      %2377 = vmatprep.subr.mxu0 %v1672
      %2378 = vmatpush1.msra.mxu0 %v1671
      %2379 = vmatprep.subr.mxu0 %v1676
      %2380 = vmatpush1.msra.mxu0 %v1675
      %2381 = vmatprep.subr.mxu0 %v1680
      %2382 = vmatpush1.msra.mxu0 %v1679
      %2383 = vmatprep.subr.mxu0 %v1684
      %2384 = vmatpush1.msra.mxu0 %v1683
      %2385 = vmatprep.subr.mxu0 %v1688
      %2386 = vmatpush1.msra.mxu0 %v1687
      %2387 = vmatprep.subr.mxu0 %v1692
      %2388 = vmatpush1.msra.mxu0 %v1691
      %2389 = vmatprep.subr.mxu0 %v1696
      %2390 = vmatpush1.msra.mxu0 %v1695
      %2391 = vmatprep.subr.mxu0 %v1700
      %2392 = vmatpush1.msra.mxu0 %v1699
      %2393 = vmatprep.subr.mxu0 %v1704
      %2394 = vmatpush1.msra.mxu0 %v1703
      %2395 = vmatprep.subr.mxu0 %v1708
      %2396 = vmatpush1.msra.mxu0 %v1707
      %2397 = vmatprep.subr.mxu0 %v1712
      %2398 = vmatpush1.msra.mxu0 %v1711
      %2399 = vmatprep.subr.mxu0 %v1716
      %2400 = vmatpush1.msra.mxu0 %v1715
      %2401 = vmatprep.mubr.f32.mxu0 %v1901
      %2402 = vmatmul.mubr.f32.gmra.mrb[0].mxu0 %v1893
      %v2403 = vpop.f32.mrb[0].mxu0
      %v2404 = vadd.f32 %v2333, %v2403
      %v2405 = vpop.f32.mrb[0].mxu0
      %v2406 = vadd.f32 %v2335, %v2405
      %2407 = vdwg.mxu0
      %2408 = vmatprep.subr.mxu0 %v1720
      %2409 = vmatpush1.msra.mxu0 %v1719
      %2410 = vmatprep.subr.mxu0 %v1724
      %2411 = vmatpush1.msra.mxu0 %v1723
      %2412 = vmatprep.subr.mxu0 %v1728
      %2413 = vmatpush1.msra.mxu0 %v1727
      %2414 = vmatprep.subr.mxu0 %v1732
      %2415 = vmatpush1.msra.mxu0 %v1731
      %2416 = vmatprep.subr.mxu0 %v1736
      %2417 = vmatpush1.msra.mxu0 %v1735
      %2418 = vmatprep.subr.mxu0 %v1740
      %2419 = vmatpush1.msra.mxu0 %v1739
      %2420 = vmatprep.subr.mxu0 %v1744
      %2421 = vmatpush1.msra.mxu0 %v1743
      %2422 = vmatprep.subr.mxu0 %v1748
      %2423 = vmatpush1.msra.mxu0 %v1747
      %2424 = vmatprep.subr.mxu0 %v1752
      %2425 = vmatpush1.msra.mxu0 %v1751
      %2426 = vmatprep.subr.mxu0 %v1756
      %2427 = vmatpush1.msra.mxu0 %v1755
      %2428 = vmatprep.subr.mxu0 %v1760
      %2429 = vmatpush1.msra.mxu0 %v1759
      %2430 = vmatprep.subr.mxu0 %v1764
      %2431 = vmatpush1.msra.mxu0 %v1763
      %2432 = vmatprep.subr.mxu0 %v1768
      %2433 = vmatpush1.msra.mxu0 %v1767
      %2434 = vmatprep.subr.mxu0 %v1772
      %2435 = vmatpush1.msra.mxu0 %v1771
      %2436 = vmatprep.subr.mxu0 %v1776
      %2437 = vmatpush1.msra.mxu0 %v1775
      %2438 = vmatprep.subr.mxu0 %v1780
      %2439 = vmatpush1.msra.mxu0 %v1779
      %2440 = vmatprep.subr.mxu0 %v1784
      %2441 = vmatpush1.msra.mxu0 %v1783
      %2442 = vmatprep.subr.mxu0 %v1788
      %2443 = vmatpush1.msra.mxu0 %v1787
      %2444 = vmatprep.subr.mxu0 %v1792
      %2445 = vmatpush1.msra.mxu0 %v1791
      %2446 = vmatprep.subr.mxu0 %v1796
      %2447 = vmatpush1.msra.mxu0 %v1795
      %2448 = vmatprep.subr.mxu0 %v1800
      %2449 = vmatpush1.msra.mxu0 %v1799
      %2450 = vmatprep.subr.mxu0 %v1804
      %2451 = vmatpush1.msra.mxu0 %v1803
      %2452 = vmatprep.subr.mxu0 %v1808
      %2453 = vmatpush1.msra.mxu0 %v1807
      %2454 = vmatprep.subr.mxu0 %v1812
      %2455 = vmatpush1.msra.mxu0 %v1811
      %2456 = vmatprep.subr.mxu0 %v1816
      %2457 = vmatpush1.msra.mxu0 %v1815
      %2458 = vmatprep.subr.mxu0 %v1820
      %2459 = vmatpush1.msra.mxu0 %v1819
      %2460 = vmatprep.subr.mxu0 %v1824
      %2461 = vmatpush1.msra.mxu0 %v1823
      %2462 = vmatprep.subr.mxu0 %v1828
      %2463 = vmatpush1.msra.mxu0 %v1827
      %2464 = vmatprep.subr.mxu0 %v1832
      %2465 = vmatpush1.msra.mxu0 %v1831
      %2466 = vmatprep.subr.mxu0 %v1836
      %2467 = vmatpush1.msra.mxu0 %v1835
      %2468 = vmatprep.subr.mxu0 %v1840
      %2469 = vmatpush1.msra.mxu0 %v1839
      %2470 = vmatprep.subr.mxu0 %v1844
      %2471 = vmatpush1.msra.mxu0 %v1843
      %2472 = vmatprep.mubr.f32.mxu0 %v1902
      %2473 = vmatmul.mubr.f32.gmra.mrb[0].mxu0 %v1900
      %v2474 = vpop.f32.mrb[0].mxu0
      %v2475 = vadd.f32 %v2404, %v2474
      %v2476 = vpop.f32.mrb[0].mxu0
      %v2477 = vadd.f32 %v2406, %v2476
      %2478 = vdwg.mxu0
      %v2479 = vmax.f32 %v2191, 0.0
      %v2480 = vmax.f32 %v2193, 0.0
      %v2481 = vmax.f32 %v2475, 0.0
      %v2482 = vmax.f32 %v2477, 0.0
      %v2483 = vld [vmem:[#allocation17] sm:$0xff]
      %v2484 = vld [vmem:[#allocation17 + $0x8] sm:$0xff]
      %v2485 = vld [vmem:[#allocation17 + $0x10] sm:$0xff]
      %v2486 = vld [vmem:[#allocation17 + $0x18] sm:$0xff]
      %v2487 = vld [vmem:[#allocation17 + $0x20] sm:$0xff]
      %v2488 = vld [vmem:[#allocation17 + $0x28] sm:$0xff]
      %v2489 = vld [vmem:[#allocation17 + $0x30] sm:$0xff]
      %v2490 = vld [vmem:[#allocation17 + $0x38] sm:$0xff]
      %v2491 = vld [vmem:[#allocation17 + $0x40] sm:$0xff]
      %v2492 = vld [vmem:[#allocation17 + $0x48] sm:$0xff]
      %v2493 = vld [vmem:[#allocation17 + $0x50] sm:$0xff]
      %v2494 = vld [vmem:[#allocation17 + $0x58] sm:$0xff]
      %v2495 = vld [vmem:[#allocation17 + $0x60] sm:$0xff]
      %v2496 = vld [vmem:[#allocation17 + $0x68] sm:$0xff]
      %v2497 = vld [vmem:[#allocation17 + $0x70] sm:$0xff]
      %v2498 = vld [vmem:[#allocation17 + $0x78] sm:$0xff]
      %v2499 = vld [vmem:[#allocation17 + $0x80] sm:$0xff]
      %v2500 = vld [vmem:[#allocation17 + $0x88] sm:$0xff]
      %v2501 = vld [vmem:[#allocation17 + $0x90] sm:$0xff]
      %v2502 = vld [vmem:[#allocation17 + $0x98] sm:$0xff]
      %v2503 = vld [vmem:[#allocation17 + $0xa0] sm:$0xff]
      %v2504 = vld [vmem:[#allocation17 + $0xa8] sm:$0xff]
      %v2505 = vld [vmem:[#allocation17 + $0xb0] sm:$0xff]
      %v2506 = vld [vmem:[#allocation17 + $0xb8] sm:$0xff]
      %v2507 = vld [vmem:[#allocation17 + $0xc0] sm:$0xff]
      %v2508 = vld [vmem:[#allocation17 + $0xc8] sm:$0xff]
      %v2509 = vld [vmem:[#allocation17 + $0xd0] sm:$0xff]
      %v2510 = vld [vmem:[#allocation17 + $0xd8] sm:$0xff]
      %v2511 = vld [vmem:[#allocation17 + $0xe0] sm:$0xff]
      %v2512 = vld [vmem:[#allocation17 + $0xe8] sm:$0xff]
      %v2513 = vld [vmem:[#allocation17 + $0xf0] sm:$0xff]
      %v2514 = vld [vmem:[#allocation17 + $0xf8] sm:$0xff]
      %v2515 = vld [vmem:[#allocation17 + $0x100] sm:$0xff]
      %v2516 = vld [vmem:[#allocation17 + $0x108] sm:$0xff]
      %v2517 = vld [vmem:[#allocation17 + $0x110] sm:$0xff]
      %v2518 = vld [vmem:[#allocation17 + $0x118] sm:$0xff]
      %v2519 = vld [vmem:[#allocation17 + $0x120] sm:$0xff]
      %v2520 = vld [vmem:[#allocation17 + $0x128] sm:$0xff]
      %v2521 = vld [vmem:[#allocation17 + $0x130] sm:$0xff]
      %v2522 = vld [vmem:[#allocation17 + $0x138] sm:$0xff]
      %v2523 = vld [vmem:[#allocation17 + $0x140] sm:$0xff]
      %v2524 = vld [vmem:[#allocation17 + $0x148] sm:$0xff]
      %v2525 = vld [vmem:[#allocation17 + $0x150] sm:$0xff]
      %v2526 = vld [vmem:[#allocation17 + $0x158] sm:$0xff]
      %v2527 = vld [vmem:[#allocation17 + $0x160] sm:$0xff]
      %v2528 = vld [vmem:[#allocation17 + $0x168] sm:$0xff]
      %v2529 = vld [vmem:[#allocation17 + $0x170] sm:$0xff]
      %v2530 = vld [vmem:[#allocation17 + $0x178] sm:$0xff]
      %v2531 = vld [vmem:[#allocation17 + $0x180] sm:$0xff]
      %v2532 = vld [vmem:[#allocation17 + $0x188] sm:$0xff]
      %v2533 = vld [vmem:[#allocation17 + $0x190] sm:$0xff]
      %v2534 = vld [vmem:[#allocation17 + $0x198] sm:$0xff]
      %v2535 = vld [vmem:[#allocation17 + $0x1a0] sm:$0xff]
      %v2536 = vld [vmem:[#allocation17 + $0x1a8] sm:$0xff]
      %v2537 = vld [vmem:[#allocation17 + $0x1b0] sm:$0xff]
      %v2538 = vld [vmem:[#allocation17 + $0x1b8] sm:$0xff]
      %v2539 = vld [vmem:[#allocation17 + $0x1c0] sm:$0xff]
      %v2540 = vld [vmem:[#allocation17 + $0x1c8] sm:$0xff]
      %v2541 = vld [vmem:[#allocation17 + $0x1d0] sm:$0xff]
      %v2542 = vld [vmem:[#allocation17 + $0x1d8] sm:$0xff]
      %v2543 = vld [vmem:[#allocation17 + $0x1e0] sm:$0xff]
      %v2544 = vld [vmem:[#allocation17 + $0x1e8] sm:$0xff]
      %v2545 = vld [vmem:[#allocation17 + $0x1f0] sm:$0xff]
      %v2546 = vld [vmem:[#allocation17 + $0x1f8] sm:$0xff]
      %v2547 = vld [vmem:[#allocation17 + $0x200] sm:$0xff]
      %v2548 = vld [vmem:[#allocation17 + $0x208] sm:$0xff]
      %v2549 = vld [vmem:[#allocation17 + $0x210] sm:$0xff]
      %v2550 = vld [vmem:[#allocation17 + $0x218] sm:$0xff]
      %v2551 = vld [vmem:[#allocation17 + $0x220] sm:$0xff]
      %v2552 = vld [vmem:[#allocation17 + $0x228] sm:$0xff]
      %v2553 = vld [vmem:[#allocation17 + $0x230] sm:$0xff]
      %v2554 = vld [vmem:[#allocation17 + $0x238] sm:$0xff]
      %v2555 = vld [vmem:[#allocation17 + $0x240] sm:$0xff]
      %v2556 = vld [vmem:[#allocation17 + $0x248] sm:$0xff]
      %v2557 = vld [vmem:[#allocation17 + $0x250] sm:$0xff]
      %v2558 = vld [vmem:[#allocation17 + $0x258] sm:$0xff]
      %v2559 = vld [vmem:[#allocation17 + $0x260] sm:$0xff]
      %v2560 = vld [vmem:[#allocation17 + $0x268] sm:$0xff]
      %v2561 = vld [vmem:[#allocation17 + $0x270] sm:$0xff]
      %v2562 = vld [vmem:[#allocation17 + $0x278] sm:$0xff]
      %v2563 = vld [vmem:[#allocation17 + $0x280] sm:$0xff]
      %v2564 = vld [vmem:[#allocation17 + $0x288] sm:$0xff]
      %v2565 = vld [vmem:[#allocation17 + $0x290] sm:$0xff]
      %v2566 = vld [vmem:[#allocation17 + $0x298] sm:$0xff]
      %v2567 = vld [vmem:[#allocation17 + $0x2a0] sm:$0xff]
      %v2568 = vld [vmem:[#allocation17 + $0x2a8] sm:$0xff]
      %v2569 = vld [vmem:[#allocation17 + $0x2b0] sm:$0xff]
      %v2570 = vld [vmem:[#allocation17 + $0x2b8] sm:$0xff]
      %v2571 = vld [vmem:[#allocation17 + $0x2c0] sm:$0xff]
      %v2572 = vld [vmem:[#allocation17 + $0x2c8] sm:$0xff]
      %v2573 = vld [vmem:[#allocation17 + $0x2d0] sm:$0xff]
      %v2574 = vld [vmem:[#allocation17 + $0x2d8] sm:$0xff]
      %v2575 = vld [vmem:[#allocation17 + $0x2e0] sm:$0xff]
      %v2576 = vld [vmem:[#allocation17 + $0x2e8] sm:$0xff]
      %v2577 = vld [vmem:[#allocation17 + $0x2f0] sm:$0xff]
      %v2578 = vld [vmem:[#allocation17 + $0x2f8] sm:$0xff]
      %v2579 = vld [vmem:[#allocation17 + $0x300] sm:$0xff]
      %v2580 = vld [vmem:[#allocation17 + $0x308] sm:$0xff]
      %v2581 = vld [vmem:[#allocation17 + $0x310] sm:$0xff]
      %v2582 = vld [vmem:[#allocation17 + $0x318] sm:$0xff]
      %v2583 = vld [vmem:[#allocation17 + $0x320] sm:$0xff]
      %v2584 = vld [vmem:[#allocation17 + $0x328] sm:$0xff]
      %v2585 = vld [vmem:[#allocation17 + $0x330] sm:$0xff]
      %v2586 = vld [vmem:[#allocation17 + $0x338] sm:$0xff]
      %v2587 = vld [vmem:[#allocation17 + $0x340] sm:$0xff]
      %v2588 = vld [vmem:[#allocation17 + $0x348] sm:$0xff]
      %v2589 = vld [vmem:[#allocation17 + $0x350] sm:$0xff]
      %v2590 = vld [vmem:[#allocation17 + $0x358] sm:$0xff]
      %v2591 = vld [vmem:[#allocation17 + $0x360] sm:$0xff]
      %v2592 = vld [vmem:[#allocation17 + $0x368] sm:$0xff]
      %v2593 = vld [vmem:[#allocation17 + $0x370] sm:$0xff]
      %v2594 = vld [vmem:[#allocation17 + $0x378] sm:$0xff]
      %v2595 = vld [vmem:[#allocation17 + $0x380] sm:$0xff]
      %v2596 = vld [vmem:[#allocation17 + $0x388] sm:$0xff]
      %v2597 = vld [vmem:[#allocation17 + $0x390] sm:$0xff]
      %v2598 = vld [vmem:[#allocation17 + $0x398] sm:$0xff]
      %v2599 = vld [vmem:[#allocation17 + $0x3a0] sm:$0xff]
      %v2600 = vld [vmem:[#allocation17 + $0x3a8] sm:$0xff]
      %v2601 = vld [vmem:[#allocation17 + $0x3b0] sm:$0xff]
      %v2602 = vld [vmem:[#allocation17 + $0x3b8] sm:$0xff]
      %v2603 = vld [vmem:[#allocation17 + $0x3c0] sm:$0xff]
      %v2604 = vld [vmem:[#allocation17 + $0x3c8] sm:$0xff]
      %v2605 = vld [vmem:[#allocation17 + $0x3d0] sm:$0xff]
      %v2606 = vld [vmem:[#allocation17 + $0x3d8] sm:$0xff]
      %v2607 = vld [vmem:[#allocation17 + $0x3e0] sm:$0xff]
      %v2608 = vld [vmem:[#allocation17 + $0x3e8] sm:$0xff]
      %v2609 = vld [vmem:[#allocation17 + $0x3f0] sm:$0xff]
      %v2610 = vld [vmem:[#allocation17 + $0x3f8] sm:$0xff]
      %v2611 = vld [vmem:[#allocation18] sm:$0x3]
      %v2613 = vlaneseq
      %v2614 = vshrl.u32 %v2613, 7
      %v2615 = vsub.s32 0, %v2614
      %v2616 = vrot.slane %v2611, %v2615
      %v2617 = vlaneseq
      %v2618 = vshrl.u32 %v2617, 7
      %v2619 = vsub.s32 1, %v2618
      %v2620 = vrot.slane %v2611, %v2619
      %2623 = vmatprep.subr.mxu0 %v2484
      %2624 = vmatpush1.msra.mxu0 %v2483
      %2625 = vmatprep.subr.mxu0 %v2486
      %2626 = vmatpush1.msra.mxu0 %v2485
      %2627 = vmatprep.subr.mxu0 %v2488
      %2628 = vmatpush1.msra.mxu0 %v2487
      %2629 = vmatprep.subr.mxu0 %v2490
      %2630 = vmatpush1.msra.mxu0 %v2489
      %2631 = vmatprep.subr.mxu0 %v2492
      %2632 = vmatpush1.msra.mxu0 %v2491
      %2633 = vmatprep.subr.mxu0 %v2494
      %2634 = vmatpush1.msra.mxu0 %v2493
      %2635 = vmatprep.subr.mxu0 %v2496
      %2636 = vmatpush1.msra.mxu0 %v2495
      %2637 = vmatprep.subr.mxu0 %v2498
      %2638 = vmatpush1.msra.mxu0 %v2497
      %2639 = vmatprep.subr.mxu0 %v2500
      %2640 = vmatpush1.msra.mxu0 %v2499
      %2641 = vmatprep.subr.mxu0 %v2502
      %2642 = vmatpush1.msra.mxu0 %v2501
      %2643 = vmatprep.subr.mxu0 %v2504
      %2644 = vmatpush1.msra.mxu0 %v2503
      %2645 = vmatprep.subr.mxu0 %v2506
      %2646 = vmatpush1.msra.mxu0 %v2505
      %2647 = vmatprep.subr.mxu0 %v2508
      %2648 = vmatpush1.msra.mxu0 %v2507
      %2649 = vmatprep.subr.mxu0 %v2510
      %2650 = vmatpush1.msra.mxu0 %v2509
      %2651 = vmatprep.subr.mxu0 %v2512
      %2652 = vmatpush1.msra.mxu0 %v2511
      %2653 = vmatprep.subr.mxu0 %v2514
      %2654 = vmatpush1.msra.mxu0 %v2513
      %2655 = vmatprep.subr.mxu0 %v2516
      %2656 = vmatpush1.msra.mxu0 %v2515
      %2657 = vmatprep.subr.mxu0 %v2518
      %2658 = vmatpush1.msra.mxu0 %v2517
      %2659 = vmatprep.subr.mxu0 %v2520
      %2660 = vmatpush1.msra.mxu0 %v2519
      %2661 = vmatprep.subr.mxu0 %v2522
      %2662 = vmatpush1.msra.mxu0 %v2521
      %2663 = vmatprep.subr.mxu0 %v2524
      %2664 = vmatpush1.msra.mxu0 %v2523
      %2665 = vmatprep.subr.mxu0 %v2526
      %2666 = vmatpush1.msra.mxu0 %v2525
      %2667 = vmatprep.subr.mxu0 %v2528
      %2668 = vmatpush1.msra.mxu0 %v2527
      %2669 = vmatprep.subr.mxu0 %v2530
      %2670 = vmatpush1.msra.mxu0 %v2529
      %2671 = vmatprep.subr.mxu0 %v2532
      %2672 = vmatpush1.msra.mxu0 %v2531
      %2673 = vmatprep.subr.mxu0 %v2534
      %2674 = vmatpush1.msra.mxu0 %v2533
      %2675 = vmatprep.subr.mxu0 %v2536
      %2676 = vmatpush1.msra.mxu0 %v2535
      %2677 = vmatprep.subr.mxu0 %v2538
      %2678 = vmatpush1.msra.mxu0 %v2537
      %2679 = vmatprep.subr.mxu0 %v2540
      %2680 = vmatpush1.msra.mxu0 %v2539
      %2681 = vmatprep.subr.mxu0 %v2542
      %2682 = vmatpush1.msra.mxu0 %v2541
      %2683 = vmatprep.subr.mxu0 %v2544
      %2684 = vmatpush1.msra.mxu0 %v2543
      %2685 = vmatprep.subr.mxu0 %v2546
      %2686 = vmatpush1.msra.mxu0 %v2545
      %2687 = vmatprep.mubr.f32.mxu0 %v2480
      %2688 = vmatmul.mubr.f32.gmra.mrb[0].mxu0 %v2479
      %v2689 = vpop.f32.mrb[0].mxu0
      %v2690 = vadd.f32 %v2616, %v2689
      %v2691 = vpop.f32.mrb[0].mxu0
      %v2692 = vadd.f32 %v2620, %v2691
      %2693 = vdwg.mxu0
      %2694 = vmatprep.subr.mxu0 %v2548
      %2695 = vmatpush1.msra.mxu0 %v2547
      %2696 = vmatprep.subr.mxu0 %v2550
      %2697 = vmatpush1.msra.mxu0 %v2549
      %2698 = vmatprep.subr.mxu0 %v2552
      %2699 = vmatpush1.msra.mxu0 %v2551
      %2700 = vmatprep.subr.mxu0 %v2554
      %2701 = vmatpush1.msra.mxu0 %v2553
      %2702 = vmatprep.subr.mxu0 %v2556
      %2703 = vmatpush1.msra.mxu0 %v2555
      %2704 = vmatprep.subr.mxu0 %v2558
      %2705 = vmatpush1.msra.mxu0 %v2557
      %2706 = vmatprep.subr.mxu0 %v2560
      %2707 = vmatpush1.msra.mxu0 %v2559
      %2708 = vmatprep.subr.mxu0 %v2562
      %2709 = vmatpush1.msra.mxu0 %v2561
      %2710 = vmatprep.subr.mxu0 %v2564
      %2711 = vmatpush1.msra.mxu0 %v2563
      %2712 = vmatprep.subr.mxu0 %v2566
      %2713 = vmatpush1.msra.mxu0 %v2565
      %2714 = vmatprep.subr.mxu0 %v2568
      %2715 = vmatpush1.msra.mxu0 %v2567
      %2716 = vmatprep.subr.mxu0 %v2570
      %2717 = vmatpush1.msra.mxu0 %v2569
      %2718 = vmatprep.subr.mxu0 %v2572
      %2719 = vmatpush1.msra.mxu0 %v2571
      %2720 = vmatprep.subr.mxu0 %v2574
      %2721 = vmatpush1.msra.mxu0 %v2573
      %2722 = vmatprep.subr.mxu0 %v2576
      %2723 = vmatpush1.msra.mxu0 %v2575
      %2724 = vmatprep.subr.mxu0 %v2578
      %2725 = vmatpush1.msra.mxu0 %v2577
      %2726 = vmatprep.subr.mxu0 %v2580
      %2727 = vmatpush1.msra.mxu0 %v2579
      %2728 = vmatprep.subr.mxu0 %v2582
      %2729 = vmatpush1.msra.mxu0 %v2581
      %2730 = vmatprep.subr.mxu0 %v2584
      %2731 = vmatpush1.msra.mxu0 %v2583
      %2732 = vmatprep.subr.mxu0 %v2586
      %2733 = vmatpush1.msra.mxu0 %v2585
      %2734 = vmatprep.subr.mxu0 %v2588
      %2735 = vmatpush1.msra.mxu0 %v2587
      %2736 = vmatprep.subr.mxu0 %v2590
      %2737 = vmatpush1.msra.mxu0 %v2589
      %2738 = vmatprep.subr.mxu0 %v2592
      %2739 = vmatpush1.msra.mxu0 %v2591
      %2740 = vmatprep.subr.mxu0 %v2594
      %2741 = vmatpush1.msra.mxu0 %v2593
      %2742 = vmatprep.subr.mxu0 %v2596
      %2743 = vmatpush1.msra.mxu0 %v2595
      %2744 = vmatprep.subr.mxu0 %v2598
      %2745 = vmatpush1.msra.mxu0 %v2597
      %2746 = vmatprep.subr.mxu0 %v2600
      %2747 = vmatpush1.msra.mxu0 %v2599
      %2748 = vmatprep.subr.mxu0 %v2602
      %2749 = vmatpush1.msra.mxu0 %v2601
      %2750 = vmatprep.subr.mxu0 %v2604
      %2751 = vmatpush1.msra.mxu0 %v2603
      %2752 = vmatprep.subr.mxu0 %v2606
      %2753 = vmatpush1.msra.mxu0 %v2605
      %2754 = vmatprep.subr.mxu0 %v2608
      %2755 = vmatpush1.msra.mxu0 %v2607
      %2756 = vmatprep.subr.mxu0 %v2610
      %2757 = vmatpush1.msra.mxu0 %v2609
      %2758 = vmatprep.mubr.f32.mxu0 %v2482
      %2759 = vmatmul.mubr.f32.gmra.mrb[0].mxu0 %v2481
      %v2760 = vpop.f32.mrb[0].mxu0
      %v2761 = vadd.f32 %v2690, %v2760
      %v2762 = vpop.f32.mrb[0].mxu0
      %v2763 = vadd.f32 %v2692, %v2762
      %2764 = vdwg.mxu0
      %v2765 = vmax.f32 %v2761, 0.0
      %v2766 = vmax.f32 %v2763, 0.0
      %v2767 = vld [vmem:[#allocation20] sm:$0xff]
      %v2768 = vld [vmem:[#allocation20 + $0x8] sm:$0xff]
      %v2769 = vld [vmem:[#allocation20 + $0x10] sm:$0xff]
      %v2770 = vld [vmem:[#allocation20 + $0x18] sm:$0xff]
      %v2771 = vld [vmem:[#allocation20 + $0x20] sm:$0xff]
      %v2772 = vld [vmem:[#allocation20 + $0x28] sm:$0xff]
      %v2773 = vld [vmem:[#allocation20 + $0x30] sm:$0xff]
      %v2774 = vld [vmem:[#allocation20 + $0x38] sm:$0xff]
      %v2775 = vld [vmem:[#allocation20 + $0x40] sm:$0xff]
      %v2776 = vld [vmem:[#allocation20 + $0x48] sm:$0xff]
      %v2777 = vld [vmem:[#allocation20 + $0x50] sm:$0xff]
      %v2778 = vld [vmem:[#allocation20 + $0x58] sm:$0xff]
      %v2779 = vld [vmem:[#allocation20 + $0x60] sm:$0xff]
      %v2780 = vld [vmem:[#allocation20 + $0x68] sm:$0xff]
      %v2781 = vld [vmem:[#allocation20 + $0x70] sm:$0xff]
      %v2782 = vld [vmem:[#allocation20 + $0x78] sm:$0xff]
      %v2783 = vld [vmem:[#allocation20 + $0x80] sm:$0xff]
      %v2784 = vld [vmem:[#allocation20 + $0x88] sm:$0xff]
      %v2785 = vld [vmem:[#allocation20 + $0x90] sm:$0xff]
      %v2786 = vld [vmem:[#allocation20 + $0x98] sm:$0xff]
      %v2787 = vld [vmem:[#allocation20 + $0xa0] sm:$0xff]
      %v2788 = vld [vmem:[#allocation20 + $0xa8] sm:$0xff]
      %v2789 = vld [vmem:[#allocation20 + $0xb0] sm:$0xff]
      %v2790 = vld [vmem:[#allocation20 + $0xb8] sm:$0xff]
      %v2791 = vld [vmem:[#allocation20 + $0xc0] sm:$0xff]
      %v2792 = vld [vmem:[#allocation20 + $0xc8] sm:$0xff]
      %v2793 = vld [vmem:[#allocation20 + $0xd0] sm:$0xff]
      %v2794 = vld [vmem:[#allocation20 + $0xd8] sm:$0xff]
      %v2795 = vld [vmem:[#allocation20 + $0xe0] sm:$0xff]
      %v2796 = vld [vmem:[#allocation20 + $0xe8] sm:$0xff]
      %v2797 = vld [vmem:[#allocation20 + $0xf0] sm:$0xff]
      %v2798 = vld [vmem:[#allocation20 + $0xf8] sm:$0xff]
      %v2799 = vld [vmem:[#allocation21] sm:$0x1]
      %v2801 = vlaneseq
      %v2802 = vshrl.u32 %v2801, 7
      %v2803 = vsub.s32 0, %v2802
      %v2804 = vrot.slane %v2799, %v2803
      %2806 = vmatprep.subr.mxu0 0.0
      %2807 = vmatpush1.msra.mxu0 %v2767
      %2808 = vmatprep.subr.mxu0 0.0
      %2809 = vmatpush1.msra.mxu0 %v2768
      %2810 = vmatprep.subr.mxu0 0.0
      %2811 = vmatpush1.msra.mxu0 %v2769
      %2812 = vmatprep.subr.mxu0 0.0
      %2813 = vmatpush1.msra.mxu0 %v2770
      %2814 = vmatprep.subr.mxu0 0.0
      %2815 = vmatpush1.msra.mxu0 %v2771
      %2816 = vmatprep.subr.mxu0 0.0
      %2817 = vmatpush1.msra.mxu0 %v2772
      %2818 = vmatprep.subr.mxu0 0.0
      %2819 = vmatpush1.msra.mxu0 %v2773
      %2820 = vmatprep.subr.mxu0 0.0
      %2821 = vmatpush1.msra.mxu0 %v2774
      %2822 = vmatprep.subr.mxu0 0.0
      %2823 = vmatpush1.msra.mxu0 %v2775
      %2824 = vmatprep.subr.mxu0 0.0
      %2825 = vmatpush1.msra.mxu0 %v2776
      %2826 = vmatprep.subr.mxu0 0.0
      %2827 = vmatpush1.msra.mxu0 %v2777
      %2828 = vmatprep.subr.mxu0 0.0
      %2829 = vmatpush1.msra.mxu0 %v2778
      %2830 = vmatprep.subr.mxu0 0.0
      %2831 = vmatpush1.msra.mxu0 %v2779
      %2832 = vmatprep.subr.mxu0 0.0
      %2833 = vmatpush1.msra.mxu0 %v2780
      %2834 = vmatprep.subr.mxu0 0.0
      %2835 = vmatpush1.msra.mxu0 %v2781
      %2836 = vmatprep.subr.mxu0 0.0
      %2837 = vmatpush1.msra.mxu0 %v2782
      %2838 = vmatprep.subr.mxu0 0.0
      %2839 = vmatpush1.msra.mxu0 %v2783
      %2840 = vmatprep.subr.mxu0 0.0
      %2841 = vmatpush1.msra.mxu0 %v2784
      %2842 = vmatprep.subr.mxu0 0.0
      %2843 = vmatpush1.msra.mxu0 %v2785
      %2844 = vmatprep.subr.mxu0 0.0
      %2845 = vmatpush1.msra.mxu0 %v2786
      %2846 = vmatprep.subr.mxu0 0.0
      %2847 = vmatpush1.msra.mxu0 %v2787
      %2848 = vmatprep.subr.mxu0 0.0
      %2849 = vmatpush1.msra.mxu0 %v2788
      %2850 = vmatprep.subr.mxu0 0.0
      %2851 = vmatpush1.msra.mxu0 %v2789
      %2852 = vmatprep.subr.mxu0 0.0
      %2853 = vmatpush1.msra.mxu0 %v2790
      %2854 = vmatprep.subr.mxu0 0.0
      %2855 = vmatpush1.msra.mxu0 %v2791
      %2856 = vmatprep.subr.mxu0 0.0
      %2857 = vmatpush1.msra.mxu0 %v2792
      %2858 = vmatprep.subr.mxu0 0.0
      %2859 = vmatpush1.msra.mxu0 %v2793
      %2860 = vmatprep.subr.mxu0 0.0
      %2861 = vmatpush1.msra.mxu0 %v2794
      %2862 = vmatprep.subr.mxu0 0.0
      %2863 = vmatpush1.msra.mxu0 %v2795
      %2864 = vmatprep.subr.mxu0 0.0
      %2865 = vmatpush1.msra.mxu0 %v2796
      %2866 = vmatprep.subr.mxu0 0.0
      %2867 = vmatpush1.msra.mxu0 %v2797
      %2868 = vmatprep.subr.mxu0 0.0
      %2869 = vmatpush1.msra.mxu0 %v2798
      %2870 = vmatprep.mubr.f32.mxu0 %v2766
      %2871 = vmatmul.mubr.f32.gmra.mrb[0].mxu0 %v2765
      %v2872 = vpop.f32.mrb[0].mxu0
      %v2873 = vadd.f32 %v2804, %v2872
      %v2874 = vpop.f32.mrb[0].mxu0
      %2875 = vdwg.mxu0
      %2876 = vst [vmem:[#allocation23] sm:$0x3] %v2873
    $region109: #{tpu_custom_call.1} parent=1 // pred_fallthru
      _
    // Predicated region
    $region110: #{tpu_custom_call.1} parent=1 // pred_check
      _
    $region111: #{tpu_custom_call.1} parent=1 // pred_check_branch
      %2878 = sbr.rel (0) target = $region113
    $region112: #{tpu_custom_call.1} parent=1 // pred_region
      %s2880 = ssub.s32 32, 32
      %2881 = vsyncadd [#allocation5], %s2880
      %s2883 = sshll.u32 [#allocation23], 4
      %s2884 = int_to_ptr.vmem [resolvable:$true] %s2883
      %2886 = dma.vmem_to_hbm [thread:$0]  %s2884, 32, %s13, [#allocation5]
    $region113: #{tpu_custom_call.1} parent=1 // pred_fallthru
      _
    // Predicated region
    $region114: #{tpu_custom_call.1} parent=1 // pred_check
      _
    $region115: #{tpu_custom_call.1} parent=1 // pred_check_branch
      %2888 = sbr.rel (0) target = $region117
    $region116: #{tpu_custom_call.1} parent=1 // pred_region
      %2889 = dma.done [#allocation5], 32
    $region117: #{tpu_custom_call.1} parent=1 // pred_fallthru
      _
    %2890 = vsyncpa [#allocation4], 1
    %2891 = vsyncpa [#allocation7], 1
    %2892 = vsyncpa [#allocation10], 1
    %2893 = vsyncpa [#allocation13], 1
    %2894 = vsyncpa [#allocation16], 1
    %2895 = vsyncpa [#allocation19], 1
    %2896 = vsyncpa [#allocation22], 1
    %2897 = vsyncpa [#allocation5], 1

</llo_original>
